<compile_context>
chip_gen: v7x
topology: tpu7x:2x2x1
jax: 0.10.0
libtpu: 0.0.40
codegen_flags: <defaults>
</compile_context>

<pallas_src>
import functools

import jax
import jax.numpy as jnp
from jax.experimental import pallas as pl
from jax.experimental.pallas import tpu as pltpu


def _round_up(x, m):
    return (x + m - 1) // m * m


def _conv_stats_kernel(x_ref, w_ref, y_ref, ssum_ref, ssq_ref, acc_ref, *,
                       KH, KW, stride, dilation, Ho, Wo):
    # x_ref:    (1, Hp, Wp, Cin_p)       bf16, zero-padded NHWC image
    # w_ref:    (KH*KW, Cin_p, Cout_p)   bf16 conv weight (GEMM layout)
    # y_ref:    (1, Ho*Wo, Cout_p)       f32 pre-BN conv output (lane-dense)
    # ssum_ref: (1, 1, Cout_p)           f32 per-image per-channel sum
    # ssq_ref:  (1, 1, Cout_p)           f32 per-image per-channel sum of squares
    # acc_ref:  (Ho*Wo, Cout_p)          f32 VMEM scratch accumulator
    x = jnp.maximum(x_ref[0], 0)          # ReLU; relu(zero-pad) == 0
    m = Ho * Wo
    acc_ref[...] = jnp.zeros_like(acc_ref)
    for kh in range(KH):
        for kw in range(KW):
            h0 = kh * dilation
            w0 = kw * dilation
            win = x[h0:h0 + (Ho - 1) * stride + 1:stride,
                    w0:w0 + (Wo - 1) * stride + 1:stride, :]   # (Ho, Wo, Cin_p)
            acc_ref[...] += jnp.dot(win.reshape(m, -1),
                                    w_ref[kh * KW + kw],
                                    preferred_element_type=jnp.float32)
    acc = acc_ref[...]
    y_ref[0] = acc
    ssum_ref[0] = jnp.sum(acc, axis=0, keepdims=True)
    ssq_ref[0] = jnp.sum(acc * acc, axis=0, keepdims=True)


def _bn_apply_kernel(y_ref, scale_ref, shift_ref, o_ref):
    # Single fused FMA: out = y * scale + shift  (scale/shift already fold
    # mean, var, eps, gamma, beta).
    o_ref[...] = y_ref[...] * scale_ref[...] + shift_ref[...]


def relu_conv_bn(x_nchw, w_oihw, gamma, beta, *, stride, padding, dilation,
                 eps=1e-5):
    """Forward pass of ReLUConvBN. Inputs follow PyTorch NCHW / OIHW layouts."""
    N, Cin, H, W = x_nchw.shape
    Cout, _, KH, KW = w_oihw.shape
    Ho = (H + 2 * padding - dilation * (KH - 1) - 1) // stride + 1
    Wo = (W + 2 * padding - dilation * (KW - 1) - 1) // stride + 1
    Hp = H + 2 * padding
    Wp = W + 2 * padding

    Cin_p = _round_up(Cin, 8)        # sublane-aligned contraction dim
    Cout_p = _round_up(Cout, 128)    # lane-dense (unmasked) output stores

    # --- layout glue only (no arithmetic): NCHW->NHWC, zero pad, cast bf16 ---
    x = jnp.transpose(x_nchw, (0, 2, 3, 1))
    x = jnp.pad(x, ((0, 0), (padding, padding), (padding, padding),
                    (0, Cin_p - Cin))).astype(jnp.bfloat16)

    # weight: OIHW -> (KH, KW, Cin, Cout) -> pad channels -> (KH*KW, Cin_p, Cout_p)
    w = jnp.transpose(w_oihw, (2, 3, 1, 0))
    w = jnp.pad(w, ((0, 0), (0, 0), (0, Cin_p - Cin), (0, Cout_p - Cout)))
    w = w.reshape(KH * KW, Cin_p, Cout_p).astype(jnp.bfloat16)

    cparams = pltpu.CompilerParams(dimension_semantics=("parallel",),
                                   vmem_limit_bytes=32 * 1024 * 1024)

    # --- pass 1: ReLU + conv (in-VMEM unfold) + per-image partial BN stats ---
    kernel1 = functools.partial(_conv_stats_kernel, KH=KH, KW=KW,
                                stride=stride, dilation=dilation, Ho=Ho, Wo=Wo)
    y, ssum, ssq = pl.pallas_call(
        kernel1,
        grid=(N,),
        in_specs=[
            pl.BlockSpec((1, Hp, Wp, Cin_p), lambda n: (n, 0, 0, 0)),
            pl.BlockSpec((KH * KW, Cin_p, Cout_p), lambda n: (0, 0, 0)),
        ],
        out_specs=[
            pl.BlockSpec((1, Ho * Wo, Cout_p), lambda n: (n, 0, 0)),
            pl.BlockSpec((1, 1, Cout_p), lambda n: (n, 0, 0)),
            pl.BlockSpec((1, 1, Cout_p), lambda n: (n, 0, 0)),
        ],
        out_shape=[
            jax.ShapeDtypeStruct((N, Ho * Wo, Cout_p), jnp.float32),
            jax.ShapeDtypeStruct((N, 1, Cout_p), jnp.float32),
            jax.ShapeDtypeStruct((N, 1, Cout_p), jnp.float32),
        ],
        scratch_shapes=[pltpu.VMEM((Ho * Wo, Cout_p), jnp.float32)],
        compiler_params=cparams,
    )(x, w)

    # --- tiny cross-image stat combine + gamma/beta fold (O(Cout) work) ------
    count = float(N * Ho * Wo)
    mean = jnp.sum(ssum, axis=(0, 1)) / count                       # (Cout_p,)
    var = jnp.maximum(jnp.sum(ssq, axis=(0, 1)) / count - mean * mean, 0.0)
    gamma_p = jnp.pad(gamma.astype(jnp.float32), (0, Cout_p - Cout))
    beta_p = jnp.pad(beta.astype(jnp.float32), (0, Cout_p - Cout))
    inv = jax.lax.rsqrt(var + eps)
    scale = (gamma_p * inv).reshape(1, Cout_p)
    shift = (beta_p - mean * gamma_p * inv).reshape(1, Cout_p)

    # --- pass 2: apply BN as one FMA over row tiles --------------------------
    m_tot = N * Ho * Wo
    y2 = y.reshape(m_tot, Cout_p)
    tm = m_tot
    for cand in (512, 256, 128, 64, 32, 16, 8):
        if m_tot % cand == 0:
            tm = cand
            break
    out2 = pl.pallas_call(
        _bn_apply_kernel,
        grid=(m_tot // tm,),
        in_specs=[
            pl.BlockSpec((tm, Cout_p), lambda i: (i, 0)),
            pl.BlockSpec((1, Cout_p), lambda i: (0, 0)),
            pl.BlockSpec((1, Cout_p), lambda i: (0, 0)),
        ],
        out_specs=pl.BlockSpec((tm, Cout_p), lambda i: (i, 0)),
        out_shape=jax.ShapeDtypeStruct((m_tot, Cout_p), jnp.float32),
        compiler_params=cparams,
    )(y2, scale, shift)

    # drop padded channels, back to NCHW (pure layout glue)
    out = out2[:, :Cout].reshape(N, Ho, Wo, Cout)
    return jnp.transpose(out, (0, 3, 1, 2))


def reference(x_nchw, w_oihw, gamma, beta, *, stride, padding, dilation,
              eps=1e-5):
    """Pure-JAX f32 reference matching PyTorch ReLU->Conv2d->BatchNorm2d(train)."""
    x = jnp.maximum(x_nchw, 0.0)
    y = jax.lax.conv_general_dilated(
        x, w_oihw,
        window_strides=(stride, stride),
        padding=[(padding, padding), (padding, padding)],
        rhs_dilation=(dilation, dilation),
        dimension_numbers=("NCHW", "OIHW", "NCHW"))
    mean = jnp.mean(y, axis=(0, 2, 3), keepdims=True)
    var = jnp.mean((y - mean) ** 2, axis=(0, 2, 3), keepdims=True)
    yn = (y - mean) * jax.lax.rsqrt(var + eps)
    return yn * gamma.reshape(1, -1, 1, 1) + beta.reshape(1, -1, 1, 1)


if __name__ == "__main__":
    # Module config: ReLUConvBN(C_in=4, C_out=8, kernel_size=3, stride=1,
    #                           padding=1, dilation=1, affine=True)
    N, C_in, H, W = 2, 4, 16, 16
    C_out, K, stride, padding, dilation = 8, 3, 1, 1, 1

    key = jax.random.PRNGKey(0)
    kx, kw, kg, kb = jax.random.split(key, 4)
    x = jax.random.normal(kx, (N, C_in, H, W), dtype=jnp.float32)
    w = 0.1 * jax.random.normal(kw, (C_out, C_in, K, K), dtype=jnp.float32)
    gamma = 1.0 + 0.1 * jax.random.normal(kg, (C_out,), dtype=jnp.float32)
    beta = 0.1 * jax.random.normal(kb, (C_out,), dtype=jnp.float32)

    out = relu_conv_bn(x, w, gamma, beta,
                       stride=stride, padding=padding, dilation=dilation)
    out = jax.block_until_ready(out)

    ref = reference(x, w, gamma, beta,
                    stride=stride, padding=padding, dilation=dilation)
    assert out.shape == ref.shape == (N, C_out, H, W), out.shape
    # bf16 MXU operands vs f32 reference -> loose-but-meaningful tolerance.
    assert jnp.allclose(out, ref, atol=8e-2, rtol=5e-2), \
        float(jnp.max(jnp.abs(out - ref)))

    print("KERNEL_OK")
</pallas_src>

<mosaic_0001>
module attributes {stable_mosaic.version = 11 : i64} {
  func.func @_conv_stats_kernel(%arg0: i32, %arg1: memref<1x18x18x8xbf16, #tpu.memory_space<vmem>>, %arg2: memref<9x8x128xbf16, #tpu.memory_space<vmem>>, %arg3: memref<1x256x128xf32, #tpu.memory_space<vmem>>, %arg4: memref<1x1x128xf32, #tpu.memory_space<vmem>>, %arg5: memref<1x1x128xf32, #tpu.memory_space<vmem>>, %arg6: memref<256x128xf32, #tpu.memory_space<vmem>>) attributes {dimension_semantics = [#tpu.dimension_semantics<parallel>], iteration_bounds = array<i64: 2>, scalar_prefetch = 0 : i64, scratch_operands = 1 : i64, tpu.core_type = #tpu.core_type<tc>, window_params = [{transform_indices = @transform_0, window_bounds = array<i64: 1, 18, 18, 8>}, {pipeline_mode = #tpu.pipeline_mode<synchronous>, transform_indices = @transform_1, window_bounds = array<i64: 9, 8, 128>}, {transform_indices = @transform_2, window_bounds = array<i64: 1, 256, 128>}, {transform_indices = @transform_3, window_bounds = array<i64: 1, 1, 128>}, {transform_indices = @transform_4, window_bounds = array<i64: 1, 1, 128>}]} {
    %c0 = arith.constant 0 : index
    %c0_0 = arith.constant 0 : index
    %c0_1 = arith.constant 0 : index
    %c0_2 = arith.constant 0 : index
    %0 = vector.load %arg1[%c0, %c0_0, %c0_1, %c0_2] : memref<1x18x18x8xbf16, #tpu.memory_space<vmem>>, vector<1x18x18x8xbf16>
    %1 = vector.shape_cast %0 : vector<1x18x18x8xbf16> to vector<18x18x8xbf16>
    %cst = arith.constant 0.000000e+00 : bf16
    %2 = vector.broadcast %cst : bf16 to vector<18x18x8xbf16>
    %3 = arith.maximumf %1, %2 : vector<18x18x8xbf16>
    %cst_3 = arith.constant 0.000000e+00 : f32
    %4 = vector.broadcast %cst_3 : f32 to vector<256x128xf32>
    %c0_4 = arith.constant 0 : index
    %c0_5 = arith.constant 0 : index
    %5 = vector.load %arg6[%c0_4, %c0_5] : memref<256x128xf32, #tpu.memory_space<vmem>>, vector<256x128xf32>
    tpu.vector_store %arg6[%c0_4, %c0_5], %4 {strides = array<i32>} : memref<256x128xf32, #tpu.memory_space<vmem>>, vector<256x128xf32>,
    %6 = vector.extract_strided_slice %3 {offsets = [0, 0, 0], sizes = [16, 16, 8], strides = [1, 1, 1]} : vector<18x18x8xbf16> to vector<16x16x8xbf16>
    %c0_6 = arith.constant 0 : index
    %c0_7 = arith.constant 0 : index
    %7 = vector.load %arg6[%c0_6, %c0_7] : memref<256x128xf32, #tpu.memory_space<vmem>>, vector<256x128xf32>
    %8 = vector.shape_cast %6 : vector<16x16x8xbf16> to vector<256x8xbf16>
    %c0_8 = arith.constant 0 : index
    %c0_9 = arith.constant 0 : index
    %c0_10 = arith.constant 0 : index
    %9 = vector.load %arg2[%c0_8, %c0_9, %c0_10] : memref<9x8x128xbf16, #tpu.memory_space<vmem>>, vector<1x8x128xbf16>
    %10 = vector.shape_cast %9 : vector<1x8x128xbf16> to vector<8x128xbf16>
    %cst_11 = arith.constant dense<0.000000e+00> : vector<256x128xf32>
    %11 = tpu.matmul %8, %10, %cst_11 {dimension_numbers = #tpu.dot_dimension_numbers<[1], [0], [0], [1], [0, 0, 1, 1], [], []>} : vector<256x8xbf16>, vector<8x128xbf16>, vector<256x128xf32> -> vector<256x128xf32>
    %12 = arith.addf %7, %11 : vector<256x128xf32>
    %c0_12 = arith.constant 0 : index
    %c0_13 = arith.constant 0 : index
    %13 = vector.load %arg6[%c0_12, %c0_13] : memref<256x128xf32, #tpu.memory_space<vmem>>, vector<256x128xf32>
    tpu.vector_store %arg6[%c0_12, %c0_13], %12 {strides = array<i32>} : memref<256x128xf32, #tpu.memory_space<vmem>>, vector<256x128xf32>,
    %14 = vector.extract_strided_slice %3 {offsets = [0, 1, 0], sizes = [16, 16, 8], strides = [1, 1, 1]} : vector<18x18x8xbf16> to vector<16x16x8xbf16>
    %c0_14 = arith.constant 0 : index
    %c0_15 = arith.constant 0 : index
    %15 = vector.load %arg6[%c0_14, %c0_15] : memref<256x128xf32, #tpu.memory_space<vmem>>, vector<256x128xf32>
    %16 = vector.shape_cast %14 : vector<16x16x8xbf16> to vector<256x8xbf16>
    %c1 = arith.constant 1 : index
    %c0_16 = arith.constant 0 : index
    %c0_17 = arith.constant 0 : index
    %17 = vector.load %arg2[%c1, %c0_16, %c0_17] : memref<9x8x128xbf16, #tpu.memory_space<vmem>>, vector<1x8x128xbf16>
    %18 = vector.shape_cast %17 : vector<1x8x128xbf16> to vector<8x128xbf16>
    %cst_18 = arith.constant dense<0.000000e+00> : vector<256x128xf32>
    %19 = tpu.matmul %16, %18, %cst_18 {dimension_numbers = #tpu.dot_dimension_numbers<[1], [0], [0], [1], [0, 0, 1, 1], [], []>} : vector<256x8xbf16>, vector<8x128xbf16>, vector<256x128xf32> -> vector<256x128xf32>
    %20 = arith.addf %15, %19 : vector<256x128xf32>
    %c0_19 = arith.constant 0 : index
    %c0_20 = arith.constant 0 : index
    %21 = vector.load %arg6[%c0_19, %c0_20] : memref<256x128xf32, #tpu.memory_space<vmem>>, vector<256x128xf32>
    tpu.vector_store %arg6[%c0_19, %c0_20], %20 {strides = array<i32>} : memref<256x128xf32, #tpu.memory_space<vmem>>, vector<256x128xf32>,
    %22 = vector.extract_strided_slice %3 {offsets = [0, 2, 0], sizes = [16, 16, 8], strides = [1, 1, 1]} : vector<18x18x8xbf16> to vector<16x16x8xbf16>
    %c0_21 = arith.constant 0 : index
    %c0_22 = arith.constant 0 : index
    %23 = vector.load %arg6[%c0_21, %c0_22] : memref<256x128xf32, #tpu.memory_space<vmem>>, vector<256x128xf32>
    %24 = vector.shape_cast %22 : vector<16x16x8xbf16> to vector<256x8xbf16>
    %c2 = arith.constant 2 : index
    %c0_23 = arith.constant 0 : index
    %c0_24 = arith.constant 0 : index
    %25 = vector.load %arg2[%c2, %c0_23, %c0_24] : memref<9x8x128xbf16, #tpu.memory_space<vmem>>, vector<1x8x128xbf16>
    %26 = vector.shape_cast %25 : vector<1x8x128xbf16> to vector<8x128xbf16>
    %cst_25 = arith.constant dense<0.000000e+00> : vector<256x128xf32>
    %27 = tpu.matmul %24, %26, %cst_25 {dimension_numbers = #tpu.dot_dimension_numbers<[1], [0], [0], [1], [0, 0, 1, 1], [], []>} : vector<256x8xbf16>, vector<8x128xbf16>, vector<256x128xf32> -> vector<256x128xf32>
    %28 = arith.addf %23, %27 : vector<256x128xf32>
    %c0_26 = arith.constant 0 : index
    %c0_27 = arith.constant 0 : index
    %29 = vector.load %arg6[%c0_26, %c0_27] : memref<256x128xf32, #tpu.memory_space<vmem>>, vector<256x128xf32>
    tpu.vector_store %arg6[%c0_26, %c0_27], %28 {strides = array<i32>} : memref<256x128xf32, #tpu.memory_space<vmem>>, vector<256x128xf32>,
    %30 = vector.extract_strided_slice %3 {offsets = [1, 0, 0], sizes = [16, 16, 8], strides = [1, 1, 1]} : vector<18x18x8xbf16> to vector<16x16x8xbf16>
    %c0_28 = arith.constant 0 : index
    %c0_29 = arith.constant 0 : index
    %31 = vector.load %arg6[%c0_28, %c0_29] : memref<256x128xf32, #tpu.memory_space<vmem>>, vector<256x128xf32>
    %32 = vector.shape_cast %30 : vector<16x16x8xbf16> to vector<256x8xbf16>
    %c3 = arith.constant 3 : index
    %c0_30 = arith.constant 0 : index
    %c0_31 = arith.constant 0 : index
    %33 = vector.load %arg2[%c3, %c0_30, %c0_31] : memref<9x8x128xbf16, #tpu.memory_space<vmem>>, vector<1x8x128xbf16>
    %34 = vector.shape_cast %33 : vector<1x8x128xbf16> to vector<8x128xbf16>
    %cst_32 = arith.constant dense<0.000000e+00> : vector<256x128xf32>
    %35 = tpu.matmul %32, %34, %cst_32 {dimension_numbers = #tpu.dot_dimension_numbers<[1], [0], [0], [1], [0, 0, 1, 1], [], []>} : vector<256x8xbf16>, vector<8x128xbf16>, vector<256x128xf32> -> vector<256x128xf32>
    %36 = arith.addf %31, %35 : vector<256x128xf32>
    %c0_33 = arith.constant 0 : index
    %c0_34 = arith.constant 0 : index
    %37 = vector.load %arg6[%c0_33, %c0_34] : memref<256x128xf32, #tpu.memory_space<vmem>>, vector<256x128xf32>
    tpu.vector_store %arg6[%c0_33, %c0_34], %36 {strides = array<i32>} : memref<256x128xf32, #tpu.memory_space<vmem>>, vector<256x128xf32>,
    %38 = vector.extract_strided_slice %3 {offsets = [1, 1, 0], sizes = [16, 16, 8], strides = [1, 1, 1]} : vector<18x18x8xbf16> to vector<16x16x8xbf16>
    %c0_35 = arith.constant 0 : index
    %c0_36 = arith.constant 0 : index
    %39 = vector.load %arg6[%c0_35, %c0_36] : memref<256x128xf32, #tpu.memory_space<vmem>>, vector<256x128xf32>
    %40 = vector.shape_cast %38 : vector<16x16x8xbf16> to vector<256x8xbf16>
    %c4 = arith.constant 4 : index
    %c0_37 = arith.constant 0 : index
    %c0_38 = arith.constant 0 : index
    %41 = vector.load %arg2[%c4, %c0_37, %c0_38] : memref<9x8x128xbf16, #tpu.memory_space<vmem>>, vector<1x8x128xbf16>
    %42 = vector.shape_cast %41 : vector<1x8x128xbf16> to vector<8x128xbf16>
    %cst_39 = arith.constant dense<0.000000e+00> : vector<256x128xf32>
    %43 = tpu.matmul %40, %42, %cst_39 {dimension_numbers = #tpu.dot_dimension_numbers<[1], [0], [0], [1], [0, 0, 1, 1], [], []>} : vector<256x8xbf16>, vector<8x128xbf16>, vector<256x128xf32> -> vector<256x128xf32>
    %44 = arith.addf %39, %43 : vector<256x128xf32>
    %c0_40 = arith.constant 0 : index
    %c0_41 = arith.constant 0 : index
    %45 = vector.load %arg6[%c0_40, %c0_41] : memref<256x128xf32, #tpu.memory_space<vmem>>, vector<256x128xf32>
    tpu.vector_store %arg6[%c0_40, %c0_41], %44 {strides = array<i32>} : memref<256x128xf32, #tpu.memory_space<vmem>>, vector<256x128xf32>,
    %46 = vector.extract_strided_slice %3 {offsets = [1, 2, 0], sizes = [16, 16, 8], strides = [1, 1, 1]} : vector<18x18x8xbf16> to vector<16x16x8xbf16>
    %c0_42 = arith.constant 0 : index
    %c0_43 = arith.constant 0 : index
    %47 = vector.load %arg6[%c0_42, %c0_43] : memref<256x128xf32, #tpu.memory_space<vmem>>, vector<256x128xf32>
    %48 = vector.shape_cast %46 : vector<16x16x8xbf16> to vector<256x8xbf16>
    %c5 = arith.constant 5 : index
    %c0_44 = arith.constant 0 : index
    %c0_45 = arith.constant 0 : index
    %49 = vector.load %arg2[%c5, %c0_44, %c0_45] : memref<9x8x128xbf16, #tpu.memory_space<vmem>>, vector<1x8x128xbf16>
    %50 = vector.shape_cast %49 : vector<1x8x128xbf16> to vector<8x128xbf16>
    %cst_46 = arith.constant dense<0.000000e+00> : vector<256x128xf32>
    %51 = tpu.matmul %48, %50, %cst_46 {dimension_numbers = #tpu.dot_dimension_numbers<[1], [0], [0], [1], [0, 0, 1, 1], [], []>} : vector<256x8xbf16>, vector<8x128xbf16>, vector<256x128xf32> -> vector<256x128xf32>
    %52 = arith.addf %47, %51 : vector<256x128xf32>
    %c0_47 = arith.constant 0 : index
    %c0_48 = arith.constant 0 : index
    %53 = vector.load %arg6[%c0_47, %c0_48] : memref<256x128xf32, #tpu.memory_space<vmem>>, vector<256x128xf32>
    tpu.vector_store %arg6[%c0_47, %c0_48], %52 {strides = array<i32>} : memref<256x128xf32, #tpu.memory_space<vmem>>, vector<256x128xf32>,
    %54 = vector.extract_strided_slice %3 {offsets = [2, 0, 0], sizes = [16, 16, 8], strides = [1, 1, 1]} : vector<18x18x8xbf16> to vector<16x16x8xbf16>
    %c0_49 = arith.constant 0 : index
    %c0_50 = arith.constant 0 : index
    %55 = vector.load %arg6[%c0_49, %c0_50] : memref<256x128xf32, #tpu.memory_space<vmem>>, vector<256x128xf32>
    %56 = vector.shape_cast %54 : vector<16x16x8xbf16> to vector<256x8xbf16>
    %c6 = arith.constant 6 : index
    %c0_51 = arith.constant 0 : index
    %c0_52 = arith.constant 0 : index
    %57 = vector.load %arg2[%c6, %c0_51, %c0_52] : memref<9x8x128xbf16, #tpu.memory_space<vmem>>, vector<1x8x128xbf16>
    %58 = vector.shape_cast %57 : vector<1x8x128xbf16> to vector<8x128xbf16>
    %cst_53 = arith.constant dense<0.000000e+00> : vector<256x128xf32>
    %59 = tpu.matmul %56, %58, %cst_53 {dimension_numbers = #tpu.dot_dimension_numbers<[1], [0], [0], [1], [0, 0, 1, 1], [], []>} : vector<256x8xbf16>, vector<8x128xbf16>, vector<256x128xf32> -> vector<256x128xf32>
    %60 = arith.addf %55, %59 : vector<256x128xf32>
    %c0_54 = arith.constant 0 : index
    %c0_55 = arith.constant 0 : index
    %61 = vector.load %arg6[%c0_54, %c0_55] : memref<256x128xf32, #tpu.memory_space<vmem>>, vector<256x128xf32>
    tpu.vector_store %arg6[%c0_54, %c0_55], %60 {strides = array<i32>} : memref<256x128xf32, #tpu.memory_space<vmem>>, vector<256x128xf32>,
    %62 = vector.extract_strided_slice %3 {offsets = [2, 1, 0], sizes = [16, 16, 8], strides = [1, 1, 1]} : vector<18x18x8xbf16> to vector<16x16x8xbf16>
    %c0_56 = arith.constant 0 : index
    %c0_57 = arith.constant 0 : index
    %63 = vector.load %arg6[%c0_56, %c0_57] : memref<256x128xf32, #tpu.memory_space<vmem>>, vector<256x128xf32>
    %64 = vector.shape_cast %62 : vector<16x16x8xbf16> to vector<256x8xbf16>
    %c7 = arith.constant 7 : index
    %c0_58 = arith.constant 0 : index
    %c0_59 = arith.constant 0 : index
    %65 = vector.load %arg2[%c7, %c0_58, %c0_59] : memref<9x8x128xbf16, #tpu.memory_space<vmem>>, vector<1x8x128xbf16>
    %66 = vector.shape_cast %65 : vector<1x8x128xbf16> to vector<8x128xbf16>
    %cst_60 = arith.constant dense<0.000000e+00> : vector<256x128xf32>
    %67 = tpu.matmul %64, %66, %cst_60 {dimension_numbers = #tpu.dot_dimension_numbers<[1], [0], [0], [1], [0, 0, 1, 1], [], []>} : vector<256x8xbf16>, vector<8x128xbf16>, vector<256x128xf32> -> vector<256x128xf32>
    %68 = arith.addf %63, %67 : vector<256x128xf32>
    %c0_61 = arith.constant 0 : index
    %c0_62 = arith.constant 0 : index
    %69 = vector.load %arg6[%c0_61, %c0_62] : memref<256x128xf32, #tpu.memory_space<vmem>>, vector<256x128xf32>
    tpu.vector_store %arg6[%c0_61, %c0_62], %68 {strides = array<i32>} : memref<256x128xf32, #tpu.memory_space<vmem>>, vector<256x128xf32>,
    %70 = vector.extract_strided_slice %3 {offsets = [2, 2, 0], sizes = [16, 16, 8], strides = [1, 1, 1]} : vector<18x18x8xbf16> to vector<16x16x8xbf16>
    %c0_63 = arith.constant 0 : index
    %c0_64 = arith.constant 0 : index
    %71 = vector.load %arg6[%c0_63, %c0_64] : memref<256x128xf32, #tpu.memory_space<vmem>>, vector<256x128xf32>
    %72 = vector.shape_cast %70 : vector<16x16x8xbf16> to vector<256x8xbf16>
    %c8 = arith.constant 8 : index
    %c0_65 = arith.constant 0 : index
    %c0_66 = arith.constant 0 : index
    %73 = vector.load %arg2[%c8, %c0_65, %c0_66] : memref<9x8x128xbf16, #tpu.memory_space<vmem>>, vector<1x8x128xbf16>
    %74 = vector.shape_cast %73 : vector<1x8x128xbf16> to vector<8x128xbf16>
    %cst_67 = arith.constant dense<0.000000e+00> : vector<256x128xf32>
    %75 = tpu.matmul %72, %74, %cst_67 {dimension_numbers = #tpu.dot_dimension_numbers<[1], [0], [0], [1], [0, 0, 1, 1], [], []>} : vector<256x8xbf16>, vector<8x128xbf16>, vector<256x128xf32> -> vector<256x128xf32>
    %76 = arith.addf %71, %75 : vector<256x128xf32>
    %c0_68 = arith.constant 0 : index
    %c0_69 = arith.constant 0 : index
    %77 = vector.load %arg6[%c0_68, %c0_69] : memref<256x128xf32, #tpu.memory_space<vmem>>, vector<256x128xf32>
    tpu.vector_store %arg6[%c0_68, %c0_69], %76 {strides = array<i32>} : memref<256x128xf32, #tpu.memory_space<vmem>>, vector<256x128xf32>,
    %c0_70 = arith.constant 0 : index
    %c0_71 = arith.constant 0 : index
    %78 = vector.load %arg6[%c0_70, %c0_71] : memref<256x128xf32, #tpu.memory_space<vmem>>, vector<256x128xf32>
    %c0_72 = arith.constant 0 : index
    %c0_73 = arith.constant 0 : index
    %c0_74 = arith.constant 0 : index
    %79 = vector.load %arg3[%c0_72, %c0_73, %c0_74] : memref<1x256x128xf32, #tpu.memory_space<vmem>>, vector<1x256x128xf32>
    %80 = vector.shape_cast %79 : vector<1x256x128xf32> to vector<256x128xf32>
    %81 = vector.shape_cast %78 : vector<256x128xf32> to vector<1x256x128xf32>
    tpu.vector_store %arg3[%c0_72, %c0_73, %c0_74], %81 {strides = array<i32>} : memref<1x256x128xf32, #tpu.memory_space<vmem>>, vector<1x256x128xf32>,
    %cst_75 = arith.constant dense<0.000000e+00> : vector<128xf32>
    %82 = vector.multi_reduction <add>, %78, %cst_75 [0] : vector<256x128xf32> to vector<128xf32>
    %83 = vector.shape_cast %82 : vector<128xf32> to vector<1x128xf32>
    %c0_76 = arith.constant 0 : index
    %c0_77 = arith.constant 0 : index
    %c0_78 = arith.constant 0 : index
    %84 = vector.load %arg4[%c0_76, %c0_77, %c0_78] : memref<1x1x128xf32, #tpu.memory_space<vmem>>, vector<1x1x128xf32>
    %85 = vector.shape_cast %84 : vector<1x1x128xf32> to vector<1x128xf32>
    %86 = vector.shape_cast %83 : vector<1x128xf32> to vector<1x1x128xf32>
    tpu.vector_store %arg4[%c0_76, %c0_77, %c0_78], %86 {strides = array<i32>} : memref<1x1x128xf32, #tpu.memory_space<vmem>>, vector<1x1x128xf32>,
    %87 = arith.mulf %78, %78 : vector<256x128xf32>
    %cst_79 = arith.constant dense<0.000000e+00> : vector<128xf32>
    %88 = vector.multi_reduction <add>, %87, %cst_79 [0] : vector<256x128xf32> to vector<128xf32>
    %89 = vector.shape_cast %88 : vector<128xf32> to vector<1x128xf32>
    %c0_80 = arith.constant 0 : index
    %c0_81 = arith.constant 0 : index
    %c0_82 = arith.constant 0 : index
    %90 = vector.load %arg5[%c0_80, %c0_81, %c0_82] : memref<1x1x128xf32, #tpu.memory_space<vmem>>, vector<1x1x128xf32>
    %91 = vector.shape_cast %90 : vector<1x1x128xf32> to vector<1x128xf32>
    %92 = vector.shape_cast %89 : vector<1x128xf32> to vector<1x1x128xf32>
    tpu.vector_store %arg5[%c0_80, %c0_81, %c0_82], %92 {strides = array<i32>} : memref<1x1x128xf32, #tpu.memory_space<vmem>>, vector<1x1x128xf32>,
    return
  }
  func.func @transform_0(%arg0: i32) -> (i32, i32, i32, i32) {
    %c0_i32 = arith.constant 0 : i32
    %c0_i32_0 = arith.constant 0 : i32
    %c0_i32_1 = arith.constant 0 : i32
    %c0_i32_2 = arith.constant 0 : i32
    return %arg0, %c0_i32, %c0_i32_0, %c0_i32_1 : i32, i32, i32, i32
  }
  func.func @transform_1(%arg0: i32) -> (i32, i32, i32) {
    %c0_i32 = arith.constant 0 : i32
    %c0_i32_0 = arith.constant 0 : i32
    %c0_i32_1 = arith.constant 0 : i32
    %c0_i32_2 = arith.constant 0 : i32
    return %c0_i32, %c0_i32_0, %c0_i32_1 : i32, i32, i32
  }
  func.func @transform_2(%arg0: i32) -> (i32, i32, i32) {
    %c0_i32 = arith.constant 0 : i32
    %c0_i32_0 = arith.constant 0 : i32
    %c0_i32_1 = arith.constant 0 : i32
    return %arg0, %c0_i32, %c0_i32_0 : i32, i32, i32
  }
  func.func @transform_3(%arg0: i32) -> (i32, i32, i32) {
    %c0_i32 = arith.constant 0 : i32
    %c0_i32_0 = arith.constant 0 : i32
    %c0_i32_1 = arith.constant 0 : i32
    return %arg0, %c0_i32, %c0_i32_0 : i32, i32, i32
  }
  func.func @transform_4(%arg0: i32) -> (i32, i32, i32) {
    %c0_i32 = arith.constant 0 : i32
    %c0_i32_0 = arith.constant 0 : i32
    %c0_i32_1 = arith.constant 0 : i32
    return %arg0, %c0_i32, %c0_i32_0 : i32, i32, i32
  }
}

</mosaic_0001>

<llo_original>
// kernel: tpu_custom_call.1
$region0: #{tpu_custom_call.1}
  #allocation0 [shape = 'u32[]', space=smem, size = 0x4, offset = 0x4, fixed_abs, tag = 'smem constant byte address 0x4 - core index']
  #allocation1 [shape = 'u32[144,128]{1,0:T(1,128)}', space=vmem, size = 0x12000, scoped, tag = 'internal scratch']
  #allocation2 [shape = 'f32[256,128]{1,0:T(8,128)}', space=vmem, size = 0x20000, scoped, tag = 'scratch operand']
  %s0 = inlined_call_operand.vmem [shape: bf16[2,18,18,8], index: 0, kind: input, shape index: {}]
  %s1 = inlined_call_operand.vmem [shape: bf16[9,8,128], index: 1, kind: input, shape index: {}]
  %s2 = inlined_call_operand.hbm [shape: f32[2,256,128], index: 2, kind: output, shape index: {0}]
  %s3 = inlined_call_operand.hbm [shape: f32[2,1,128], index: 3, kind: output, shape index: {1}]
  %s4 = inlined_call_operand.hbm [shape: f32[2,1,128], index: 4, kind: output, shape index: {2}]
  %5 = xla_tuple %s2, %s3, %s4
  %s6 = sld [smem:[#allocation0]]
  $region57: #{tpu_custom_call.1} parent=0
    _
  %s8 = ssub.s32 1, %s6
  %s9 = scalar_select 0, %s8, %s6
  $region1: #{tpu_custom_call.1} parent=0
    #allocation3 [shape = 'u8[262144]{0}', space=vmem, size = 0x40000, scoped, tag = 'output window, operand 0']
    #allocation4 [shape = 's32[2]{0}', space=sflag, size = 0x8, scoped, tag = 'scoped memory for tpu_custom_call.1']
    #allocation5 [shape = 'u8[1024]{0}', space=vmem, size = 0x400, scoped, tag = 'output window, operand 1']
    #allocation6 [shape = 's32[2]{0}', space=sflag, size = 0x8, scoped, tag = 'scoped memory for tpu_custom_call.1']
    #allocation7 [shape = 'u8[1024]{0}', space=vmem, size = 0x400, scoped, tag = 'output window, operand 2']
    %10 = vsyncpa [#allocation4], 0
    %s11 = scalar_lea.sflag [#allocation4], 1
    %12 = vsyncpa %s11, 0
    %13 = vsyncpa [#allocation6], 0
    %s14 = scalar_lea.sflag [#allocation6], 1
    %15 = vsyncpa %s14, 0
    loop: start=0, step=1, limit=4
    $region2: #{tpu_custom_call.1} parent=1 // loop_pre_header
      _
    $region3: #{tpu_custom_call.1} parent=1 // loop_header
      %s17 = sphi 0, %s21
      %p18 = scmp.ge.s32.totalorder %s17, 4
      %s27 = sphi 0, %s29
      %s30 = sphi 0, %s27
      %s31 = sphi 0, %s30
      %s47 = sphi 0, %s31
      %s51 = sphi 0, %s51
      %s53 = sphi 0, %s51
      %s54 = sphi 0, %s53
      %s68 = sphi 0, %s54
      %s74 = sphi 0, %s76
      %s77 = sphi 0, %s74
      %s78 = sphi 0, %s77
      %s94 = sphi 0, %s78
      %s100 = sphi 0, %s102
      %s103 = sphi 0, %s100
      %s104 = sphi 0, %s103
      %s120 = sphi 0, %s104
      %s126 = sphi 0, %s128
      %s129 = sphi 0, %s126
      %s130 = sphi 0, %s129
      %s146 = sphi 0, %s130
    $region4: #{tpu_custom_call.1} parent=1 // loop_header_branch
      %20 = sbr.rel (%p18) target = $region8
    $region5: #{tpu_custom_call.1} parent=1 // loop_body
      %s22 = ssub.s32 %s17, 1
      %s23 = ssub.s32 %s17, 2
      %s24 = sadd.s32 %s17, 1
      %s25 = ssub.s32 %s17, %s24
      %p26 = scmp.eq.s32.totalorder %s25, 0
      %s28 = sadd.s32 %s27, 1
      %s29 = scalar_select %p26, %s27, %s28
      %p32 = pneg %p26
      %p33 = scmp.eq.s32.totalorder %s17, 1
      %p34 = por %p32, %p33
      %p35 = scmp.ne.s32.totalorder %s27, %s30
      %p36 = scmp.eq.s32.totalorder %s17, 0
      %p37 = por %p35, %p36
      %p38 = scmp.ne.s32.totalorder %s27, %s30
      %p39 = scmp.eq.s32.totalorder %s22, 1
      %p40 = por %p38, %p39
      %p41 = scmp.ne.s32.totalorder %s30, %s31
      %p42 = scmp.eq.s32.totalorder %s22, 0
      %p43 = por %p41, %p42
      %p44 = scmp.ne.s32.totalorder %s30, %s31
      %p45 = scmp.eq.s32.totalorder %s23, 1
      %p46 = por %p44, %p45
      %p48 = scmp.ne.s32.totalorder %s31, %s47
      %p49 = scmp.eq.s32.totalorder %s23, 0
      %p50 = por %p48, %p49
      %s52 = sadd.s32 %s51, 1
      %p55 = scmp.eq.s32.totalorder %s17, 1
      %p56 = scmp.ne.s32.totalorder %s51, %s53
      %p57 = scmp.eq.s32.totalorder %s17, 0
      %p58 = por %p56, %p57
      %p59 = scmp.ne.s32.totalorder %s51, %s53
      %p60 = scmp.eq.s32.totalorder %s22, 1
      %p61 = por %p59, %p60
      %p62 = scmp.ne.s32.totalorder %s53, %s54
      %p63 = scmp.eq.s32.totalorder %s22, 0
      %p64 = por %p62, %p63
      %p65 = scmp.ne.s32.totalorder %s53, %s54
      %p66 = scmp.eq.s32.totalorder %s23, 1
      %p67 = por %p65, %p66
      %p69 = scmp.ne.s32.totalorder %s54, %s68
      %p70 = scmp.eq.s32.totalorder %s23, 0
      %p71 = por %p69, %p70
      %s72 = ssub.s32 %s17, %s24
      %p73 = scmp.eq.s32.totalorder %s72, 0
      %s75 = sadd.s32 %s74, 1
      %s76 = scalar_select %p73, %s74, %s75
      %p79 = pneg %p73
      %p80 = scmp.eq.s32.totalorder %s17, 1
      %p81 = por %p79, %p80
      %p82 = scmp.ne.s32.totalorder %s74, %s77
      %p83 = scmp.eq.s32.totalorder %s17, 0
      %p84 = por %p82, %p83
      %p85 = scmp.ne.s32.totalorder %s74, %s77
      %p86 = scmp.eq.s32.totalorder %s22, 1
      %p87 = por %p85, %p86
      %p88 = scmp.ne.s32.totalorder %s77, %s78
      %p89 = scmp.eq.s32.totalorder %s22, 0
      %p90 = por %p88, %p89
      %p91 = scmp.ne.s32.totalorder %s77, %s78
      %p92 = scmp.eq.s32.totalorder %s23, 1
      %p93 = por %p91, %p92
      %p95 = scmp.ne.s32.totalorder %s78, %s94
      %p96 = scmp.eq.s32.totalorder %s23, 0
      %p97 = por %p95, %p96
      %s98 = ssub.s32 %s17, %s24
      %p99 = scmp.eq.s32.totalorder %s98, 0
      %s101 = sadd.s32 %s100, 1
      %s102 = scalar_select %p99, %s100, %s101
      %p105 = pneg %p99
      %p106 = scmp.eq.s32.totalorder %s17, 1
      %p107 = por %p105, %p106
      %p108 = scmp.ne.s32.totalorder %s100, %s103
      %p109 = scmp.eq.s32.totalorder %s17, 0
      %p110 = por %p108, %p109
      %p111 = scmp.ne.s32.totalorder %s100, %s103
      %p112 = scmp.eq.s32.totalorder %s22, 1
      %p113 = por %p111, %p112
      %p114 = scmp.ne.s32.totalorder %s103, %s104
      %p115 = scmp.eq.s32.totalorder %s22, 0
      %p116 = por %p114, %p115
      %p117 = scmp.ne.s32.totalorder %s103, %s104
      %p118 = scmp.eq.s32.totalorder %s23, 1
      %p119 = por %p117, %p118
      %p121 = scmp.ne.s32.totalorder %s104, %s120
      %p122 = scmp.eq.s32.totalorder %s23, 0
      %p123 = por %p121, %p122
      %s124 = ssub.s32 %s17, %s24
      %p125 = scmp.eq.s32.totalorder %s124, 0
      %s127 = sadd.s32 %s126, 1
      %s128 = scalar_select %p125, %s126, %s127
      %p131 = pneg %p125
      %p132 = scmp.eq.s32.totalorder %s17, 1
      %p133 = por %p131, %p132
      %p134 = scmp.ne.s32.totalorder %s126, %s129
      %p135 = scmp.eq.s32.totalorder %s17, 0
      %p136 = por %p134, %p135
      %p137 = scmp.ne.s32.totalorder %s126, %s129
      %p138 = scmp.eq.s32.totalorder %s22, 1
      %p139 = por %p137, %p138
      %p140 = scmp.ne.s32.totalorder %s129, %s130
      %p141 = scmp.eq.s32.totalorder %s22, 0
      %p142 = por %p140, %p141
      %p143 = scmp.ne.s32.totalorder %s129, %s130
      %p144 = scmp.eq.s32.totalorder %s23, 1
      %p145 = por %p143, %p144
      %p147 = scmp.ne.s32.totalorder %s130, %s146
      %p148 = scmp.eq.s32.totalorder %s23, 0
      %p149 = por %p147, %p148
      %p150 = scmp.le.s32.totalorder 1, %s17
      %p151 = scmp.lt.s32.totalorder %s17, 3
      %p152 = pnand %p150, %p151
      %p153 = pneg %p152
      // Predicated region
      $region9: #{tpu_custom_call.1} parent=5 // pred_check
        _
      $region10: #{tpu_custom_call.1} parent=5 // pred_check_branch
        %155 = sbr.rel (%p152) target = $region12
      $region11: #{tpu_custom_call.1} parent=5 // pred_region
        %s156 = ssub.s32 %s17, 1
        // Predicated region
        $region13: #{tpu_custom_call.1} parent=11 // pred_check
          %p157 = pneg %p64
        $region14: #{tpu_custom_call.1} parent=11 // pred_check_branch
          %159 = sbr.rel (%p157) target = $region16
        $region15: #{tpu_custom_call.1} parent=11 // pred_region
          _
        $region16: #{tpu_custom_call.1} parent=11 // pred_fallthru
          _
      $region12: #{tpu_custom_call.1} parent=5 // pred_fallthru
        _
      %p160 = scmp.lt.s32.totalorder %s17, 2
      // Predicated region
      $region17: #{tpu_custom_call.1} parent=5 // pred_check
        %p161 = pneg %p160
      $region18: #{tpu_custom_call.1} parent=5 // pred_check_branch
        %163 = sbr.rel (%p161) target = $region20
      $region19: #{tpu_custom_call.1} parent=5 // pred_region
        // Predicated region
        $region21: #{tpu_custom_call.1} parent=19 // pred_check
          %p164 = pneg %p37
        $region22: #{tpu_custom_call.1} parent=19 // pred_check_branch
          %166 = sbr.rel (%p164) target = $region24
        $region23: #{tpu_custom_call.1} parent=19 // pred_region
          %p167 = scmp.lt.s32.totalorder %s17, 1
          %s168 = scalar_select %p167, %s17, 1
          %s169 = smul.addr %s168, 54
          %s170 = smul.addr %s169, 4
          %s171 = scalar_lea.vmem %s0, %s170
        $region24: #{tpu_custom_call.1} parent=19 // pred_fallthru
          _
      $region20: #{tpu_custom_call.1} parent=5 // pred_fallthru
        _
      %p172 = scmp.le.s32.totalorder 1, %s17
      %p173 = scmp.lt.s32.totalorder %s17, 3
      %p174 = pnand %p172, %p173
      %p175 = pneg %p174
      // Predicated region
      $region25: #{tpu_custom_call.1} parent=5 // pred_check
        _
      $region26: #{tpu_custom_call.1} parent=5 // pred_check_branch
        %177 = sbr.rel (%p174) target = $region28
      $region27: #{tpu_custom_call.1} parent=5 // pred_region
        %s178 = ssub.s32 %s17, 1
        %p179 = scmp.lt.s32.totalorder %s22, 1
        %s180 = scalar_select %p179, %s22, 1
        %s181 = smul.addr %s180, 54
        %s182 = smul.addr %s181, 4
        %s183 = scalar_lea.vmem %s0, %s182
        %p184 = pneg %p43
        %p185 = pneg %p40
        %p186 = pneg %p64
        %p187 = pneg %p61
        %p188 = pneg %p90
        %p189 = pneg %p87
        %s190 = sand.u32 %s77, 1
        %s191 = scalar_lea.sflag [#allocation4], %s190
        %s192 = sand.u32 %s77, 1
        %s193 = smul.addr %s192, 256
        %s194 = scalar_lea.vmem [#allocation3], %s193
        %p195 = pneg %p116
        %p196 = pneg %p113
        %s197 = sand.u32 %s22, 1
        %s198 = scalar_lea.sflag [#allocation6], %s197
        %s199 = sand.u32 %s103, 1
        %s200 = scalar_lea.vmem [#allocation5], %s199
        %p201 = pneg %p142
        %p202 = pneg %p139
        %s203 = sand.u32 %s22, 1
        %s204 = scalar_lea.sflag [#allocation6], %s203
        %s205 = sand.u32 %s129, 1
        %s206 = scalar_lea.vmem [#allocation7], %s205
        %p207 = scmp.lt.s32.totalorder %s22, 1
        %s208 = scalar_select %p207, %s22, 1
        %s209 = smul.addr %s208, 54
        %s210 = smul.addr %s209, 4
        %s211 = scalar_lea.vmem %s0, %s210
        %v213 = vld [vmem:[%s211] sm:$0xf]
        %v214 = vld [vmem:[%s211 + $0x4] sm:$0xf]
        %v215 = vld [vmem:[%s211 + $0x8] sm:$0x1]
        %v216 = vld [vmem:[%s211 + $0xc] sm:$0xf]
        %v217 = vld [vmem:[%s211 + $0x10] sm:$0xf]
        %v218 = vld [vmem:[%s211 + $0x14] sm:$0x1]
        %v219 = vld [vmem:[%s211 + $0x18] sm:$0xf]
        %v220 = vld [vmem:[%s211 + $0x1c] sm:$0xf]
        %v221 = vld [vmem:[%s211 + $0x20] sm:$0x1]
        %v222 = vld [vmem:[%s211 + $0x24] sm:$0xf]
        %v223 = vld [vmem:[%s211 + $0x28] sm:$0xf]
        %v224 = vld [vmem:[%s211 + $0x2c] sm:$0x1]
        %v225 = vld [vmem:[%s211 + $0x30] sm:$0xf]
        %v226 = vld [vmem:[%s211 + $0x34] sm:$0xf]
        %v227 = vld [vmem:[%s211 + $0x38] sm:$0x1]
        %v228 = vld [vmem:[%s211 + $0x3c] sm:$0xf]
        %v229 = vld [vmem:[%s211 + $0x40] sm:$0xf]
        %v230 = vld [vmem:[%s211 + $0x44] sm:$0x1]
        %v231 = vld [vmem:[%s211 + $0x48] sm:$0xf]
        %v232 = vld [vmem:[%s211 + $0x4c] sm:$0xf]
        %v233 = vld [vmem:[%s211 + $0x50] sm:$0x1]
        %v234 = vld [vmem:[%s211 + $0x54] sm:$0xf]
        %v235 = vld [vmem:[%s211 + $0x58] sm:$0xf]
        %v236 = vld [vmem:[%s211 + $0x5c] sm:$0x1]
        %v237 = vld [vmem:[%s211 + $0x60] sm:$0xf]
        %v238 = vld [vmem:[%s211 + $0x64] sm:$0xf]
        %v239 = vld [vmem:[%s211 + $0x68] sm:$0x1]
        %v240 = vld [vmem:[%s211 + $0x6c] sm:$0xf]
        %v241 = vld [vmem:[%s211 + $0x70] sm:$0xf]
        %v242 = vld [vmem:[%s211 + $0x74] sm:$0x1]
        %v243 = vld [vmem:[%s211 + $0x78] sm:$0xf]
        %v244 = vld [vmem:[%s211 + $0x7c] sm:$0xf]
        %v245 = vld [vmem:[%s211 + $0x80] sm:$0x1]
        %v246 = vld [vmem:[%s211 + $0x84] sm:$0xf]
        %v247 = vld [vmem:[%s211 + $0x88] sm:$0xf]
        %v248 = vld [vmem:[%s211 + $0x8c] sm:$0x1]
        %v249 = vld [vmem:[%s211 + $0x90] sm:$0xf]
        %v250 = vld [vmem:[%s211 + $0x94] sm:$0xf]
        %v251 = vld [vmem:[%s211 + $0x98] sm:$0x1]
        %v252 = vld [vmem:[%s211 + $0x9c] sm:$0xf]
        %v253 = vld [vmem:[%s211 + $0xa0] sm:$0xf]
        %v254 = vld [vmem:[%s211 + $0xa4] sm:$0x1]
        %v255 = vld [vmem:[%s211 + $0xa8] sm:$0xf]
        %v256 = vld [vmem:[%s211 + $0xac] sm:$0xf]
        %v257 = vld [vmem:[%s211 + $0xb0] sm:$0x1]
        %v258 = vld [vmem:[%s211 + $0xb4] sm:$0xf]
        %v259 = vld [vmem:[%s211 + $0xb8] sm:$0xf]
        %v260 = vld [vmem:[%s211 + $0xbc] sm:$0x1]
        %v261 = vld [vmem:[%s211 + $0xc0] sm:$0xf]
        %v262 = vld [vmem:[%s211 + $0xc4] sm:$0xf]
        %v263 = vld [vmem:[%s211 + $0xc8] sm:$0x1]
        %v264 = vld [vmem:[%s211 + $0xcc] sm:$0xf]
        %v265 = vld [vmem:[%s211 + $0xd0] sm:$0xf]
        %v266 = vld [vmem:[%s211 + $0xd4] sm:$0x1]
        %v267 = vmax.bf16 %v213, 0
        %v268 = vmax.bf16 %v214, 0
        %v269 = vmax.bf16 %v215, 0
        %v270 = vmax.bf16 %v216, 0
        %v271 = vmax.bf16 %v217, 0
        %v272 = vmax.bf16 %v218, 0
        %v273 = vmax.bf16 %v219, 0
        %v274 = vmax.bf16 %v220, 0
        %v275 = vmax.bf16 %v221, 0
        %v276 = vmax.bf16 %v222, 0
        %v277 = vmax.bf16 %v223, 0
        %v278 = vmax.bf16 %v224, 0
        %v279 = vmax.bf16 %v225, 0
        %v280 = vmax.bf16 %v226, 0
        %v281 = vmax.bf16 %v227, 0
        %v282 = vmax.bf16 %v228, 0
        %v283 = vmax.bf16 %v229, 0
        %v284 = vmax.bf16 %v230, 0
        %v285 = vmax.bf16 %v231, 0
        %v286 = vmax.bf16 %v232, 0
        %v287 = vmax.bf16 %v233, 0
        %v288 = vmax.bf16 %v234, 0
        %v289 = vmax.bf16 %v235, 0
        %v290 = vmax.bf16 %v236, 0
        %v291 = vmax.bf16 %v237, 0
        %v292 = vmax.bf16 %v238, 0
        %v293 = vmax.bf16 %v239, 0
        %v294 = vmax.bf16 %v240, 0
        %v295 = vmax.bf16 %v241, 0
        %v296 = vmax.bf16 %v242, 0
        %v297 = vmax.bf16 %v243, 0
        %v298 = vmax.bf16 %v244, 0
        %v299 = vmax.bf16 %v245, 0
        %v300 = vmax.bf16 %v246, 0
        %v301 = vmax.bf16 %v247, 0
        %v302 = vmax.bf16 %v248, 0
        %v303 = vmax.bf16 %v249, 0
        %v304 = vmax.bf16 %v250, 0
        %v305 = vmax.bf16 %v251, 0
        %v306 = vmax.bf16 %v252, 0
        %v307 = vmax.bf16 %v253, 0
        %v308 = vmax.bf16 %v254, 0
        %v309 = vmax.bf16 %v255, 0
        %v310 = vmax.bf16 %v256, 0
        %v311 = vmax.bf16 %v257, 0
        %v312 = vmax.bf16 %v258, 0
        %v313 = vmax.bf16 %v259, 0
        %v314 = vmax.bf16 %v260, 0
        %v315 = vmax.bf16 %v261, 0
        %v316 = vmax.bf16 %v262, 0
        %v317 = vmax.bf16 %v263, 0
        %v318 = vmax.bf16 %v264, 0
        %v319 = vmax.bf16 %v265, 0
        %v320 = vmax.bf16 %v266, 0
        %321 = vst [vmem:[#allocation2] sm:$0xff] 0.0
        %322 = vst [vmem:[#allocation2 + $0x8] sm:$0xff] 0.0
        %323 = vst [vmem:[#allocation2 + $0x10] sm:$0xff] 0.0
        %324 = vst [vmem:[#allocation2 + $0x18] sm:$0xff] 0.0
        %325 = vst [vmem:[#allocation2 + $0x20] sm:$0xff] 0.0
        %326 = vst [vmem:[#allocation2 + $0x28] sm:$0xff] 0.0
        %327 = vst [vmem:[#allocation2 + $0x30] sm:$0xff] 0.0
        %328 = vst [vmem:[#allocation2 + $0x38] sm:$0xff] 0.0
        %329 = vst [vmem:[#allocation2 + $0x40] sm:$0xff] 0.0
        %330 = vst [vmem:[#allocation2 + $0x48] sm:$0xff] 0.0
        %331 = vst [vmem:[#allocation2 + $0x50] sm:$0xff] 0.0
        %332 = vst [vmem:[#allocation2 + $0x58] sm:$0xff] 0.0
        %333 = vst [vmem:[#allocation2 + $0x60] sm:$0xff] 0.0
        %334 = vst [vmem:[#allocation2 + $0x68] sm:$0xff] 0.0
        %335 = vst [vmem:[#allocation2 + $0x70] sm:$0xff] 0.0
        %336 = vst [vmem:[#allocation2 + $0x78] sm:$0xff] 0.0
        %337 = vst [vmem:[#allocation2 + $0x80] sm:$0xff] 0.0
        %338 = vst [vmem:[#allocation2 + $0x88] sm:$0xff] 0.0
        %339 = vst [vmem:[#allocation2 + $0x90] sm:$0xff] 0.0
        %340 = vst [vmem:[#allocation2 + $0x98] sm:$0xff] 0.0
        %341 = vst [vmem:[#allocation2 + $0xa0] sm:$0xff] 0.0
        %342 = vst [vmem:[#allocation2 + $0xa8] sm:$0xff] 0.0
        %343 = vst [vmem:[#allocation2 + $0xb0] sm:$0xff] 0.0
        %344 = vst [vmem:[#allocation2 + $0xb8] sm:$0xff] 0.0
        %345 = vst [vmem:[#allocation2 + $0xc0] sm:$0xff] 0.0
        %346 = vst [vmem:[#allocation2 + $0xc8] sm:$0xff] 0.0
        %347 = vst [vmem:[#allocation2 + $0xd0] sm:$0xff] 0.0
        %348 = vst [vmem:[#allocation2 + $0xd8] sm:$0xff] 0.0
        %349 = vst [vmem:[#allocation2 + $0xe0] sm:$0xff] 0.0
        %350 = vst [vmem:[#allocation2 + $0xe8] sm:$0xff] 0.0
        %351 = vst [vmem:[#allocation2 + $0xf0] sm:$0xff] 0.0
        %352 = vst [vmem:[#allocation2 + $0xf8] sm:$0xff] 0.0
        %v353 = vld [vmem:[#allocation2] sm:$0xff]
        %v354 = vld [vmem:[#allocation2 + $0x8] sm:$0xff]
        %v355 = vld [vmem:[#allocation2 + $0x10] sm:$0xff]
        %v356 = vld [vmem:[#allocation2 + $0x18] sm:$0xff]
        %v357 = vld [vmem:[#allocation2 + $0x20] sm:$0xff]
        %v358 = vld [vmem:[#allocation2 + $0x28] sm:$0xff]
        %v359 = vld [vmem:[#allocation2 + $0x30] sm:$0xff]
        %v360 = vld [vmem:[#allocation2 + $0x38] sm:$0xff]
        %v361 = vld [vmem:[#allocation2 + $0x40] sm:$0xff]
        %v362 = vld [vmem:[#allocation2 + $0x48] sm:$0xff]
        %v363 = vld [vmem:[#allocation2 + $0x50] sm:$0xff]
        %v364 = vld [vmem:[#allocation2 + $0x58] sm:$0xff]
        %v365 = vld [vmem:[#allocation2 + $0x60] sm:$0xff]
        %v366 = vld [vmem:[#allocation2 + $0x68] sm:$0xff]
        %v367 = vld [vmem:[#allocation2 + $0x70] sm:$0xff]
        %v368 = vld [vmem:[#allocation2 + $0x78] sm:$0xff]
        %v369 = vld [vmem:[#allocation2 + $0x80] sm:$0xff]
        %v370 = vld [vmem:[#allocation2 + $0x88] sm:$0xff]
        %v371 = vld [vmem:[#allocation2 + $0x90] sm:$0xff]
        %v372 = vld [vmem:[#allocation2 + $0x98] sm:$0xff]
        %v373 = vld [vmem:[#allocation2 + $0xa0] sm:$0xff]
        %v374 = vld [vmem:[#allocation2 + $0xa8] sm:$0xff]
        %v375 = vld [vmem:[#allocation2 + $0xb0] sm:$0xff]
        %v376 = vld [vmem:[#allocation2 + $0xb8] sm:$0xff]
        %v377 = vld [vmem:[#allocation2 + $0xc0] sm:$0xff]
        %v378 = vld [vmem:[#allocation2 + $0xc8] sm:$0xff]
        %v379 = vld [vmem:[#allocation2 + $0xd0] sm:$0xff]
        %v380 = vld [vmem:[#allocation2 + $0xd8] sm:$0xff]
        %v381 = vld [vmem:[#allocation2 + $0xe0] sm:$0xff]
        %v382 = vld [vmem:[#allocation2 + $0xe8] sm:$0xff]
        %v383 = vld [vmem:[#allocation2 + $0xf0] sm:$0xff]
        %v384 = vld [vmem:[#allocation2 + $0xf8] sm:$0xff]
        %v385 = vld [vmem:[%s1] sm:$0xf]
        %v418 = vunpack.c.l.b16 %v267
        %v419 = vunpack.c.l.b16 %v268
        %v420 = vunpack.c.l.b16 %v270
        %v421 = vunpack.c.l.b16 %v271
        %v422 = vunpack.c.l.b16 %v273
        %v423 = vunpack.c.l.b16 %v274
        %v424 = vunpack.c.l.b16 %v276
        %v425 = vunpack.c.l.b16 %v277
        %v426 = vunpack.c.l.b16 %v279
        %v427 = vunpack.c.l.b16 %v280
        %v428 = vunpack.c.l.b16 %v282
        %v429 = vunpack.c.l.b16 %v283
        %v430 = vunpack.c.l.b16 %v285
        %v431 = vunpack.c.l.b16 %v286
        %v432 = vunpack.c.l.b16 %v288
        %v433 = vunpack.c.l.b16 %v289
        %v434 = vunpack.c.l.b16 %v291
        %v435 = vunpack.c.l.b16 %v292
        %v436 = vunpack.c.l.b16 %v294
        %v437 = vunpack.c.l.b16 %v295
        %v438 = vunpack.c.l.b16 %v297
        %v439 = vunpack.c.l.b16 %v298
        %v440 = vunpack.c.l.b16 %v300
        %v441 = vunpack.c.l.b16 %v301
        %v442 = vunpack.c.l.b16 %v303
        %v443 = vunpack.c.l.b16 %v304
        %v444 = vunpack.c.l.b16 %v306
        %v445 = vunpack.c.l.b16 %v307
        %v446 = vunpack.c.l.b16 %v309
        %v447 = vunpack.c.l.b16 %v310
        %v448 = vunpack.c.l.b16 %v312
        %v449 = vunpack.c.l.b16 %v313
        %v450 = vpack.c.b16 %v419, %v418
        %v451 = vpack.c.b16 %v421, %v420
        %v452 = vpack.c.b16 %v423, %v422
        %v453 = vpack.c.b16 %v425, %v424
        %v454 = vpack.c.b16 %v427, %v426
        %v455 = vpack.c.b16 %v429, %v428
        %v456 = vpack.c.b16 %v431, %v430
        %v457 = vpack.c.b16 %v433, %v432
        %v458 = vpack.c.b16 %v435, %v434
        %v459 = vpack.c.b16 %v437, %v436
        %v460 = vpack.c.b16 %v439, %v438
        %v461 = vpack.c.b16 %v441, %v440
        %v462 = vpack.c.b16 %v443, %v442
        %v463 = vpack.c.b16 %v445, %v444
        %v464 = vpack.c.b16 %v447, %v446
        %v465 = vpack.c.b16 %v449, %v448
        %vm466 = vcmask 64512
        %v468 = vsel %vm466, %v450, 0
        %v471 = vsel %vm466, %v451, 0
        %v474 = vsel %vm466, %v452, 0
        %v477 = vsel %vm466, %v453, 0
        %v480 = vsel %vm466, %v454, 0
        %v483 = vsel %vm466, %v455, 0
        %v486 = vsel %vm466, %v456, 0
        %v489 = vsel %vm466, %v457, 0
        %v492 = vsel %vm466, %v458, 0
        %v495 = vsel %vm466, %v459, 0
        %v498 = vsel %vm466, %v460, 0
        %v501 = vsel %vm466, %v461, 0
        %v504 = vsel %vm466, %v462, 0
        %v507 = vsel %vm466, %v463, 0
        %v510 = vsel %vm466, %v464, 0
        %v513 = vsel %vm466, %v465, 0
        %vm515 = vcmask 1043456
        %v517 = vsel %vm515, %v385, 0
        %519 = vmatprep.subr.bf16.mxu0 0
        %520 = vmatpush1.bf16.msra.mxu0 %v517
        %521 = vmatprep.subr.bf16.mxu0 0
        %522 = vmatpush1.bf16.msra.mxu0 0
        %523 = vmatprep.subr.bf16.mxu0 0
        %524 = vmatpush1.bf16.msra.mxu0 0
        %525 = vmatprep.subr.bf16.mxu0 0
        %526 = vmatpush1.bf16.msra.mxu0 0
        %527 = vmatprep.subr.bf16.mxu0 0
        %528 = vmatpush1.bf16.msra.mxu0 0
        %529 = vmatprep.subr.bf16.mxu0 0
        %530 = vmatpush1.bf16.msra.mxu0 0
        %531 = vmatprep.subr.bf16.mxu0 0
        %532 = vmatpush1.bf16.msra.mxu0 0
        %533 = vmatprep.subr.bf16.mxu0 0
        %534 = vmatpush1.bf16.msra.mxu0 0
        %535 = vmatprep.subr.bf16.mxu0 0
        %536 = vmatpush1.bf16.msra.mxu0 0
        %537 = vmatprep.subr.bf16.mxu0 0
        %538 = vmatpush1.bf16.msra.mxu0 0
        %539 = vmatprep.subr.bf16.mxu0 0
        %540 = vmatpush1.bf16.msra.mxu0 0
        %541 = vmatprep.subr.bf16.mxu0 0
        %542 = vmatpush1.bf16.msra.mxu0 0
        %543 = vmatprep.subr.bf16.mxu0 0
        %544 = vmatpush1.bf16.msra.mxu0 0
        %545 = vmatprep.subr.bf16.mxu0 0
        %546 = vmatpush1.bf16.msra.mxu0 0
        %547 = vmatprep.subr.bf16.mxu0 0
        %548 = vmatpush1.bf16.msra.mxu0 0
        %549 = vmatprep.subr.bf16.mxu0 0
        %550 = vmatpush1.bf16.msra.mxu0 0
        %551 = vmatprep.mubr.bf16.mxu0 0
        %552 = vmatmul.mubr.bf16.gmra.mrb[0].mxu0 %v468
        %v553 = vpop.f32.mrb[0].mxu0
        %v554 = vadd.f32 0.0, %v553
        %v555 = vpop.f32.mrb[0].mxu0
        %v556 = vpop.f32.mrb[0].mxu0
        %v557 = vadd.f32 0.0, %v556
        %v558 = vpop.f32.mrb[0].mxu0
        %559 = vmatprep.mubr.bf16.mxu0 0
        %560 = vmatmul.mubr.bf16.gmra.mrb[0].mxu0 %v471
        %v561 = vpop.f32.mrb[0].mxu0
        %v562 = vadd.f32 0.0, %v561
        %v563 = vpop.f32.mrb[0].mxu0
        %v564 = vpop.f32.mrb[0].mxu0
        %v565 = vadd.f32 0.0, %v564
        %v566 = vpop.f32.mrb[0].mxu0
        %567 = vmatprep.mubr.bf16.mxu0 0
        %568 = vmatmul.mubr.bf16.gmra.mrb[0].mxu0 %v474
        %v569 = vpop.f32.mrb[0].mxu0
        %v570 = vadd.f32 0.0, %v569
        %v571 = vpop.f32.mrb[0].mxu0
        %v572 = vpop.f32.mrb[0].mxu0
        %v573 = vadd.f32 0.0, %v572
        %v574 = vpop.f32.mrb[0].mxu0
        %575 = vmatprep.mubr.bf16.mxu0 0
        %576 = vmatmul.mubr.bf16.gmra.mrb[0].mxu0 %v477
        %v577 = vpop.f32.mrb[0].mxu0
        %v578 = vadd.f32 0.0, %v577
        %v579 = vpop.f32.mrb[0].mxu0
        %v580 = vpop.f32.mrb[0].mxu0
        %v581 = vadd.f32 0.0, %v580
        %v582 = vpop.f32.mrb[0].mxu0
        %583 = vmatprep.mubr.bf16.mxu0 0
        %584 = vmatmul.mubr.bf16.gmra.mrb[0].mxu0 %v480
        %v585 = vpop.f32.mrb[0].mxu0
        %v586 = vadd.f32 0.0, %v585
        %v587 = vpop.f32.mrb[0].mxu0
        %v588 = vpop.f32.mrb[0].mxu0
        %v589 = vadd.f32 0.0, %v588
        %v590 = vpop.f32.mrb[0].mxu0
        %591 = vmatprep.mubr.bf16.mxu0 0
        %592 = vmatmul.mubr.bf16.gmra.mrb[0].mxu0 %v483
        %v593 = vpop.f32.mrb[0].mxu0
        %v594 = vadd.f32 0.0, %v593
        %v595 = vpop.f32.mrb[0].mxu0
        %v596 = vpop.f32.mrb[0].mxu0
        %v597 = vadd.f32 0.0, %v596
        %v598 = vpop.f32.mrb[0].mxu0
        %599 = vmatprep.mubr.bf16.mxu0 0
        %600 = vmatmul.mubr.bf16.gmra.mrb[0].mxu0 %v486
        %v601 = vpop.f32.mrb[0].mxu0
        %v602 = vadd.f32 0.0, %v601
        %v603 = vpop.f32.mrb[0].mxu0
        %v604 = vpop.f32.mrb[0].mxu0
        %v605 = vadd.f32 0.0, %v604
        %v606 = vpop.f32.mrb[0].mxu0
        %607 = vmatprep.mubr.bf16.mxu0 0
        %608 = vmatmul.mubr.bf16.gmra.mrb[0].mxu0 %v489
        %v609 = vpop.f32.mrb[0].mxu0
        %v610 = vadd.f32 0.0, %v609
        %v611 = vpop.f32.mrb[0].mxu0
        %v612 = vpop.f32.mrb[0].mxu0
        %v613 = vadd.f32 0.0, %v612
        %v614 = vpop.f32.mrb[0].mxu0
        %615 = vmatprep.mubr.bf16.mxu0 0
        %616 = vmatmul.mubr.bf16.gmra.mrb[0].mxu0 %v492
        %v617 = vpop.f32.mrb[0].mxu0
        %v618 = vadd.f32 0.0, %v617
        %v619 = vpop.f32.mrb[0].mxu0
        %v620 = vpop.f32.mrb[0].mxu0
        %v621 = vadd.f32 0.0, %v620
        %v622 = vpop.f32.mrb[0].mxu0
        %623 = vmatprep.mubr.bf16.mxu0 0
        %624 = vmatmul.mubr.bf16.gmra.mrb[0].mxu0 %v495
        %v625 = vpop.f32.mrb[0].mxu0
        %v626 = vadd.f32 0.0, %v625
        %v627 = vpop.f32.mrb[0].mxu0
        %v628 = vpop.f32.mrb[0].mxu0
        %v629 = vadd.f32 0.0, %v628
        %v630 = vpop.f32.mrb[0].mxu0
        %631 = vmatprep.mubr.bf16.mxu0 0
        %632 = vmatmul.mubr.bf16.gmra.mrb[0].mxu0 %v498
        %v633 = vpop.f32.mrb[0].mxu0
        %v634 = vadd.f32 0.0, %v633
        %v635 = vpop.f32.mrb[0].mxu0
        %v636 = vpop.f32.mrb[0].mxu0
        %v637 = vadd.f32 0.0, %v636
        %v638 = vpop.f32.mrb[0].mxu0
        %639 = vmatprep.mubr.bf16.mxu0 0
        %640 = vmatmul.mubr.bf16.gmra.mrb[0].mxu0 %v501
        %v641 = vpop.f32.mrb[0].mxu0
        %v642 = vadd.f32 0.0, %v641
        %v643 = vpop.f32.mrb[0].mxu0
        %v644 = vpop.f32.mrb[0].mxu0
        %v645 = vadd.f32 0.0, %v644
        %v646 = vpop.f32.mrb[0].mxu0
        %647 = vmatprep.mubr.bf16.mxu0 0
        %648 = vmatmul.mubr.bf16.gmra.mrb[0].mxu0 %v504
        %v649 = vpop.f32.mrb[0].mxu0
        %v650 = vadd.f32 0.0, %v649
        %v651 = vpop.f32.mrb[0].mxu0
        %v652 = vpop.f32.mrb[0].mxu0
        %v653 = vadd.f32 0.0, %v652
        %v654 = vpop.f32.mrb[0].mxu0
        %655 = vmatprep.mubr.bf16.mxu0 0
        %656 = vmatmul.mubr.bf16.gmra.mrb[0].mxu0 %v507
        %v657 = vpop.f32.mrb[0].mxu0
        %v658 = vadd.f32 0.0, %v657
        %v659 = vpop.f32.mrb[0].mxu0
        %v660 = vpop.f32.mrb[0].mxu0
        %v661 = vadd.f32 0.0, %v660
        %v662 = vpop.f32.mrb[0].mxu0
        %663 = vmatprep.mubr.bf16.mxu0 0
        %664 = vmatmul.mubr.bf16.gmra.mrb[0].mxu0 %v510
        %v665 = vpop.f32.mrb[0].mxu0
        %v666 = vadd.f32 0.0, %v665
        %v667 = vpop.f32.mrb[0].mxu0
        %v668 = vpop.f32.mrb[0].mxu0
        %v669 = vadd.f32 0.0, %v668
        %v670 = vpop.f32.mrb[0].mxu0
        %671 = vmatprep.mubr.bf16.mxu0 0
        %672 = vmatmul.mubr.bf16.gmra.mrb[0].mxu0 %v513
        %v673 = vpop.f32.mrb[0].mxu0
        %v674 = vadd.f32 0.0, %v673
        %v675 = vpop.f32.mrb[0].mxu0
        %v676 = vpop.f32.mrb[0].mxu0
        %v677 = vadd.f32 0.0, %v676
        %v678 = vpop.f32.mrb[0].mxu0
        %679 = vdwg.mxu0
        %v680 = vadd.f32 %v353, %v554
        %v681 = vadd.f32 %v354, %v557
        %v682 = vadd.f32 %v355, %v562
        %v683 = vadd.f32 %v356, %v565
        %v684 = vadd.f32 %v357, %v570
        %v685 = vadd.f32 %v358, %v573
        %v686 = vadd.f32 %v359, %v578
        %v687 = vadd.f32 %v360, %v581
        %v688 = vadd.f32 %v361, %v586
        %v689 = vadd.f32 %v362, %v589
        %v690 = vadd.f32 %v363, %v594
        %v691 = vadd.f32 %v364, %v597
        %v692 = vadd.f32 %v365, %v602
        %v693 = vadd.f32 %v366, %v605
        %v694 = vadd.f32 %v367, %v610
        %v695 = vadd.f32 %v368, %v613
        %v696 = vadd.f32 %v369, %v618
        %v697 = vadd.f32 %v370, %v621
        %v698 = vadd.f32 %v371, %v626
        %v699 = vadd.f32 %v372, %v629
        %v700 = vadd.f32 %v373, %v634
        %v701 = vadd.f32 %v374, %v637
        %v702 = vadd.f32 %v375, %v642
        %v703 = vadd.f32 %v376, %v645
        %v704 = vadd.f32 %v377, %v650
        %v705 = vadd.f32 %v378, %v653
        %v706 = vadd.f32 %v379, %v658
        %v707 = vadd.f32 %v380, %v661
        %v708 = vadd.f32 %v381, %v666
        %v709 = vadd.f32 %v382, %v669
        %v710 = vadd.f32 %v383, %v674
        %v711 = vadd.f32 %v384, %v677
        %712 = vst [vmem:[#allocation2] sm:$0xff] %v680
        %713 = vst [vmem:[#allocation2 + $0x8] sm:$0xff] %v681
        %714 = vst [vmem:[#allocation2 + $0x10] sm:$0xff] %v682
        %715 = vst [vmem:[#allocation2 + $0x18] sm:$0xff] %v683
        %716 = vst [vmem:[#allocation2 + $0x20] sm:$0xff] %v684
        %717 = vst [vmem:[#allocation2 + $0x28] sm:$0xff] %v685
        %718 = vst [vmem:[#allocation2 + $0x30] sm:$0xff] %v686
        %719 = vst [vmem:[#allocation2 + $0x38] sm:$0xff] %v687
        %720 = vst [vmem:[#allocation2 + $0x40] sm:$0xff] %v688
        %721 = vst [vmem:[#allocation2 + $0x48] sm:$0xff] %v689
        %722 = vst [vmem:[#allocation2 + $0x50] sm:$0xff] %v690
        %723 = vst [vmem:[#allocation2 + $0x58] sm:$0xff] %v691
        %724 = vst [vmem:[#allocation2 + $0x60] sm:$0xff] %v692
        %725 = vst [vmem:[#allocation2 + $0x68] sm:$0xff] %v693
        %726 = vst [vmem:[#allocation2 + $0x70] sm:$0xff] %v694
        %727 = vst [vmem:[#allocation2 + $0x78] sm:$0xff] %v695
        %728 = vst [vmem:[#allocation2 + $0x80] sm:$0xff] %v696
        %729 = vst [vmem:[#allocation2 + $0x88] sm:$0xff] %v697
        %730 = vst [vmem:[#allocation2 + $0x90] sm:$0xff] %v698
        %731 = vst [vmem:[#allocation2 + $0x98] sm:$0xff] %v699
        %732 = vst [vmem:[#allocation2 + $0xa0] sm:$0xff] %v700
        %733 = vst [vmem:[#allocation2 + $0xa8] sm:$0xff] %v701
        %734 = vst [vmem:[#allocation2 + $0xb0] sm:$0xff] %v702
        %735 = vst [vmem:[#allocation2 + $0xb8] sm:$0xff] %v703
        %736 = vst [vmem:[#allocation2 + $0xc0] sm:$0xff] %v704
        %737 = vst [vmem:[#allocation2 + $0xc8] sm:$0xff] %v705
        %738 = vst [vmem:[#allocation2 + $0xd0] sm:$0xff] %v706
        %739 = vst [vmem:[#allocation2 + $0xd8] sm:$0xff] %v707
        %740 = vst [vmem:[#allocation2 + $0xe0] sm:$0xff] %v708
        %741 = vst [vmem:[#allocation2 + $0xe8] sm:$0xff] %v709
        %742 = vst [vmem:[#allocation2 + $0xf0] sm:$0xff] %v710
        %743 = vst [vmem:[#allocation2 + $0xf8] sm:$0xff] %v711
        %v744 = vld [vmem:[#allocation2] sm:$0xff]
        %v745 = vld [vmem:[#allocation2 + $0x8] sm:$0xff]
        %v746 = vld [vmem:[#allocation2 + $0x10] sm:$0xff]
        %v747 = vld [vmem:[#allocation2 + $0x18] sm:$0xff]
        %v748 = vld [vmem:[#allocation2 + $0x20] sm:$0xff]
        %v749 = vld [vmem:[#allocation2 + $0x28] sm:$0xff]
        %v750 = vld [vmem:[#allocation2 + $0x30] sm:$0xff]
        %v751 = vld [vmem:[#allocation2 + $0x38] sm:$0xff]
        %v752 = vld [vmem:[#allocation2 + $0x40] sm:$0xff]
        %v753 = vld [vmem:[#allocation2 + $0x48] sm:$0xff]
        %v754 = vld [vmem:[#allocation2 + $0x50] sm:$0xff]
        %v755 = vld [vmem:[#allocation2 + $0x58] sm:$0xff]
        %v756 = vld [vmem:[#allocation2 + $0x60] sm:$0xff]
        %v757 = vld [vmem:[#allocation2 + $0x68] sm:$0xff]
        %v758 = vld [vmem:[#allocation2 + $0x70] sm:$0xff]
        %v759 = vld [vmem:[#allocation2 + $0x78] sm:$0xff]
        %v760 = vld [vmem:[#allocation2 + $0x80] sm:$0xff]
        %v761 = vld [vmem:[#allocation2 + $0x88] sm:$0xff]
        %v762 = vld [vmem:[#allocation2 + $0x90] sm:$0xff]
        %v763 = vld [vmem:[#allocation2 + $0x98] sm:$0xff]
        %v764 = vld [vmem:[#allocation2 + $0xa0] sm:$0xff]
        %v765 = vld [vmem:[#allocation2 + $0xa8] sm:$0xff]
        %v766 = vld [vmem:[#allocation2 + $0xb0] sm:$0xff]
        %v767 = vld [vmem:[#allocation2 + $0xb8] sm:$0xff]
        %v768 = vld [vmem:[#allocation2 + $0xc0] sm:$0xff]
        %v769 = vld [vmem:[#allocation2 + $0xc8] sm:$0xff]
        %v770 = vld [vmem:[#allocation2 + $0xd0] sm:$0xff]
        %v771 = vld [vmem:[#allocation2 + $0xd8] sm:$0xff]
        %v772 = vld [vmem:[#allocation2 + $0xe0] sm:$0xff]
        %v773 = vld [vmem:[#allocation2 + $0xe8] sm:$0xff]
        %v774 = vld [vmem:[#allocation2 + $0xf0] sm:$0xff]
        %v775 = vld [vmem:[#allocation2 + $0xf8] sm:$0xff]
        %vm776 = vsmask.f32 3328
        %vm777 = vsmask.f32 7440
        %vm778 = vmor %vm776, %vm777
        %v780 = vshrl.u32 %v267, 16
        %v782 = vrot.slane %v780, 4
        %v783 = vshll.u32 %v267, 16
        %v785 = vrot.slane %v783, 5
        %v786 = vor.u32 %v782, %v785
        %v787 = vrot.slane %v786, 4
        %v789 = vshll.u32 %v268, 16
        %v791 = vrot.slane %v789, 5
        %v792 = vsel %vm778, %v787, %v791
        %v793 = vshrl.u32 %v268, 16
        %v795 = vrot.slane %v793, 4
        %v796 = vor.u32 %v795, %v791
        %v797 = vrot.slane %v796, 4
        %v799 = vshll.u32 %v269, 16
        %v801 = vrot.slane %v799, 5
        %v802 = vsel %vm778, %v797, %v801
        %v804 = vshrl.u32 %v270, 16
        %v806 = vrot.slane %v804, 4
        %v807 = vshll.u32 %v270, 16
        %v809 = vrot.slane %v807, 5
        %v810 = vor.u32 %v806, %v809
        %v811 = vrot.slane %v810, 4
        %v813 = vshll.u32 %v271, 16
        %v815 = vrot.slane %v813, 5
        %v816 = vsel %vm778, %v811, %v815
        %v817 = vshrl.u32 %v271, 16
        %v819 = vrot.slane %v817, 4
        %v820 = vor.u32 %v819, %v815
        %v821 = vrot.slane %v820, 4
        %v823 = vshll.u32 %v272, 16
        %v825 = vrot.slane %v823, 5
        %v826 = vsel %vm778, %v821, %v825
        %v828 = vshrl.u32 %v273, 16
        %v830 = vrot.slane %v828, 4
        %v831 = vshll.u32 %v273, 16
        %v833 = vrot.slane %v831, 5
        %v834 = vor.u32 %v830, %v833
        %v835 = vrot.slane %v834, 4
        %v837 = vshll.u32 %v274, 16
        %v839 = vrot.slane %v837, 5
        %v840 = vsel %vm778, %v835, %v839
        %v841 = vshrl.u32 %v274, 16
        %v843 = vrot.slane %v841, 4
        %v844 = vor.u32 %v843, %v839
        %v845 = vrot.slane %v844, 4
        %v847 = vshll.u32 %v275, 16
        %v849 = vrot.slane %v847, 5
        %v850 = vsel %vm778, %v845, %v849
        %v852 = vshrl.u32 %v276, 16
        %v854 = vrot.slane %v852, 4
        %v855 = vshll.u32 %v276, 16
        %v857 = vrot.slane %v855, 5
        %v858 = vor.u32 %v854, %v857
        %v859 = vrot.slane %v858, 4
        %v861 = vshll.u32 %v277, 16
        %v863 = vrot.slane %v861, 5
        %v864 = vsel %vm778, %v859, %v863
        %v865 = vshrl.u32 %v277, 16
        %v867 = vrot.slane %v865, 4
        %v868 = vor.u32 %v867, %v863
        %v869 = vrot.slane %v868, 4
        %v871 = vshll.u32 %v278, 16
        %v873 = vrot.slane %v871, 5
        %v874 = vsel %vm778, %v869, %v873
        %v876 = vshrl.u32 %v279, 16
        %v878 = vrot.slane %v876, 4
        %v879 = vshll.u32 %v279, 16
        %v881 = vrot.slane %v879, 5
        %v882 = vor.u32 %v878, %v881
        %v883 = vrot.slane %v882, 4
        %v885 = vshll.u32 %v280, 16
        %v887 = vrot.slane %v885, 5
        %v888 = vsel %vm778, %v883, %v887
        %v889 = vshrl.u32 %v280, 16
        %v891 = vrot.slane %v889, 4
        %v892 = vor.u32 %v891, %v887
        %v893 = vrot.slane %v892, 4
        %v895 = vshll.u32 %v281, 16
        %v897 = vrot.slane %v895, 5
        %v898 = vsel %vm778, %v893, %v897
        %v900 = vshrl.u32 %v282, 16
        %v902 = vrot.slane %v900, 4
        %v903 = vshll.u32 %v282, 16
        %v905 = vrot.slane %v903, 5
        %v906 = vor.u32 %v902, %v905
        %v907 = vrot.slane %v906, 4
        %v909 = vshll.u32 %v283, 16
        %v911 = vrot.slane %v909, 5
        %v912 = vsel %vm778, %v907, %v911
        %v913 = vshrl.u32 %v283, 16
        %v915 = vrot.slane %v913, 4
        %v916 = vor.u32 %v915, %v911
        %v917 = vrot.slane %v916, 4
        %v919 = vshll.u32 %v284, 16
        %v921 = vrot.slane %v919, 5
        %v922 = vsel %vm778, %v917, %v921
        %v924 = vshrl.u32 %v285, 16
        %v926 = vrot.slane %v924, 4
        %v927 = vshll.u32 %v285, 16
        %v929 = vrot.slane %v927, 5
        %v930 = vor.u32 %v926, %v929
        %v931 = vrot.slane %v930, 4
        %v933 = vshll.u32 %v286, 16
        %v935 = vrot.slane %v933, 5
        %v936 = vsel %vm778, %v931, %v935
        %v937 = vshrl.u32 %v286, 16
        %v939 = vrot.slane %v937, 4
        %v940 = vor.u32 %v939, %v935
        %v941 = vrot.slane %v940, 4
        %v943 = vshll.u32 %v287, 16
        %v945 = vrot.slane %v943, 5
        %v946 = vsel %vm778, %v941, %v945
        %v948 = vshrl.u32 %v288, 16
        %v950 = vrot.slane %v948, 4
        %v951 = vshll.u32 %v288, 16
        %v953 = vrot.slane %v951, 5
        %v954 = vor.u32 %v950, %v953
        %v955 = vrot.slane %v954, 4
        %v957 = vshll.u32 %v289, 16
        %v959 = vrot.slane %v957, 5
        %v960 = vsel %vm778, %v955, %v959
        %v961 = vshrl.u32 %v289, 16
        %v963 = vrot.slane %v961, 4
        %v964 = vor.u32 %v963, %v959
        %v965 = vrot.slane %v964, 4
        %v967 = vshll.u32 %v290, 16
        %v969 = vrot.slane %v967, 5
        %v970 = vsel %vm778, %v965, %v969
        %v972 = vshrl.u32 %v291, 16
        %v974 = vrot.slane %v972, 4
        %v975 = vshll.u32 %v291, 16
        %v977 = vrot.slane %v975, 5
        %v978 = vor.u32 %v974, %v977
        %v979 = vrot.slane %v978, 4
        %v981 = vshll.u32 %v292, 16
        %v983 = vrot.slane %v981, 5
        %v984 = vsel %vm778, %v979, %v983
        %v985 = vshrl.u32 %v292, 16
        %v987 = vrot.slane %v985, 4
        %v988 = vor.u32 %v987, %v983
        %v989 = vrot.slane %v988, 4
        %v991 = vshll.u32 %v293, 16
        %v993 = vrot.slane %v991, 5
        %v994 = vsel %vm778, %v989, %v993
        %v996 = vshrl.u32 %v294, 16
        %v998 = vrot.slane %v996, 4
        %v999 = vshll.u32 %v294, 16
        %v1001 = vrot.slane %v999, 5
        %v1002 = vor.u32 %v998, %v1001
        %v1003 = vrot.slane %v1002, 4
        %v1005 = vshll.u32 %v295, 16
        %v1007 = vrot.slane %v1005, 5
        %v1008 = vsel %vm778, %v1003, %v1007
        %v1009 = vshrl.u32 %v295, 16
        %v1011 = vrot.slane %v1009, 4
        %v1012 = vor.u32 %v1011, %v1007
        %v1013 = vrot.slane %v1012, 4
        %v1015 = vshll.u32 %v296, 16
        %v1017 = vrot.slane %v1015, 5
        %v1018 = vsel %vm778, %v1013, %v1017
        %v1020 = vshrl.u32 %v297, 16
        %v1022 = vrot.slane %v1020, 4
        %v1023 = vshll.u32 %v297, 16
        %v1025 = vrot.slane %v1023, 5
        %v1026 = vor.u32 %v1022, %v1025
        %v1027 = vrot.slane %v1026, 4
        %v1029 = vshll.u32 %v298, 16
        %v1031 = vrot.slane %v1029, 5
        %v1032 = vsel %vm778, %v1027, %v1031
        %v1033 = vshrl.u32 %v298, 16
        %v1035 = vrot.slane %v1033, 4
        %v1036 = vor.u32 %v1035, %v1031
        %v1037 = vrot.slane %v1036, 4
        %v1039 = vshll.u32 %v299, 16
        %v1041 = vrot.slane %v1039, 5
        %v1042 = vsel %vm778, %v1037, %v1041
        %v1044 = vshrl.u32 %v300, 16
        %v1046 = vrot.slane %v1044, 4
        %v1047 = vshll.u32 %v300, 16
        %v1049 = vrot.slane %v1047, 5
        %v1050 = vor.u32 %v1046, %v1049
        %v1051 = vrot.slane %v1050, 4
        %v1053 = vshll.u32 %v301, 16
        %v1055 = vrot.slane %v1053, 5
        %v1056 = vsel %vm778, %v1051, %v1055
        %v1057 = vshrl.u32 %v301, 16
        %v1059 = vrot.slane %v1057, 4
        %v1060 = vor.u32 %v1059, %v1055
        %v1061 = vrot.slane %v1060, 4
        %v1063 = vshll.u32 %v302, 16
        %v1065 = vrot.slane %v1063, 5
        %v1066 = vsel %vm778, %v1061, %v1065
        %v1068 = vshrl.u32 %v303, 16
        %v1070 = vrot.slane %v1068, 4
        %v1071 = vshll.u32 %v303, 16
        %v1073 = vrot.slane %v1071, 5
        %v1074 = vor.u32 %v1070, %v1073
        %v1075 = vrot.slane %v1074, 4
        %v1077 = vshll.u32 %v304, 16
        %v1079 = vrot.slane %v1077, 5
        %v1080 = vsel %vm778, %v1075, %v1079
        %v1081 = vshrl.u32 %v304, 16
        %v1083 = vrot.slane %v1081, 4
        %v1084 = vor.u32 %v1083, %v1079
        %v1085 = vrot.slane %v1084, 4
        %v1087 = vshll.u32 %v305, 16
        %v1089 = vrot.slane %v1087, 5
        %v1090 = vsel %vm778, %v1085, %v1089
        %v1092 = vshrl.u32 %v306, 16
        %v1094 = vrot.slane %v1092, 4
        %v1095 = vshll.u32 %v306, 16
        %v1097 = vrot.slane %v1095, 5
        %v1098 = vor.u32 %v1094, %v1097
        %v1099 = vrot.slane %v1098, 4
        %v1101 = vshll.u32 %v307, 16
        %v1103 = vrot.slane %v1101, 5
        %v1104 = vsel %vm778, %v1099, %v1103
        %v1105 = vshrl.u32 %v307, 16
        %v1107 = vrot.slane %v1105, 4
        %v1108 = vor.u32 %v1107, %v1103
        %v1109 = vrot.slane %v1108, 4
        %v1111 = vshll.u32 %v308, 16
        %v1113 = vrot.slane %v1111, 5
        %v1114 = vsel %vm778, %v1109, %v1113
        %v1116 = vshrl.u32 %v309, 16
        %v1118 = vrot.slane %v1116, 4
        %v1119 = vshll.u32 %v309, 16
        %v1121 = vrot.slane %v1119, 5
        %v1122 = vor.u32 %v1118, %v1121
        %v1123 = vrot.slane %v1122, 4
        %v1125 = vshll.u32 %v310, 16
        %v1127 = vrot.slane %v1125, 5
        %v1128 = vsel %vm778, %v1123, %v1127
        %v1129 = vshrl.u32 %v310, 16
        %v1131 = vrot.slane %v1129, 4
        %v1132 = vor.u32 %v1131, %v1127
        %v1133 = vrot.slane %v1132, 4
        %v1135 = vshll.u32 %v311, 16
        %v1137 = vrot.slane %v1135, 5
        %v1138 = vsel %vm778, %v1133, %v1137
        %v1140 = vshrl.u32 %v312, 16
        %v1142 = vrot.slane %v1140, 4
        %v1143 = vshll.u32 %v312, 16
        %v1145 = vrot.slane %v1143, 5
        %v1146 = vor.u32 %v1142, %v1145
        %v1147 = vrot.slane %v1146, 4
        %v1149 = vshll.u32 %v313, 16
        %v1151 = vrot.slane %v1149, 5
        %v1152 = vsel %vm778, %v1147, %v1151
        %v1153 = vshrl.u32 %v313, 16
        %v1155 = vrot.slane %v1153, 4
        %v1156 = vor.u32 %v1155, %v1151
        %v1157 = vrot.slane %v1156, 4
        %v1159 = vshll.u32 %v314, 16
        %v1161 = vrot.slane %v1159, 5
        %v1162 = vsel %vm778, %v1157, %v1161
        %s1163 = scalar_lea.vmem %s1, 4
        %v1164 = vld [vmem:[%s1163] sm:$0xf]
        %v1165 = vunpack.c.l.b16 %v792
        %v1166 = vunpack.c.l.b16 %v802
        %v1167 = vunpack.c.l.b16 %v816
        %v1168 = vunpack.c.l.b16 %v826
        %v1169 = vunpack.c.l.b16 %v840
        %v1170 = vunpack.c.l.b16 %v850
        %v1171 = vunpack.c.l.b16 %v864
        %v1172 = vunpack.c.l.b16 %v874
        %v1173 = vunpack.c.l.b16 %v888
        %v1174 = vunpack.c.l.b16 %v898
        %v1175 = vunpack.c.l.b16 %v912
        %v1176 = vunpack.c.l.b16 %v922
        %v1177 = vunpack.c.l.b16 %v936
        %v1178 = vunpack.c.l.b16 %v946
        %v1179 = vunpack.c.l.b16 %v960
        %v1180 = vunpack.c.l.b16 %v970
        %v1181 = vunpack.c.l.b16 %v984
        %v1182 = vunpack.c.l.b16 %v994
        %v1183 = vunpack.c.l.b16 %v1008
        %v1184 = vunpack.c.l.b16 %v1018
        %v1185 = vunpack.c.l.b16 %v1032
        %v1186 = vunpack.c.l.b16 %v1042
        %v1187 = vunpack.c.l.b16 %v1056
        %v1188 = vunpack.c.l.b16 %v1066
        %v1189 = vunpack.c.l.b16 %v1080
        %v1190 = vunpack.c.l.b16 %v1090
        %v1191 = vunpack.c.l.b16 %v1104
        %v1192 = vunpack.c.l.b16 %v1114
        %v1193 = vunpack.c.l.b16 %v1128
        %v1194 = vunpack.c.l.b16 %v1138
        %v1195 = vunpack.c.l.b16 %v1152
        %v1196 = vunpack.c.l.b16 %v1162
        %v1197 = vpack.c.b16 %v1166, %v1165
        %v1198 = vpack.c.b16 %v1168, %v1167
        %v1199 = vpack.c.b16 %v1170, %v1169
        %v1200 = vpack.c.b16 %v1172, %v1171
        %v1201 = vpack.c.b16 %v1174, %v1173
        %v1202 = vpack.c.b16 %v1176, %v1175
        %v1203 = vpack.c.b16 %v1178, %v1177
        %v1204 = vpack.c.b16 %v1180, %v1179
        %v1205 = vpack.c.b16 %v1182, %v1181
        %v1206 = vpack.c.b16 %v1184, %v1183
        %v1207 = vpack.c.b16 %v1186, %v1185
        %v1208 = vpack.c.b16 %v1188, %v1187
        %v1209 = vpack.c.b16 %v1190, %v1189
        %v1210 = vpack.c.b16 %v1192, %v1191
        %v1211 = vpack.c.b16 %v1194, %v1193
        %v1212 = vpack.c.b16 %v1196, %v1195
        %v1214 = vsel %vm466, %v1197, 0
        %v1217 = vsel %vm466, %v1198, 0
        %v1220 = vsel %vm466, %v1199, 0
        %v1223 = vsel %vm466, %v1200, 0
        %v1226 = vsel %vm466, %v1201, 0
        %v1229 = vsel %vm466, %v1202, 0
        %v1232 = vsel %vm466, %v1203, 0
        %v1235 = vsel %vm466, %v1204, 0
        %v1238 = vsel %vm466, %v1205, 0
        %v1241 = vsel %vm466, %v1206, 0
        %v1244 = vsel %vm466, %v1207, 0
        %v1247 = vsel %vm466, %v1208, 0
        %v1250 = vsel %vm466, %v1209, 0
        %v1253 = vsel %vm466, %v1210, 0
        %v1256 = vsel %vm466, %v1211, 0
        %v1259 = vsel %vm466, %v1212, 0
        %v1262 = vsel %vm515, %v1164, 0
        %1264 = vmatprep.subr.bf16.mxu0 0
        %1265 = vmatpush1.bf16.msra.mxu0 %v1262
        %1266 = vmatprep.subr.bf16.mxu0 0
        %1267 = vmatpush1.bf16.msra.mxu0 0
        %1268 = vmatprep.subr.bf16.mxu0 0
        %1269 = vmatpush1.bf16.msra.mxu0 0
        %1270 = vmatprep.subr.bf16.mxu0 0
        %1271 = vmatpush1.bf16.msra.mxu0 0
        %1272 = vmatprep.subr.bf16.mxu0 0
        %1273 = vmatpush1.bf16.msra.mxu0 0
        %1274 = vmatprep.subr.bf16.mxu0 0
        %1275 = vmatpush1.bf16.msra.mxu0 0
        %1276 = vmatprep.subr.bf16.mxu0 0
        %1277 = vmatpush1.bf16.msra.mxu0 0
        %1278 = vmatprep.subr.bf16.mxu0 0
        %1279 = vmatpush1.bf16.msra.mxu0 0
        %1280 = vmatprep.subr.bf16.mxu0 0
        %1281 = vmatpush1.bf16.msra.mxu0 0
        %1282 = vmatprep.subr.bf16.mxu0 0
        %1283 = vmatpush1.bf16.msra.mxu0 0
        %1284 = vmatprep.subr.bf16.mxu0 0
        %1285 = vmatpush1.bf16.msra.mxu0 0
        %1286 = vmatprep.subr.bf16.mxu0 0
        %1287 = vmatpush1.bf16.msra.mxu0 0
        %1288 = vmatprep.subr.bf16.mxu0 0
        %1289 = vmatpush1.bf16.msra.mxu0 0
        %1290 = vmatprep.subr.bf16.mxu0 0
        %1291 = vmatpush1.bf16.msra.mxu0 0
        %1292 = vmatprep.subr.bf16.mxu0 0
        %1293 = vmatpush1.bf16.msra.mxu0 0
        %1294 = vmatprep.subr.bf16.mxu0 0
        %1295 = vmatpush1.bf16.msra.mxu0 0
        %1296 = vmatprep.mubr.bf16.mxu0 0
        %1297 = vmatmul.mubr.bf16.gmra.mrb[0].mxu0 %v1214
        %v1298 = vpop.f32.mrb[0].mxu0
        %v1299 = vadd.f32 0.0, %v1298
        %v1300 = vpop.f32.mrb[0].mxu0
        %v1301 = vpop.f32.mrb[0].mxu0
        %v1302 = vadd.f32 0.0, %v1301
        %v1303 = vpop.f32.mrb[0].mxu0
        %1304 = vmatprep.mubr.bf16.mxu0 0
        %1305 = vmatmul.mubr.bf16.gmra.mrb[0].mxu0 %v1217
        %v1306 = vpop.f32.mrb[0].mxu0
        %v1307 = vadd.f32 0.0, %v1306
        %v1308 = vpop.f32.mrb[0].mxu0
        %v1309 = vpop.f32.mrb[0].mxu0
        %v1310 = vadd.f32 0.0, %v1309
        %v1311 = vpop.f32.mrb[0].mxu0
        %1312 = vmatprep.mubr.bf16.mxu0 0
        %1313 = vmatmul.mubr.bf16.gmra.mrb[0].mxu0 %v1220
        %v1314 = vpop.f32.mrb[0].mxu0
        %v1315 = vadd.f32 0.0, %v1314
        %v1316 = vpop.f32.mrb[0].mxu0
        %v1317 = vpop.f32.mrb[0].mxu0
        %v1318 = vadd.f32 0.0, %v1317
        %v1319 = vpop.f32.mrb[0].mxu0
        %1320 = vmatprep.mubr.bf16.mxu0 0
        %1321 = vmatmul.mubr.bf16.gmra.mrb[0].mxu0 %v1223
        %v1322 = vpop.f32.mrb[0].mxu0
        %v1323 = vadd.f32 0.0, %v1322
        %v1324 = vpop.f32.mrb[0].mxu0
        %v1325 = vpop.f32.mrb[0].mxu0
        %v1326 = vadd.f32 0.0, %v1325
        %v1327 = vpop.f32.mrb[0].mxu0
        %1328 = vmatprep.mubr.bf16.mxu0 0
        %1329 = vmatmul.mubr.bf16.gmra.mrb[0].mxu0 %v1226
        %v1330 = vpop.f32.mrb[0].mxu0
        %v1331 = vadd.f32 0.0, %v1330
        %v1332 = vpop.f32.mrb[0].mxu0
        %v1333 = vpop.f32.mrb[0].mxu0
        %v1334 = vadd.f32 0.0, %v1333
        %v1335 = vpop.f32.mrb[0].mxu0
        %1336 = vmatprep.mubr.bf16.mxu0 0
        %1337 = vmatmul.mubr.bf16.gmra.mrb[0].mxu0 %v1229
        %v1338 = vpop.f32.mrb[0].mxu0
        %v1339 = vadd.f32 0.0, %v1338
        %v1340 = vpop.f32.mrb[0].mxu0
        %v1341 = vpop.f32.mrb[0].mxu0
        %v1342 = vadd.f32 0.0, %v1341
        %v1343 = vpop.f32.mrb[0].mxu0
        %1344 = vmatprep.mubr.bf16.mxu0 0
        %1345 = vmatmul.mubr.bf16.gmra.mrb[0].mxu0 %v1232
        %v1346 = vpop.f32.mrb[0].mxu0
        %v1347 = vadd.f32 0.0, %v1346
        %v1348 = vpop.f32.mrb[0].mxu0
        %v1349 = vpop.f32.mrb[0].mxu0
        %v1350 = vadd.f32 0.0, %v1349
        %v1351 = vpop.f32.mrb[0].mxu0
        %1352 = vmatprep.mubr.bf16.mxu0 0
        %1353 = vmatmul.mubr.bf16.gmra.mrb[0].mxu0 %v1235
        %v1354 = vpop.f32.mrb[0].mxu0
        %v1355 = vadd.f32 0.0, %v1354
        %v1356 = vpop.f32.mrb[0].mxu0
        %v1357 = vpop.f32.mrb[0].mxu0
        %v1358 = vadd.f32 0.0, %v1357
        %v1359 = vpop.f32.mrb[0].mxu0
        %1360 = vmatprep.mubr.bf16.mxu0 0
        %1361 = vmatmul.mubr.bf16.gmra.mrb[0].mxu0 %v1238
        %v1362 = vpop.f32.mrb[0].mxu0
        %v1363 = vadd.f32 0.0, %v1362
        %v1364 = vpop.f32.mrb[0].mxu0
        %v1365 = vpop.f32.mrb[0].mxu0
        %v1366 = vadd.f32 0.0, %v1365
        %v1367 = vpop.f32.mrb[0].mxu0
        %1368 = vmatprep.mubr.bf16.mxu0 0
        %1369 = vmatmul.mubr.bf16.gmra.mrb[0].mxu0 %v1241
        %v1370 = vpop.f32.mrb[0].mxu0
        %v1371 = vadd.f32 0.0, %v1370
        %v1372 = vpop.f32.mrb[0].mxu0
        %v1373 = vpop.f32.mrb[0].mxu0
        %v1374 = vadd.f32 0.0, %v1373
        %v1375 = vpop.f32.mrb[0].mxu0
        %1376 = vmatprep.mubr.bf16.mxu0 0
        %1377 = vmatmul.mubr.bf16.gmra.mrb[0].mxu0 %v1244
        %v1378 = vpop.f32.mrb[0].mxu0
        %v1379 = vadd.f32 0.0, %v1378
        %v1380 = vpop.f32.mrb[0].mxu0
        %v1381 = vpop.f32.mrb[0].mxu0
        %v1382 = vadd.f32 0.0, %v1381
        %v1383 = vpop.f32.mrb[0].mxu0
        %1384 = vmatprep.mubr.bf16.mxu0 0
        %1385 = vmatmul.mubr.bf16.gmra.mrb[0].mxu0 %v1247
        %v1386 = vpop.f32.mrb[0].mxu0
        %v1387 = vadd.f32 0.0, %v1386
        %v1388 = vpop.f32.mrb[0].mxu0
        %v1389 = vpop.f32.mrb[0].mxu0
        %v1390 = vadd.f32 0.0, %v1389
        %v1391 = vpop.f32.mrb[0].mxu0
        %1392 = vmatprep.mubr.bf16.mxu0 0
        %1393 = vmatmul.mubr.bf16.gmra.mrb[0].mxu0 %v1250
        %v1394 = vpop.f32.mrb[0].mxu0
        %v1395 = vadd.f32 0.0, %v1394
        %v1396 = vpop.f32.mrb[0].mxu0
        %v1397 = vpop.f32.mrb[0].mxu0
        %v1398 = vadd.f32 0.0, %v1397
        %v1399 = vpop.f32.mrb[0].mxu0
        %1400 = vmatprep.mubr.bf16.mxu0 0
        %1401 = vmatmul.mubr.bf16.gmra.mrb[0].mxu0 %v1253
        %v1402 = vpop.f32.mrb[0].mxu0
        %v1403 = vadd.f32 0.0, %v1402
        %v1404 = vpop.f32.mrb[0].mxu0
        %v1405 = vpop.f32.mrb[0].mxu0
        %v1406 = vadd.f32 0.0, %v1405
        %v1407 = vpop.f32.mrb[0].mxu0
        %1408 = vmatprep.mubr.bf16.mxu0 0
        %1409 = vmatmul.mubr.bf16.gmra.mrb[0].mxu0 %v1256
        %v1410 = vpop.f32.mrb[0].mxu0
        %v1411 = vadd.f32 0.0, %v1410
        %v1412 = vpop.f32.mrb[0].mxu0
        %v1413 = vpop.f32.mrb[0].mxu0
        %v1414 = vadd.f32 0.0, %v1413
        %v1415 = vpop.f32.mrb[0].mxu0
        %1416 = vmatprep.mubr.bf16.mxu0 0
        %1417 = vmatmul.mubr.bf16.gmra.mrb[0].mxu0 %v1259
        %v1418 = vpop.f32.mrb[0].mxu0
        %v1419 = vadd.f32 0.0, %v1418
        %v1420 = vpop.f32.mrb[0].mxu0
        %v1421 = vpop.f32.mrb[0].mxu0
        %v1422 = vadd.f32 0.0, %v1421
        %v1423 = vpop.f32.mrb[0].mxu0
        %1424 = vdwg.mxu0
        %v1425 = vadd.f32 %v744, %v1299
        %v1426 = vadd.f32 %v745, %v1302
        %v1427 = vadd.f32 %v746, %v1307
        %v1428 = vadd.f32 %v747, %v1310
        %v1429 = vadd.f32 %v748, %v1315
        %v1430 = vadd.f32 %v749, %v1318
        %v1431 = vadd.f32 %v750, %v1323
        %v1432 = vadd.f32 %v751, %v1326
        %v1433 = vadd.f32 %v752, %v1331
        %v1434 = vadd.f32 %v753, %v1334
        %v1435 = vadd.f32 %v754, %v1339
        %v1436 = vadd.f32 %v755, %v1342
        %v1437 = vadd.f32 %v756, %v1347
        %v1438 = vadd.f32 %v757, %v1350
        %v1439 = vadd.f32 %v758, %v1355
        %v1440 = vadd.f32 %v759, %v1358
        %v1441 = vadd.f32 %v760, %v1363
        %v1442 = vadd.f32 %v761, %v1366
        %v1443 = vadd.f32 %v762, %v1371
        %v1444 = vadd.f32 %v763, %v1374
        %v1445 = vadd.f32 %v764, %v1379
        %v1446 = vadd.f32 %v765, %v1382
        %v1447 = vadd.f32 %v766, %v1387
        %v1448 = vadd.f32 %v767, %v1390
        %v1449 = vadd.f32 %v768, %v1395
        %v1450 = vadd.f32 %v769, %v1398
        %v1451 = vadd.f32 %v770, %v1403
        %v1452 = vadd.f32 %v771, %v1406
        %v1453 = vadd.f32 %v772, %v1411
        %v1454 = vadd.f32 %v773, %v1414
        %v1455 = vadd.f32 %v774, %v1419
        %v1456 = vadd.f32 %v775, %v1422
        %1457 = vst [vmem:[#allocation2] sm:$0xff] %v1425
        %1458 = vst [vmem:[#allocation2 + $0x8] sm:$0xff] %v1426
        %1459 = vst [vmem:[#allocation2 + $0x10] sm:$0xff] %v1427
        %1460 = vst [vmem:[#allocation2 + $0x18] sm:$0xff] %v1428
        %1461 = vst [vmem:[#allocation2 + $0x20] sm:$0xff] %v1429
        %1462 = vst [vmem:[#allocation2 + $0x28] sm:$0xff] %v1430
        %1463 = vst [vmem:[#allocation2 + $0x30] sm:$0xff] %v1431
        %1464 = vst [vmem:[#allocation2 + $0x38] sm:$0xff] %v1432
        %1465 = vst [vmem:[#allocation2 + $0x40] sm:$0xff] %v1433
        %1466 = vst [vmem:[#allocation2 + $0x48] sm:$0xff] %v1434
        %1467 = vst [vmem:[#allocation2 + $0x50] sm:$0xff] %v1435
        %1468 = vst [vmem:[#allocation2 + $0x58] sm:$0xff] %v1436
        %1469 = vst [vmem:[#allocation2 + $0x60] sm:$0xff] %v1437
        %1470 = vst [vmem:[#allocation2 + $0x68] sm:$0xff] %v1438
        %1471 = vst [vmem:[#allocation2 + $0x70] sm:$0xff] %v1439
        %1472 = vst [vmem:[#allocation2 + $0x78] sm:$0xff] %v1440
        %1473 = vst [vmem:[#allocation2 + $0x80] sm:$0xff] %v1441
        %1474 = vst [vmem:[#allocation2 + $0x88] sm:$0xff] %v1442
        %1475 = vst [vmem:[#allocation2 + $0x90] sm:$0xff] %v1443
        %1476 = vst [vmem:[#allocation2 + $0x98] sm:$0xff] %v1444
        %1477 = vst [vmem:[#allocation2 + $0xa0] sm:$0xff] %v1445
        %1478 = vst [vmem:[#allocation2 + $0xa8] sm:$0xff] %v1446
        %1479 = vst [vmem:[#allocation2 + $0xb0] sm:$0xff] %v1447
        %1480 = vst [vmem:[#allocation2 + $0xb8] sm:$0xff] %v1448
        %1481 = vst [vmem:[#allocation2 + $0xc0] sm:$0xff] %v1449
        %1482 = vst [vmem:[#allocation2 + $0xc8] sm:$0xff] %v1450
        %1483 = vst [vmem:[#allocation2 + $0xd0] sm:$0xff] %v1451
        %1484 = vst [vmem:[#allocation2 + $0xd8] sm:$0xff] %v1452
        %1485 = vst [vmem:[#allocation2 + $0xe0] sm:$0xff] %v1453
        %1486 = vst [vmem:[#allocation2 + $0xe8] sm:$0xff] %v1454
        %1487 = vst [vmem:[#allocation2 + $0xf0] sm:$0xff] %v1455
        %1488 = vst [vmem:[#allocation2 + $0xf8] sm:$0xff] %v1456
        %v1489 = vld [vmem:[#allocation2] sm:$0xff]
        %v1490 = vld [vmem:[#allocation2 + $0x8] sm:$0xff]
        %v1491 = vld [vmem:[#allocation2 + $0x10] sm:$0xff]
        %v1492 = vld [vmem:[#allocation2 + $0x18] sm:$0xff]
        %v1493 = vld [vmem:[#allocation2 + $0x20] sm:$0xff]
        %v1494 = vld [vmem:[#allocation2 + $0x28] sm:$0xff]
        %v1495 = vld [vmem:[#allocation2 + $0x30] sm:$0xff]
        %v1496 = vld [vmem:[#allocation2 + $0x38] sm:$0xff]
        %v1497 = vld [vmem:[#allocation2 + $0x40] sm:$0xff]
        %v1498 = vld [vmem:[#allocation2 + $0x48] sm:$0xff]
        %v1499 = vld [vmem:[#allocation2 + $0x50] sm:$0xff]
        %v1500 = vld [vmem:[#allocation2 + $0x58] sm:$0xff]
        %v1501 = vld [vmem:[#allocation2 + $0x60] sm:$0xff]
        %v1502 = vld [vmem:[#allocation2 + $0x68] sm:$0xff]
        %v1503 = vld [vmem:[#allocation2 + $0x70] sm:$0xff]
        %v1504 = vld [vmem:[#allocation2 + $0x78] sm:$0xff]
        %v1505 = vld [vmem:[#allocation2 + $0x80] sm:$0xff]
        %v1506 = vld [vmem:[#allocation2 + $0x88] sm:$0xff]
        %v1507 = vld [vmem:[#allocation2 + $0x90] sm:$0xff]
        %v1508 = vld [vmem:[#allocation2 + $0x98] sm:$0xff]
        %v1509 = vld [vmem:[#allocation2 + $0xa0] sm:$0xff]
        %v1510 = vld [vmem:[#allocation2 + $0xa8] sm:$0xff]
        %v1511 = vld [vmem:[#allocation2 + $0xb0] sm:$0xff]
        %v1512 = vld [vmem:[#allocation2 + $0xb8] sm:$0xff]
        %v1513 = vld [vmem:[#allocation2 + $0xc0] sm:$0xff]
        %v1514 = vld [vmem:[#allocation2 + $0xc8] sm:$0xff]
        %v1515 = vld [vmem:[#allocation2 + $0xd0] sm:$0xff]
        %v1516 = vld [vmem:[#allocation2 + $0xd8] sm:$0xff]
        %v1517 = vld [vmem:[#allocation2 + $0xe0] sm:$0xff]
        %v1518 = vld [vmem:[#allocation2 + $0xe8] sm:$0xff]
        %v1519 = vld [vmem:[#allocation2 + $0xf0] sm:$0xff]
        %v1520 = vld [vmem:[#allocation2 + $0xf8] sm:$0xff]
        %vm1537 = vcmask 1042432
        %vm1538 = vcmask 1046532
        %vm1539 = vmor %vm1537, %vm1538
        %v1540 = vrot.slane %v267, 5
        %v1541 = vrot.slane %v1540, 4
        %v1542 = vrot.slane %v268, 5
        %v1543 = vsel %vm1539, %v1541, %v1542
        %v1544 = vrot.slane %v1542, 4
        %v1545 = vrot.slane %v269, 5
        %v1546 = vsel %vm1539, %v1544, %v1545
        %v1547 = vrot.slane %v270, 5
        %v1548 = vrot.slane %v1547, 4
        %v1549 = vrot.slane %v271, 5
        %v1550 = vsel %vm1539, %v1548, %v1549
        %v1551 = vrot.slane %v1549, 4
        %v1552 = vrot.slane %v272, 5
        %v1553 = vsel %vm1539, %v1551, %v1552
        %v1554 = vrot.slane %v273, 5
        %v1555 = vrot.slane %v1554, 4
        %v1556 = vrot.slane %v274, 5
        %v1557 = vsel %vm1539, %v1555, %v1556
        %v1558 = vrot.slane %v1556, 4
        %v1559 = vrot.slane %v275, 5
        %v1560 = vsel %vm1539, %v1558, %v1559
        %v1561 = vrot.slane %v276, 5
        %v1562 = vrot.slane %v1561, 4
        %v1563 = vrot.slane %v277, 5
        %v1564 = vsel %vm1539, %v1562, %v1563
        %v1565 = vrot.slane %v1563, 4
        %v1566 = vrot.slane %v278, 5
        %v1567 = vsel %vm1539, %v1565, %v1566
        %v1568 = vrot.slane %v279, 5
        %v1569 = vrot.slane %v1568, 4
        %v1570 = vrot.slane %v280, 5
        %v1571 = vsel %vm1539, %v1569, %v1570
        %v1572 = vrot.slane %v1570, 4
        %v1573 = vrot.slane %v281, 5
        %v1574 = vsel %vm1539, %v1572, %v1573
        %v1575 = vrot.slane %v282, 5
        %v1576 = vrot.slane %v1575, 4
        %v1577 = vrot.slane %v283, 5
        %v1578 = vsel %vm1539, %v1576, %v1577
        %v1579 = vrot.slane %v1577, 4
        %v1580 = vrot.slane %v284, 5
        %v1581 = vsel %vm1539, %v1579, %v1580
        %v1582 = vrot.slane %v285, 5
        %v1583 = vrot.slane %v1582, 4
        %v1584 = vrot.slane %v286, 5
        %v1585 = vsel %vm1539, %v1583, %v1584
        %v1586 = vrot.slane %v1584, 4
        %v1587 = vrot.slane %v287, 5
        %v1588 = vsel %vm1539, %v1586, %v1587
        %v1589 = vrot.slane %v288, 5
        %v1590 = vrot.slane %v1589, 4
        %v1591 = vrot.slane %v289, 5
        %v1592 = vsel %vm1539, %v1590, %v1591
        %v1593 = vrot.slane %v1591, 4
        %v1594 = vrot.slane %v290, 5
        %v1595 = vsel %vm1539, %v1593, %v1594
        %v1596 = vrot.slane %v291, 5
        %v1597 = vrot.slane %v1596, 4
        %v1598 = vrot.slane %v292, 5
        %v1599 = vsel %vm1539, %v1597, %v1598
        %v1600 = vrot.slane %v1598, 4
        %v1601 = vrot.slane %v293, 5
        %v1602 = vsel %vm1539, %v1600, %v1601
        %v1603 = vrot.slane %v294, 5
        %v1604 = vrot.slane %v1603, 4
        %v1605 = vrot.slane %v295, 5
        %v1606 = vsel %vm1539, %v1604, %v1605
        %v1607 = vrot.slane %v1605, 4
        %v1608 = vrot.slane %v296, 5
        %v1609 = vsel %vm1539, %v1607, %v1608
        %v1610 = vrot.slane %v297, 5
        %v1611 = vrot.slane %v1610, 4
        %v1612 = vrot.slane %v298, 5
        %v1613 = vsel %vm1539, %v1611, %v1612
        %v1614 = vrot.slane %v1612, 4
        %v1615 = vrot.slane %v299, 5
        %v1616 = vsel %vm1539, %v1614, %v1615
        %v1617 = vrot.slane %v300, 5
        %v1618 = vrot.slane %v1617, 4
        %v1619 = vrot.slane %v301, 5
        %v1620 = vsel %vm1539, %v1618, %v1619
        %v1621 = vrot.slane %v1619, 4
        %v1622 = vrot.slane %v302, 5
        %v1623 = vsel %vm1539, %v1621, %v1622
        %v1624 = vrot.slane %v303, 5
        %v1625 = vrot.slane %v1624, 4
        %v1626 = vrot.slane %v304, 5
        %v1627 = vsel %vm1539, %v1625, %v1626
        %v1628 = vrot.slane %v1626, 4
        %v1629 = vrot.slane %v305, 5
        %v1630 = vsel %vm1539, %v1628, %v1629
        %v1631 = vrot.slane %v306, 5
        %v1632 = vrot.slane %v1631, 4
        %v1633 = vrot.slane %v307, 5
        %v1634 = vsel %vm1539, %v1632, %v1633
        %v1635 = vrot.slane %v1633, 4
        %v1636 = vrot.slane %v308, 5
        %v1637 = vsel %vm1539, %v1635, %v1636
        %v1638 = vrot.slane %v309, 5
        %v1639 = vrot.slane %v1638, 4
        %v1640 = vrot.slane %v310, 5
        %v1641 = vsel %vm1539, %v1639, %v1640
        %v1642 = vrot.slane %v1640, 4
        %v1643 = vrot.slane %v311, 5
        %v1644 = vsel %vm1539, %v1642, %v1643
        %v1645 = vrot.slane %v312, 5
        %v1646 = vrot.slane %v1645, 4
        %v1647 = vrot.slane %v313, 5
        %v1648 = vsel %vm1539, %v1646, %v1647
        %v1649 = vrot.slane %v1647, 4
        %v1650 = vrot.slane %v314, 5
        %v1651 = vsel %vm1539, %v1649, %v1650
        %s1652 = scalar_lea.vmem %s1, 8
        %v1653 = vld [vmem:[%s1652] sm:$0xf]
        %v1654 = vunpack.c.l.b16 %v1543
        %v1655 = vunpack.c.l.b16 %v1546
        %v1656 = vunpack.c.l.b16 %v1550
        %v1657 = vunpack.c.l.b16 %v1553
        %v1658 = vunpack.c.l.b16 %v1557
        %v1659 = vunpack.c.l.b16 %v1560
        %v1660 = vunpack.c.l.b16 %v1564
        %v1661 = vunpack.c.l.b16 %v1567
        %v1662 = vunpack.c.l.b16 %v1571
        %v1663 = vunpack.c.l.b16 %v1574
        %v1664 = vunpack.c.l.b16 %v1578
        %v1665 = vunpack.c.l.b16 %v1581
        %v1666 = vunpack.c.l.b16 %v1585
        %v1667 = vunpack.c.l.b16 %v1588
        %v1668 = vunpack.c.l.b16 %v1592
        %v1669 = vunpack.c.l.b16 %v1595
        %v1670 = vunpack.c.l.b16 %v1599
        %v1671 = vunpack.c.l.b16 %v1602
        %v1672 = vunpack.c.l.b16 %v1606
        %v1673 = vunpack.c.l.b16 %v1609
        %v1674 = vunpack.c.l.b16 %v1613
        %v1675 = vunpack.c.l.b16 %v1616
        %v1676 = vunpack.c.l.b16 %v1620
        %v1677 = vunpack.c.l.b16 %v1623
        %v1678 = vunpack.c.l.b16 %v1627
        %v1679 = vunpack.c.l.b16 %v1630
        %v1680 = vunpack.c.l.b16 %v1634
        %v1681 = vunpack.c.l.b16 %v1637
        %v1682 = vunpack.c.l.b16 %v1641
        %v1683 = vunpack.c.l.b16 %v1644
        %v1684 = vunpack.c.l.b16 %v1648
        %v1685 = vunpack.c.l.b16 %v1651
        %v1686 = vpack.c.b16 %v1655, %v1654
        %v1687 = vpack.c.b16 %v1657, %v1656
        %v1688 = vpack.c.b16 %v1659, %v1658
        %v1689 = vpack.c.b16 %v1661, %v1660
        %v1690 = vpack.c.b16 %v1663, %v1662
        %v1691 = vpack.c.b16 %v1665, %v1664
        %v1692 = vpack.c.b16 %v1667, %v1666
        %v1693 = vpack.c.b16 %v1669, %v1668
        %v1694 = vpack.c.b16 %v1671, %v1670
        %v1695 = vpack.c.b16 %v1673, %v1672
        %v1696 = vpack.c.b16 %v1675, %v1674
        %v1697 = vpack.c.b16 %v1677, %v1676
        %v1698 = vpack.c.b16 %v1679, %v1678
        %v1699 = vpack.c.b16 %v1681, %v1680
        %v1700 = vpack.c.b16 %v1683, %v1682
        %v1701 = vpack.c.b16 %v1685, %v1684
        %v1703 = vsel %vm466, %v1686, 0
        %v1706 = vsel %vm466, %v1687, 0
        %v1709 = vsel %vm466, %v1688, 0
        %v1712 = vsel %vm466, %v1689, 0
        %v1715 = vsel %vm466, %v1690, 0
        %v1718 = vsel %vm466, %v1691, 0
        %v1721 = vsel %vm466, %v1692, 0
        %v1724 = vsel %vm466, %v1693, 0
        %v1727 = vsel %vm466, %v1694, 0
        %v1730 = vsel %vm466, %v1695, 0
        %v1733 = vsel %vm466, %v1696, 0
        %v1736 = vsel %vm466, %v1697, 0
        %v1739 = vsel %vm466, %v1698, 0
        %v1742 = vsel %vm466, %v1699, 0
        %v1745 = vsel %vm466, %v1700, 0
        %v1748 = vsel %vm466, %v1701, 0
        %v1751 = vsel %vm515, %v1653, 0
        %1753 = vmatprep.subr.bf16.mxu0 0
        %1754 = vmatpush1.bf16.msra.mxu0 %v1751
        %1755 = vmatprep.subr.bf16.mxu0 0
        %1756 = vmatpush1.bf16.msra.mxu0 0
        %1757 = vmatprep.subr.bf16.mxu0 0
        %1758 = vmatpush1.bf16.msra.mxu0 0
        %1759 = vmatprep.subr.bf16.mxu0 0
        %1760 = vmatpush1.bf16.msra.mxu0 0
        %1761 = vmatprep.subr.bf16.mxu0 0
        %1762 = vmatpush1.bf16.msra.mxu0 0
        %1763 = vmatprep.subr.bf16.mxu0 0
        %1764 = vmatpush1.bf16.msra.mxu0 0
        %1765 = vmatprep.subr.bf16.mxu0 0
        %1766 = vmatpush1.bf16.msra.mxu0 0
        %1767 = vmatprep.subr.bf16.mxu0 0
        %1768 = vmatpush1.bf16.msra.mxu0 0
        %1769 = vmatprep.subr.bf16.mxu0 0
        %1770 = vmatpush1.bf16.msra.mxu0 0
        %1771 = vmatprep.subr.bf16.mxu0 0
        %1772 = vmatpush1.bf16.msra.mxu0 0
        %1773 = vmatprep.subr.bf16.mxu0 0
        %1774 = vmatpush1.bf16.msra.mxu0 0
        %1775 = vmatprep.subr.bf16.mxu0 0
        %1776 = vmatpush1.bf16.msra.mxu0 0
        %1777 = vmatprep.subr.bf16.mxu0 0
        %1778 = vmatpush1.bf16.msra.mxu0 0
        %1779 = vmatprep.subr.bf16.mxu0 0
        %1780 = vmatpush1.bf16.msra.mxu0 0
        %1781 = vmatprep.subr.bf16.mxu0 0
        %1782 = vmatpush1.bf16.msra.mxu0 0
        %1783 = vmatprep.subr.bf16.mxu0 0
        %1784 = vmatpush1.bf16.msra.mxu0 0
        %1785 = vmatprep.mubr.bf16.mxu0 0
        %1786 = vmatmul.mubr.bf16.gmra.mrb[0].mxu0 %v1703
        %v1787 = vpop.f32.mrb[0].mxu0
        %v1788 = vadd.f32 0.0, %v1787
        %v1789 = vpop.f32.mrb[0].mxu0
        %v1790 = vpop.f32.mrb[0].mxu0
        %v1791 = vadd.f32 0.0, %v1790
        %v1792 = vpop.f32.mrb[0].mxu0
        %1793 = vmatprep.mubr.bf16.mxu0 0
        %1794 = vmatmul.mubr.bf16.gmra.mrb[0].mxu0 %v1706
        %v1795 = vpop.f32.mrb[0].mxu0
        %v1796 = vadd.f32 0.0, %v1795
        %v1797 = vpop.f32.mrb[0].mxu0
        %v1798 = vpop.f32.mrb[0].mxu0
        %v1799 = vadd.f32 0.0, %v1798
        %v1800 = vpop.f32.mrb[0].mxu0
        %1801 = vmatprep.mubr.bf16.mxu0 0
        %1802 = vmatmul.mubr.bf16.gmra.mrb[0].mxu0 %v1709
        %v1803 = vpop.f32.mrb[0].mxu0
        %v1804 = vadd.f32 0.0, %v1803
        %v1805 = vpop.f32.mrb[0].mxu0
        %v1806 = vpop.f32.mrb[0].mxu0
        %v1807 = vadd.f32 0.0, %v1806
        %v1808 = vpop.f32.mrb[0].mxu0
        %1809 = vmatprep.mubr.bf16.mxu0 0
        %1810 = vmatmul.mubr.bf16.gmra.mrb[0].mxu0 %v1712
        %v1811 = vpop.f32.mrb[0].mxu0
        %v1812 = vadd.f32 0.0, %v1811
        %v1813 = vpop.f32.mrb[0].mxu0
        %v1814 = vpop.f32.mrb[0].mxu0
        %v1815 = vadd.f32 0.0, %v1814
        %v1816 = vpop.f32.mrb[0].mxu0
        %1817 = vmatprep.mubr.bf16.mxu0 0
        %1818 = vmatmul.mubr.bf16.gmra.mrb[0].mxu0 %v1715
        %v1819 = vpop.f32.mrb[0].mxu0
        %v1820 = vadd.f32 0.0, %v1819
        %v1821 = vpop.f32.mrb[0].mxu0
        %v1822 = vpop.f32.mrb[0].mxu0
        %v1823 = vadd.f32 0.0, %v1822
        %v1824 = vpop.f32.mrb[0].mxu0
        %1825 = vmatprep.mubr.bf16.mxu0 0
        %1826 = vmatmul.mubr.bf16.gmra.mrb[0].mxu0 %v1718
        %v1827 = vpop.f32.mrb[0].mxu0
        %v1828 = vadd.f32 0.0, %v1827
        %v1829 = vpop.f32.mrb[0].mxu0
        %v1830 = vpop.f32.mrb[0].mxu0
        %v1831 = vadd.f32 0.0, %v1830
        %v1832 = vpop.f32.mrb[0].mxu0
        %1833 = vmatprep.mubr.bf16.mxu0 0
        %1834 = vmatmul.mubr.bf16.gmra.mrb[0].mxu0 %v1721
        %v1835 = vpop.f32.mrb[0].mxu0
        %v1836 = vadd.f32 0.0, %v1835
        %v1837 = vpop.f32.mrb[0].mxu0
        %v1838 = vpop.f32.mrb[0].mxu0
        %v1839 = vadd.f32 0.0, %v1838
        %v1840 = vpop.f32.mrb[0].mxu0
        %1841 = vmatprep.mubr.bf16.mxu0 0
        %1842 = vmatmul.mubr.bf16.gmra.mrb[0].mxu0 %v1724
        %v1843 = vpop.f32.mrb[0].mxu0
        %v1844 = vadd.f32 0.0, %v1843
        %v1845 = vpop.f32.mrb[0].mxu0
        %v1846 = vpop.f32.mrb[0].mxu0
        %v1847 = vadd.f32 0.0, %v1846
        %v1848 = vpop.f32.mrb[0].mxu0
        %1849 = vmatprep.mubr.bf16.mxu0 0
        %1850 = vmatmul.mubr.bf16.gmra.mrb[0].mxu0 %v1727
        %v1851 = vpop.f32.mrb[0].mxu0
        %v1852 = vadd.f32 0.0, %v1851
        %v1853 = vpop.f32.mrb[0].mxu0
        %v1854 = vpop.f32.mrb[0].mxu0
        %v1855 = vadd.f32 0.0, %v1854
        %v1856 = vpop.f32.mrb[0].mxu0
        %1857 = vmatprep.mubr.bf16.mxu0 0
        %1858 = vmatmul.mubr.bf16.gmra.mrb[0].mxu0 %v1730
        %v1859 = vpop.f32.mrb[0].mxu0
        %v1860 = vadd.f32 0.0, %v1859
        %v1861 = vpop.f32.mrb[0].mxu0
        %v1862 = vpop.f32.mrb[0].mxu0
        %v1863 = vadd.f32 0.0, %v1862
        %v1864 = vpop.f32.mrb[0].mxu0
        %1865 = vmatprep.mubr.bf16.mxu0 0
        %1866 = vmatmul.mubr.bf16.gmra.mrb[0].mxu0 %v1733
        %v1867 = vpop.f32.mrb[0].mxu0
        %v1868 = vadd.f32 0.0, %v1867
        %v1869 = vpop.f32.mrb[0].mxu0
        %v1870 = vpop.f32.mrb[0].mxu0
        %v1871 = vadd.f32 0.0, %v1870
        %v1872 = vpop.f32.mrb[0].mxu0
        %1873 = vmatprep.mubr.bf16.mxu0 0
        %1874 = vmatmul.mubr.bf16.gmra.mrb[0].mxu0 %v1736
        %v1875 = vpop.f32.mrb[0].mxu0
        %v1876 = vadd.f32 0.0, %v1875
        %v1877 = vpop.f32.mrb[0].mxu0
        %v1878 = vpop.f32.mrb[0].mxu0
        %v1879 = vadd.f32 0.0, %v1878
        %v1880 = vpop.f32.mrb[0].mxu0
        %1881 = vmatprep.mubr.bf16.mxu0 0
        %1882 = vmatmul.mubr.bf16.gmra.mrb[0].mxu0 %v1739
        %v1883 = vpop.f32.mrb[0].mxu0
        %v1884 = vadd.f32 0.0, %v1883
        %v1885 = vpop.f32.mrb[0].mxu0
        %v1886 = vpop.f32.mrb[0].mxu0
        %v1887 = vadd.f32 0.0, %v1886
        %v1888 = vpop.f32.mrb[0].mxu0
        %1889 = vmatprep.mubr.bf16.mxu0 0
        %1890 = vmatmul.mubr.bf16.gmra.mrb[0].mxu0 %v1742
        %v1891 = vpop.f32.mrb[0].mxu0
        %v1892 = vadd.f32 0.0, %v1891
        %v1893 = vpop.f32.mrb[0].mxu0
        %v1894 = vpop.f32.mrb[0].mxu0
        %v1895 = vadd.f32 0.0, %v1894
        %v1896 = vpop.f32.mrb[0].mxu0
        %1897 = vmatprep.mubr.bf16.mxu0 0
        %1898 = vmatmul.mubr.bf16.gmra.mrb[0].mxu0 %v1745
        %v1899 = vpop.f32.mrb[0].mxu0
        %v1900 = vadd.f32 0.0, %v1899
        %v1901 = vpop.f32.mrb[0].mxu0
        %v1902 = vpop.f32.mrb[0].mxu0
        %v1903 = vadd.f32 0.0, %v1902
        %v1904 = vpop.f32.mrb[0].mxu0
        %1905 = vmatprep.mubr.bf16.mxu0 0
        %1906 = vmatmul.mubr.bf16.gmra.mrb[0].mxu0 %v1748
        %v1907 = vpop.f32.mrb[0].mxu0
        %v1908 = vadd.f32 0.0, %v1907
        %v1909 = vpop.f32.mrb[0].mxu0
        %v1910 = vpop.f32.mrb[0].mxu0
        %v1911 = vadd.f32 0.0, %v1910
        %v1912 = vpop.f32.mrb[0].mxu0
        %1913 = vdwg.mxu0
        %v1914 = vadd.f32 %v1489, %v1788
        %v1915 = vadd.f32 %v1490, %v1791
        %v1916 = vadd.f32 %v1491, %v1796
        %v1917 = vadd.f32 %v1492, %v1799
        %v1918 = vadd.f32 %v1493, %v1804
        %v1919 = vadd.f32 %v1494, %v1807
        %v1920 = vadd.f32 %v1495, %v1812
        %v1921 = vadd.f32 %v1496, %v1815
        %v1922 = vadd.f32 %v1497, %v1820
        %v1923 = vadd.f32 %v1498, %v1823
        %v1924 = vadd.f32 %v1499, %v1828
        %v1925 = vadd.f32 %v1500, %v1831
        %v1926 = vadd.f32 %v1501, %v1836
        %v1927 = vadd.f32 %v1502, %v1839
        %v1928 = vadd.f32 %v1503, %v1844
        %v1929 = vadd.f32 %v1504, %v1847
        %v1930 = vadd.f32 %v1505, %v1852
        %v1931 = vadd.f32 %v1506, %v1855
        %v1932 = vadd.f32 %v1507, %v1860
        %v1933 = vadd.f32 %v1508, %v1863
        %v1934 = vadd.f32 %v1509, %v1868
        %v1935 = vadd.f32 %v1510, %v1871
        %v1936 = vadd.f32 %v1511, %v1876
        %v1937 = vadd.f32 %v1512, %v1879
        %v1938 = vadd.f32 %v1513, %v1884
        %v1939 = vadd.f32 %v1514, %v1887
        %v1940 = vadd.f32 %v1515, %v1892
        %v1941 = vadd.f32 %v1516, %v1895
        %v1942 = vadd.f32 %v1517, %v1900
        %v1943 = vadd.f32 %v1518, %v1903
        %v1944 = vadd.f32 %v1519, %v1908
        %v1945 = vadd.f32 %v1520, %v1911
        %1946 = vst [vmem:[#allocation2] sm:$0xff] %v1914
        %1947 = vst [vmem:[#allocation2 + $0x8] sm:$0xff] %v1915
        %1948 = vst [vmem:[#allocation2 + $0x10] sm:$0xff] %v1916
        %1949 = vst [vmem:[#allocation2 + $0x18] sm:$0xff] %v1917
        %1950 = vst [vmem:[#allocation2 + $0x20] sm:$0xff] %v1918
        %1951 = vst [vmem:[#allocation2 + $0x28] sm:$0xff] %v1919
        %1952 = vst [vmem:[#allocation2 + $0x30] sm:$0xff] %v1920
        %1953 = vst [vmem:[#allocation2 + $0x38] sm:$0xff] %v1921
        %1954 = vst [vmem:[#allocation2 + $0x40] sm:$0xff] %v1922
        %1955 = vst [vmem:[#allocation2 + $0x48] sm:$0xff] %v1923
        %1956 = vst [vmem:[#allocation2 + $0x50] sm:$0xff] %v1924
        %1957 = vst [vmem:[#allocation2 + $0x58] sm:$0xff] %v1925
        %1958 = vst [vmem:[#allocation2 + $0x60] sm:$0xff] %v1926
        %1959 = vst [vmem:[#allocation2 + $0x68] sm:$0xff] %v1927
        %1960 = vst [vmem:[#allocation2 + $0x70] sm:$0xff] %v1928
        %1961 = vst [vmem:[#allocation2 + $0x78] sm:$0xff] %v1929
        %1962 = vst [vmem:[#allocation2 + $0x80] sm:$0xff] %v1930
        %1963 = vst [vmem:[#allocation2 + $0x88] sm:$0xff] %v1931
        %1964 = vst [vmem:[#allocation2 + $0x90] sm:$0xff] %v1932
        %1965 = vst [vmem:[#allocation2 + $0x98] sm:$0xff] %v1933
        %1966 = vst [vmem:[#allocation2 + $0xa0] sm:$0xff] %v1934
        %1967 = vst [vmem:[#allocation2 + $0xa8] sm:$0xff] %v1935
        %1968 = vst [vmem:[#allocation2 + $0xb0] sm:$0xff] %v1936
        %1969 = vst [vmem:[#allocation2 + $0xb8] sm:$0xff] %v1937
        %1970 = vst [vmem:[#allocation2 + $0xc0] sm:$0xff] %v1938
        %1971 = vst [vmem:[#allocation2 + $0xc8] sm:$0xff] %v1939
        %1972 = vst [vmem:[#allocation2 + $0xd0] sm:$0xff] %v1940
        %1973 = vst [vmem:[#allocation2 + $0xd8] sm:$0xff] %v1941
        %1974 = vst [vmem:[#allocation2 + $0xe0] sm:$0xff] %v1942
        %1975 = vst [vmem:[#allocation2 + $0xe8] sm:$0xff] %v1943
        %1976 = vst [vmem:[#allocation2 + $0xf0] sm:$0xff] %v1944
        %1977 = vst [vmem:[#allocation2 + $0xf8] sm:$0xff] %v1945
        %v1978 = vld [vmem:[#allocation2] sm:$0xff]
        %v1979 = vld [vmem:[#allocation2 + $0x8] sm:$0xff]
        %v1980 = vld [vmem:[#allocation2 + $0x10] sm:$0xff]
        %v1981 = vld [vmem:[#allocation2 + $0x18] sm:$0xff]
        %v1982 = vld [vmem:[#allocation2 + $0x20] sm:$0xff]
        %v1983 = vld [vmem:[#allocation2 + $0x28] sm:$0xff]
        %v1984 = vld [vmem:[#allocation2 + $0x30] sm:$0xff]
        %v1985 = vld [vmem:[#allocation2 + $0x38] sm:$0xff]
        %v1986 = vld [vmem:[#allocation2 + $0x40] sm:$0xff]
        %v1987 = vld [vmem:[#allocation2 + $0x48] sm:$0xff]
        %v1988 = vld [vmem:[#allocation2 + $0x50] sm:$0xff]
        %v1989 = vld [vmem:[#allocation2 + $0x58] sm:$0xff]
        %v1990 = vld [vmem:[#allocation2 + $0x60] sm:$0xff]
        %v1991 = vld [vmem:[#allocation2 + $0x68] sm:$0xff]
        %v1992 = vld [vmem:[#allocation2 + $0x70] sm:$0xff]
        %v1993 = vld [vmem:[#allocation2 + $0x78] sm:$0xff]
        %v1994 = vld [vmem:[#allocation2 + $0x80] sm:$0xff]
        %v1995 = vld [vmem:[#allocation2 + $0x88] sm:$0xff]
        %v1996 = vld [vmem:[#allocation2 + $0x90] sm:$0xff]
        %v1997 = vld [vmem:[#allocation2 + $0x98] sm:$0xff]
        %v1998 = vld [vmem:[#allocation2 + $0xa0] sm:$0xff]
        %v1999 = vld [vmem:[#allocation2 + $0xa8] sm:$0xff]
        %v2000 = vld [vmem:[#allocation2 + $0xb0] sm:$0xff]
        %v2001 = vld [vmem:[#allocation2 + $0xb8] sm:$0xff]
        %v2002 = vld [vmem:[#allocation2 + $0xc0] sm:$0xff]
        %v2003 = vld [vmem:[#allocation2 + $0xc8] sm:$0xff]
        %v2004 = vld [vmem:[#allocation2 + $0xd0] sm:$0xff]
        %v2005 = vld [vmem:[#allocation2 + $0xd8] sm:$0xff]
        %v2006 = vld [vmem:[#allocation2 + $0xe0] sm:$0xff]
        %v2007 = vld [vmem:[#allocation2 + $0xe8] sm:$0xff]
        %v2008 = vld [vmem:[#allocation2 + $0xf0] sm:$0xff]
        %v2009 = vld [vmem:[#allocation2 + $0xf8] sm:$0xff]
        %s2010 = scalar_lea.vmem %s1, 12
        %v2011 = vld [vmem:[%s2010] sm:$0xf]
        %v2014 = vunpack.c.l.b16 %v315
        %v2015 = vunpack.c.l.b16 %v316
        %v2016 = vpack.c.b16 %v2015, %v2014
        %v2018 = vsel %vm466, %v2016, 0
        %v2021 = vsel %vm515, %v2011, 0
        %2023 = vmatprep.subr.bf16.mxu0 0
        %2024 = vmatpush1.bf16.msra.mxu0 %v2021
        %2025 = vmatprep.subr.bf16.mxu0 0
        %2026 = vmatpush1.bf16.msra.mxu0 0
        %2027 = vmatprep.subr.bf16.mxu0 0
        %2028 = vmatpush1.bf16.msra.mxu0 0
        %2029 = vmatprep.subr.bf16.mxu0 0
        %2030 = vmatpush1.bf16.msra.mxu0 0
        %2031 = vmatprep.subr.bf16.mxu0 0
        %2032 = vmatpush1.bf16.msra.mxu0 0
        %2033 = vmatprep.subr.bf16.mxu0 0
        %2034 = vmatpush1.bf16.msra.mxu0 0
        %2035 = vmatprep.subr.bf16.mxu0 0
        %2036 = vmatpush1.bf16.msra.mxu0 0
        %2037 = vmatprep.subr.bf16.mxu0 0
        %2038 = vmatpush1.bf16.msra.mxu0 0
        %2039 = vmatprep.subr.bf16.mxu0 0
        %2040 = vmatpush1.bf16.msra.mxu0 0
        %2041 = vmatprep.subr.bf16.mxu0 0
        %2042 = vmatpush1.bf16.msra.mxu0 0
        %2043 = vmatprep.subr.bf16.mxu0 0
        %2044 = vmatpush1.bf16.msra.mxu0 0
        %2045 = vmatprep.subr.bf16.mxu0 0
        %2046 = vmatpush1.bf16.msra.mxu0 0
        %2047 = vmatprep.subr.bf16.mxu0 0
        %2048 = vmatpush1.bf16.msra.mxu0 0
        %2049 = vmatprep.subr.bf16.mxu0 0
        %2050 = vmatpush1.bf16.msra.mxu0 0
        %2051 = vmatprep.subr.bf16.mxu0 0
        %2052 = vmatpush1.bf16.msra.mxu0 0
        %2053 = vmatprep.subr.bf16.mxu0 0
        %2054 = vmatpush1.bf16.msra.mxu0 0
        %2055 = vmatprep.mubr.bf16.mxu0 0
        %2056 = vmatmul.mubr.bf16.gmra.mrb[0].mxu0 %v471
        %v2057 = vpop.f32.mrb[0].mxu0
        %v2058 = vadd.f32 0.0, %v2057
        %v2059 = vpop.f32.mrb[0].mxu0
        %v2060 = vpop.f32.mrb[0].mxu0
        %v2061 = vadd.f32 0.0, %v2060
        %v2062 = vpop.f32.mrb[0].mxu0
        %2063 = vmatprep.mubr.bf16.mxu0 0
        %2064 = vmatmul.mubr.bf16.gmra.mrb[0].mxu0 %v474
        %v2065 = vpop.f32.mrb[0].mxu0
        %v2066 = vadd.f32 0.0, %v2065
        %v2067 = vpop.f32.mrb[0].mxu0
        %v2068 = vpop.f32.mrb[0].mxu0
        %v2069 = vadd.f32 0.0, %v2068
        %v2070 = vpop.f32.mrb[0].mxu0
        %2071 = vmatprep.mubr.bf16.mxu0 0
        %2072 = vmatmul.mubr.bf16.gmra.mrb[0].mxu0 %v477
        %v2073 = vpop.f32.mrb[0].mxu0
        %v2074 = vadd.f32 0.0, %v2073
        %v2075 = vpop.f32.mrb[0].mxu0
        %v2076 = vpop.f32.mrb[0].mxu0
        %v2077 = vadd.f32 0.0, %v2076
        %v2078 = vpop.f32.mrb[0].mxu0
        %2079 = vmatprep.mubr.bf16.mxu0 0
        %2080 = vmatmul.mubr.bf16.gmra.mrb[0].mxu0 %v480
        %v2081 = vpop.f32.mrb[0].mxu0
        %v2082 = vadd.f32 0.0, %v2081
        %v2083 = vpop.f32.mrb[0].mxu0
        %v2084 = vpop.f32.mrb[0].mxu0
        %v2085 = vadd.f32 0.0, %v2084
        %v2086 = vpop.f32.mrb[0].mxu0
        %2087 = vmatprep.mubr.bf16.mxu0 0
        %2088 = vmatmul.mubr.bf16.gmra.mrb[0].mxu0 %v483
        %v2089 = vpop.f32.mrb[0].mxu0
        %v2090 = vadd.f32 0.0, %v2089
        %v2091 = vpop.f32.mrb[0].mxu0
        %v2092 = vpop.f32.mrb[0].mxu0
        %v2093 = vadd.f32 0.0, %v2092
        %v2094 = vpop.f32.mrb[0].mxu0
        %2095 = vmatprep.mubr.bf16.mxu0 0
        %2096 = vmatmul.mubr.bf16.gmra.mrb[0].mxu0 %v486
        %v2097 = vpop.f32.mrb[0].mxu0
        %v2098 = vadd.f32 0.0, %v2097
        %v2099 = vpop.f32.mrb[0].mxu0
        %v2100 = vpop.f32.mrb[0].mxu0
        %v2101 = vadd.f32 0.0, %v2100
        %v2102 = vpop.f32.mrb[0].mxu0
        %2103 = vmatprep.mubr.bf16.mxu0 0
        %2104 = vmatmul.mubr.bf16.gmra.mrb[0].mxu0 %v489
        %v2105 = vpop.f32.mrb[0].mxu0
        %v2106 = vadd.f32 0.0, %v2105
        %v2107 = vpop.f32.mrb[0].mxu0
        %v2108 = vpop.f32.mrb[0].mxu0
        %v2109 = vadd.f32 0.0, %v2108
        %v2110 = vpop.f32.mrb[0].mxu0
        %2111 = vmatprep.mubr.bf16.mxu0 0
        %2112 = vmatmul.mubr.bf16.gmra.mrb[0].mxu0 %v492
        %v2113 = vpop.f32.mrb[0].mxu0
        %v2114 = vadd.f32 0.0, %v2113
        %v2115 = vpop.f32.mrb[0].mxu0
        %v2116 = vpop.f32.mrb[0].mxu0
        %v2117 = vadd.f32 0.0, %v2116
        %v2118 = vpop.f32.mrb[0].mxu0
        %2119 = vmatprep.mubr.bf16.mxu0 0
        %2120 = vmatmul.mubr.bf16.gmra.mrb[0].mxu0 %v495
        %v2121 = vpop.f32.mrb[0].mxu0
        %v2122 = vadd.f32 0.0, %v2121
        %v2123 = vpop.f32.mrb[0].mxu0
        %v2124 = vpop.f32.mrb[0].mxu0
        %v2125 = vadd.f32 0.0, %v2124
        %v2126 = vpop.f32.mrb[0].mxu0
        %2127 = vmatprep.mubr.bf16.mxu0 0
        %2128 = vmatmul.mubr.bf16.gmra.mrb[0].mxu0 %v498
        %v2129 = vpop.f32.mrb[0].mxu0
        %v2130 = vadd.f32 0.0, %v2129
        %v2131 = vpop.f32.mrb[0].mxu0
        %v2132 = vpop.f32.mrb[0].mxu0
        %v2133 = vadd.f32 0.0, %v2132
        %v2134 = vpop.f32.mrb[0].mxu0
        %2135 = vmatprep.mubr.bf16.mxu0 0
        %2136 = vmatmul.mubr.bf16.gmra.mrb[0].mxu0 %v501
        %v2137 = vpop.f32.mrb[0].mxu0
        %v2138 = vadd.f32 0.0, %v2137
        %v2139 = vpop.f32.mrb[0].mxu0
        %v2140 = vpop.f32.mrb[0].mxu0
        %v2141 = vadd.f32 0.0, %v2140
        %v2142 = vpop.f32.mrb[0].mxu0
        %2143 = vmatprep.mubr.bf16.mxu0 0
        %2144 = vmatmul.mubr.bf16.gmra.mrb[0].mxu0 %v504
        %v2145 = vpop.f32.mrb[0].mxu0
        %v2146 = vadd.f32 0.0, %v2145
        %v2147 = vpop.f32.mrb[0].mxu0
        %v2148 = vpop.f32.mrb[0].mxu0
        %v2149 = vadd.f32 0.0, %v2148
        %v2150 = vpop.f32.mrb[0].mxu0
        %2151 = vmatprep.mubr.bf16.mxu0 0
        %2152 = vmatmul.mubr.bf16.gmra.mrb[0].mxu0 %v507
        %v2153 = vpop.f32.mrb[0].mxu0
        %v2154 = vadd.f32 0.0, %v2153
        %v2155 = vpop.f32.mrb[0].mxu0
        %v2156 = vpop.f32.mrb[0].mxu0
        %v2157 = vadd.f32 0.0, %v2156
        %v2158 = vpop.f32.mrb[0].mxu0
        %2159 = vmatprep.mubr.bf16.mxu0 0
        %2160 = vmatmul.mubr.bf16.gmra.mrb[0].mxu0 %v510
        %v2161 = vpop.f32.mrb[0].mxu0
        %v2162 = vadd.f32 0.0, %v2161
        %v2163 = vpop.f32.mrb[0].mxu0
        %v2164 = vpop.f32.mrb[0].mxu0
        %v2165 = vadd.f32 0.0, %v2164
        %v2166 = vpop.f32.mrb[0].mxu0
        %2167 = vmatprep.mubr.bf16.mxu0 0
        %2168 = vmatmul.mubr.bf16.gmra.mrb[0].mxu0 %v513
        %v2169 = vpop.f32.mrb[0].mxu0
        %v2170 = vadd.f32 0.0, %v2169
        %v2171 = vpop.f32.mrb[0].mxu0
        %v2172 = vpop.f32.mrb[0].mxu0
        %v2173 = vadd.f32 0.0, %v2172
        %v2174 = vpop.f32.mrb[0].mxu0
        %2175 = vmatprep.mubr.bf16.mxu0 0
        %2176 = vmatmul.mubr.bf16.gmra.mrb[0].mxu0 %v2018
        %v2177 = vpop.f32.mrb[0].mxu0
        %v2178 = vadd.f32 0.0, %v2177
        %v2179 = vpop.f32.mrb[0].mxu0
        %v2180 = vpop.f32.mrb[0].mxu0
        %v2181 = vadd.f32 0.0, %v2180
        %v2182 = vpop.f32.mrb[0].mxu0
        %2183 = vdwg.mxu0
        %v2184 = vadd.f32 %v1978, %v2058
        %v2185 = vadd.f32 %v1979, %v2061
        %v2186 = vadd.f32 %v1980, %v2066
        %v2187 = vadd.f32 %v1981, %v2069
        %v2188 = vadd.f32 %v1982, %v2074
        %v2189 = vadd.f32 %v1983, %v2077
        %v2190 = vadd.f32 %v1984, %v2082
        %v2191 = vadd.f32 %v1985, %v2085
        %v2192 = vadd.f32 %v1986, %v2090
        %v2193 = vadd.f32 %v1987, %v2093
        %v2194 = vadd.f32 %v1988, %v2098
        %v2195 = vadd.f32 %v1989, %v2101
        %v2196 = vadd.f32 %v1990, %v2106
        %v2197 = vadd.f32 %v1991, %v2109
        %v2198 = vadd.f32 %v1992, %v2114
        %v2199 = vadd.f32 %v1993, %v2117
        %v2200 = vadd.f32 %v1994, %v2122
        %v2201 = vadd.f32 %v1995, %v2125
        %v2202 = vadd.f32 %v1996, %v2130
        %v2203 = vadd.f32 %v1997, %v2133
        %v2204 = vadd.f32 %v1998, %v2138
        %v2205 = vadd.f32 %v1999, %v2141
        %v2206 = vadd.f32 %v2000, %v2146
        %v2207 = vadd.f32 %v2001, %v2149
        %v2208 = vadd.f32 %v2002, %v2154
        %v2209 = vadd.f32 %v2003, %v2157
        %v2210 = vadd.f32 %v2004, %v2162
        %v2211 = vadd.f32 %v2005, %v2165
        %v2212 = vadd.f32 %v2006, %v2170
        %v2213 = vadd.f32 %v2007, %v2173
        %v2214 = vadd.f32 %v2008, %v2178
        %v2215 = vadd.f32 %v2009, %v2181
        %2216 = vst [vmem:[#allocation2] sm:$0xff] %v2184
        %2217 = vst [vmem:[#allocation2 + $0x8] sm:$0xff] %v2185
        %2218 = vst [vmem:[#allocation2 + $0x10] sm:$0xff] %v2186
        %2219 = vst [vmem:[#allocation2 + $0x18] sm:$0xff] %v2187
        %2220 = vst [vmem:[#allocation2 + $0x20] sm:$0xff] %v2188
        %2221 = vst [vmem:[#allocation2 + $0x28] sm:$0xff] %v2189
        %2222 = vst [vmem:[#allocation2 + $0x30] sm:$0xff] %v2190
        %2223 = vst [vmem:[#allocation2 + $0x38] sm:$0xff] %v2191
        %2224 = vst [vmem:[#allocation2 + $0x40] sm:$0xff] %v2192
        %2225 = vst [vmem:[#allocation2 + $0x48] sm:$0xff] %v2193
        %2226 = vst [vmem:[#allocation2 + $0x50] sm:$0xff] %v2194
        %2227 = vst [vmem:[#allocation2 + $0x58] sm:$0xff] %v2195
        %2228 = vst [vmem:[#allocation2 + $0x60] sm:$0xff] %v2196
        %2229 = vst [vmem:[#allocation2 + $0x68] sm:$0xff] %v2197
        %2230 = vst [vmem:[#allocation2 + $0x70] sm:$0xff] %v2198
        %2231 = vst [vmem:[#allocation2 + $0x78] sm:$0xff] %v2199
        %2232 = vst [vmem:[#allocation2 + $0x80] sm:$0xff] %v2200
        %2233 = vst [vmem:[#allocation2 + $0x88] sm:$0xff] %v2201
        %2234 = vst [vmem:[#allocation2 + $0x90] sm:$0xff] %v2202
        %2235 = vst [vmem:[#allocation2 + $0x98] sm:$0xff] %v2203
        %2236 = vst [vmem:[#allocation2 + $0xa0] sm:$0xff] %v2204
        %2237 = vst [vmem:[#allocation2 + $0xa8] sm:$0xff] %v2205
        %2238 = vst [vmem:[#allocation2 + $0xb0] sm:$0xff] %v2206
        %2239 = vst [vmem:[#allocation2 + $0xb8] sm:$0xff] %v2207
        %2240 = vst [vmem:[#allocation2 + $0xc0] sm:$0xff] %v2208
        %2241 = vst [vmem:[#allocation2 + $0xc8] sm:$0xff] %v2209
        %2242 = vst [vmem:[#allocation2 + $0xd0] sm:$0xff] %v2210
        %2243 = vst [vmem:[#allocation2 + $0xd8] sm:$0xff] %v2211
        %2244 = vst [vmem:[#allocation2 + $0xe0] sm:$0xff] %v2212
        %2245 = vst [vmem:[#allocation2 + $0xe8] sm:$0xff] %v2213
        %2246 = vst [vmem:[#allocation2 + $0xf0] sm:$0xff] %v2214
        %2247 = vst [vmem:[#allocation2 + $0xf8] sm:$0xff] %v2215
        %v2248 = vld [vmem:[#allocation2] sm:$0xff]
        %v2249 = vld [vmem:[#allocation2 + $0x8] sm:$0xff]
        %v2250 = vld [vmem:[#allocation2 + $0x10] sm:$0xff]
        %v2251 = vld [vmem:[#allocation2 + $0x18] sm:$0xff]
        %v2252 = vld [vmem:[#allocation2 + $0x20] sm:$0xff]
        %v2253 = vld [vmem:[#allocation2 + $0x28] sm:$0xff]
        %v2254 = vld [vmem:[#allocation2 + $0x30] sm:$0xff]
        %v2255 = vld [vmem:[#allocation2 + $0x38] sm:$0xff]
        %v2256 = vld [vmem:[#allocation2 + $0x40] sm:$0xff]
        %v2257 = vld [vmem:[#allocation2 + $0x48] sm:$0xff]
        %v2258 = vld [vmem:[#allocation2 + $0x50] sm:$0xff]
        %v2259 = vld [vmem:[#allocation2 + $0x58] sm:$0xff]
        %v2260 = vld [vmem:[#allocation2 + $0x60] sm:$0xff]
        %v2261 = vld [vmem:[#allocation2 + $0x68] sm:$0xff]
        %v2262 = vld [vmem:[#allocation2 + $0x70] sm:$0xff]
        %v2263 = vld [vmem:[#allocation2 + $0x78] sm:$0xff]
        %v2264 = vld [vmem:[#allocation2 + $0x80] sm:$0xff]
        %v2265 = vld [vmem:[#allocation2 + $0x88] sm:$0xff]
        %v2266 = vld [vmem:[#allocation2 + $0x90] sm:$0xff]
        %v2267 = vld [vmem:[#allocation2 + $0x98] sm:$0xff]
        %v2268 = vld [vmem:[#allocation2 + $0xa0] sm:$0xff]
        %v2269 = vld [vmem:[#allocation2 + $0xa8] sm:$0xff]
        %v2270 = vld [vmem:[#allocation2 + $0xb0] sm:$0xff]
        %v2271 = vld [vmem:[#allocation2 + $0xb8] sm:$0xff]
        %v2272 = vld [vmem:[#allocation2 + $0xc0] sm:$0xff]
        %v2273 = vld [vmem:[#allocation2 + $0xc8] sm:$0xff]
        %v2274 = vld [vmem:[#allocation2 + $0xd0] sm:$0xff]
        %v2275 = vld [vmem:[#allocation2 + $0xd8] sm:$0xff]
        %v2276 = vld [vmem:[#allocation2 + $0xe0] sm:$0xff]
        %v2277 = vld [vmem:[#allocation2 + $0xe8] sm:$0xff]
        %v2278 = vld [vmem:[#allocation2 + $0xf0] sm:$0xff]
        %v2279 = vld [vmem:[#allocation2 + $0xf8] sm:$0xff]
        %v2281 = vshrl.u32 %v315, 16
        %v2283 = vrot.slane %v2281, 4
        %v2284 = vshll.u32 %v315, 16
        %v2286 = vrot.slane %v2284, 5
        %v2287 = vor.u32 %v2283, %v2286
        %v2288 = vrot.slane %v2287, 4
        %v2290 = vshll.u32 %v316, 16
        %v2292 = vrot.slane %v2290, 5
        %v2293 = vsel %vm778, %v2288, %v2292
        %v2294 = vshrl.u32 %v316, 16
        %v2296 = vrot.slane %v2294, 4
        %v2297 = vor.u32 %v2296, %v2292
        %v2298 = vrot.slane %v2297, 4
        %v2300 = vshll.u32 %v317, 16
        %v2302 = vrot.slane %v2300, 5
        %v2303 = vsel %vm778, %v2298, %v2302
        %s2304 = scalar_lea.vmem %s1, 16
        %v2305 = vld [vmem:[%s2304] sm:$0xf]
        %v2306 = vunpack.c.l.b16 %v2293
        %v2307 = vunpack.c.l.b16 %v2303
        %v2308 = vpack.c.b16 %v2307, %v2306
        %v2310 = vsel %vm466, %v2308, 0
        %v2313 = vsel %vm515, %v2305, 0
        %2315 = vmatprep.subr.bf16.mxu0 0
        %2316 = vmatpush1.bf16.msra.mxu0 %v2313
        %2317 = vmatprep.subr.bf16.mxu0 0
        %2318 = vmatpush1.bf16.msra.mxu0 0
        %2319 = vmatprep.subr.bf16.mxu0 0
        %2320 = vmatpush1.bf16.msra.mxu0 0
        %2321 = vmatprep.subr.bf16.mxu0 0
        %2322 = vmatpush1.bf16.msra.mxu0 0
        %2323 = vmatprep.subr.bf16.mxu0 0
        %2324 = vmatpush1.bf16.msra.mxu0 0
        %2325 = vmatprep.subr.bf16.mxu0 0
        %2326 = vmatpush1.bf16.msra.mxu0 0
        %2327 = vmatprep.subr.bf16.mxu0 0
        %2328 = vmatpush1.bf16.msra.mxu0 0
        %2329 = vmatprep.subr.bf16.mxu0 0
        %2330 = vmatpush1.bf16.msra.mxu0 0
        %2331 = vmatprep.subr.bf16.mxu0 0
        %2332 = vmatpush1.bf16.msra.mxu0 0
        %2333 = vmatprep.subr.bf16.mxu0 0
        %2334 = vmatpush1.bf16.msra.mxu0 0
        %2335 = vmatprep.subr.bf16.mxu0 0
        %2336 = vmatpush1.bf16.msra.mxu0 0
        %2337 = vmatprep.subr.bf16.mxu0 0
        %2338 = vmatpush1.bf16.msra.mxu0 0
        %2339 = vmatprep.subr.bf16.mxu0 0
        %2340 = vmatpush1.bf16.msra.mxu0 0
        %2341 = vmatprep.subr.bf16.mxu0 0
        %2342 = vmatpush1.bf16.msra.mxu0 0
        %2343 = vmatprep.subr.bf16.mxu0 0
        %2344 = vmatpush1.bf16.msra.mxu0 0
        %2345 = vmatprep.subr.bf16.mxu0 0
        %2346 = vmatpush1.bf16.msra.mxu0 0
        %2347 = vmatprep.mubr.bf16.mxu0 0
        %2348 = vmatmul.mubr.bf16.gmra.mrb[0].mxu0 %v1217
        %v2349 = vpop.f32.mrb[0].mxu0
        %v2350 = vadd.f32 0.0, %v2349
        %v2351 = vpop.f32.mrb[0].mxu0
        %v2352 = vpop.f32.mrb[0].mxu0
        %v2353 = vadd.f32 0.0, %v2352
        %v2354 = vpop.f32.mrb[0].mxu0
        %2355 = vmatprep.mubr.bf16.mxu0 0
        %2356 = vmatmul.mubr.bf16.gmra.mrb[0].mxu0 %v1220
        %v2357 = vpop.f32.mrb[0].mxu0
        %v2358 = vadd.f32 0.0, %v2357
        %v2359 = vpop.f32.mrb[0].mxu0
        %v2360 = vpop.f32.mrb[0].mxu0
        %v2361 = vadd.f32 0.0, %v2360
        %v2362 = vpop.f32.mrb[0].mxu0
        %2363 = vmatprep.mubr.bf16.mxu0 0
        %2364 = vmatmul.mubr.bf16.gmra.mrb[0].mxu0 %v1223
        %v2365 = vpop.f32.mrb[0].mxu0
        %v2366 = vadd.f32 0.0, %v2365
        %v2367 = vpop.f32.mrb[0].mxu0
        %v2368 = vpop.f32.mrb[0].mxu0
        %v2369 = vadd.f32 0.0, %v2368
        %v2370 = vpop.f32.mrb[0].mxu0
        %2371 = vmatprep.mubr.bf16.mxu0 0
        %2372 = vmatmul.mubr.bf16.gmra.mrb[0].mxu0 %v1226
        %v2373 = vpop.f32.mrb[0].mxu0
        %v2374 = vadd.f32 0.0, %v2373
        %v2375 = vpop.f32.mrb[0].mxu0
        %v2376 = vpop.f32.mrb[0].mxu0
        %v2377 = vadd.f32 0.0, %v2376
        %v2378 = vpop.f32.mrb[0].mxu0
        %2379 = vmatprep.mubr.bf16.mxu0 0
        %2380 = vmatmul.mubr.bf16.gmra.mrb[0].mxu0 %v1229
        %v2381 = vpop.f32.mrb[0].mxu0
        %v2382 = vadd.f32 0.0, %v2381
        %v2383 = vpop.f32.mrb[0].mxu0
        %v2384 = vpop.f32.mrb[0].mxu0
        %v2385 = vadd.f32 0.0, %v2384
        %v2386 = vpop.f32.mrb[0].mxu0
        %2387 = vmatprep.mubr.bf16.mxu0 0
        %2388 = vmatmul.mubr.bf16.gmra.mrb[0].mxu0 %v1232
        %v2389 = vpop.f32.mrb[0].mxu0
        %v2390 = vadd.f32 0.0, %v2389
        %v2391 = vpop.f32.mrb[0].mxu0
        %v2392 = vpop.f32.mrb[0].mxu0
        %v2393 = vadd.f32 0.0, %v2392
        %v2394 = vpop.f32.mrb[0].mxu0
        %2395 = vmatprep.mubr.bf16.mxu0 0
        %2396 = vmatmul.mubr.bf16.gmra.mrb[0].mxu0 %v1235
        %v2397 = vpop.f32.mrb[0].mxu0
        %v2398 = vadd.f32 0.0, %v2397
        %v2399 = vpop.f32.mrb[0].mxu0
        %v2400 = vpop.f32.mrb[0].mxu0
        %v2401 = vadd.f32 0.0, %v2400
        %v2402 = vpop.f32.mrb[0].mxu0
        %2403 = vmatprep.mubr.bf16.mxu0 0
        %2404 = vmatmul.mubr.bf16.gmra.mrb[0].mxu0 %v1238
        %v2405 = vpop.f32.mrb[0].mxu0
        %v2406 = vadd.f32 0.0, %v2405
        %v2407 = vpop.f32.mrb[0].mxu0
        %v2408 = vpop.f32.mrb[0].mxu0
        %v2409 = vadd.f32 0.0, %v2408
        %v2410 = vpop.f32.mrb[0].mxu0
        %2411 = vmatprep.mubr.bf16.mxu0 0
        %2412 = vmatmul.mubr.bf16.gmra.mrb[0].mxu0 %v1241
        %v2413 = vpop.f32.mrb[0].mxu0
        %v2414 = vadd.f32 0.0, %v2413
        %v2415 = vpop.f32.mrb[0].mxu0
        %v2416 = vpop.f32.mrb[0].mxu0
        %v2417 = vadd.f32 0.0, %v2416
        %v2418 = vpop.f32.mrb[0].mxu0
        %2419 = vmatprep.mubr.bf16.mxu0 0
        %2420 = vmatmul.mubr.bf16.gmra.mrb[0].mxu0 %v1244
        %v2421 = vpop.f32.mrb[0].mxu0
        %v2422 = vadd.f32 0.0, %v2421
        %v2423 = vpop.f32.mrb[0].mxu0
        %v2424 = vpop.f32.mrb[0].mxu0
        %v2425 = vadd.f32 0.0, %v2424
        %v2426 = vpop.f32.mrb[0].mxu0
        %2427 = vmatprep.mubr.bf16.mxu0 0
        %2428 = vmatmul.mubr.bf16.gmra.mrb[0].mxu0 %v1247
        %v2429 = vpop.f32.mrb[0].mxu0
        %v2430 = vadd.f32 0.0, %v2429
        %v2431 = vpop.f32.mrb[0].mxu0
        %v2432 = vpop.f32.mrb[0].mxu0
        %v2433 = vadd.f32 0.0, %v2432
        %v2434 = vpop.f32.mrb[0].mxu0
        %2435 = vmatprep.mubr.bf16.mxu0 0
        %2436 = vmatmul.mubr.bf16.gmra.mrb[0].mxu0 %v1250
        %v2437 = vpop.f32.mrb[0].mxu0
        %v2438 = vadd.f32 0.0, %v2437
        %v2439 = vpop.f32.mrb[0].mxu0
        %v2440 = vpop.f32.mrb[0].mxu0
        %v2441 = vadd.f32 0.0, %v2440
        %v2442 = vpop.f32.mrb[0].mxu0
        %2443 = vmatprep.mubr.bf16.mxu0 0
        %2444 = vmatmul.mubr.bf16.gmra.mrb[0].mxu0 %v1253
        %v2445 = vpop.f32.mrb[0].mxu0
        %v2446 = vadd.f32 0.0, %v2445
        %v2447 = vpop.f32.mrb[0].mxu0
        %v2448 = vpop.f32.mrb[0].mxu0
        %v2449 = vadd.f32 0.0, %v2448
        %v2450 = vpop.f32.mrb[0].mxu0
        %2451 = vmatprep.mubr.bf16.mxu0 0
        %2452 = vmatmul.mubr.bf16.gmra.mrb[0].mxu0 %v1256
        %v2453 = vpop.f32.mrb[0].mxu0
        %v2454 = vadd.f32 0.0, %v2453
        %v2455 = vpop.f32.mrb[0].mxu0
        %v2456 = vpop.f32.mrb[0].mxu0
        %v2457 = vadd.f32 0.0, %v2456
        %v2458 = vpop.f32.mrb[0].mxu0
        %2459 = vmatprep.mubr.bf16.mxu0 0
        %2460 = vmatmul.mubr.bf16.gmra.mrb[0].mxu0 %v1259
        %v2461 = vpop.f32.mrb[0].mxu0
        %v2462 = vadd.f32 0.0, %v2461
        %v2463 = vpop.f32.mrb[0].mxu0
        %v2464 = vpop.f32.mrb[0].mxu0
        %v2465 = vadd.f32 0.0, %v2464
        %v2466 = vpop.f32.mrb[0].mxu0
        %2467 = vmatprep.mubr.bf16.mxu0 0
        %2468 = vmatmul.mubr.bf16.gmra.mrb[0].mxu0 %v2310
        %v2469 = vpop.f32.mrb[0].mxu0
        %v2470 = vadd.f32 0.0, %v2469
        %v2471 = vpop.f32.mrb[0].mxu0
        %v2472 = vpop.f32.mrb[0].mxu0
        %v2473 = vadd.f32 0.0, %v2472
        %v2474 = vpop.f32.mrb[0].mxu0
        %2475 = vdwg.mxu0
        %v2476 = vadd.f32 %v2248, %v2350
        %v2477 = vadd.f32 %v2249, %v2353
        %v2478 = vadd.f32 %v2250, %v2358
        %v2479 = vadd.f32 %v2251, %v2361
        %v2480 = vadd.f32 %v2252, %v2366
        %v2481 = vadd.f32 %v2253, %v2369
        %v2482 = vadd.f32 %v2254, %v2374
        %v2483 = vadd.f32 %v2255, %v2377
        %v2484 = vadd.f32 %v2256, %v2382
        %v2485 = vadd.f32 %v2257, %v2385
        %v2486 = vadd.f32 %v2258, %v2390
        %v2487 = vadd.f32 %v2259, %v2393
        %v2488 = vadd.f32 %v2260, %v2398
        %v2489 = vadd.f32 %v2261, %v2401
        %v2490 = vadd.f32 %v2262, %v2406
        %v2491 = vadd.f32 %v2263, %v2409
        %v2492 = vadd.f32 %v2264, %v2414
        %v2493 = vadd.f32 %v2265, %v2417
        %v2494 = vadd.f32 %v2266, %v2422
        %v2495 = vadd.f32 %v2267, %v2425
        %v2496 = vadd.f32 %v2268, %v2430
        %v2497 = vadd.f32 %v2269, %v2433
        %v2498 = vadd.f32 %v2270, %v2438
        %v2499 = vadd.f32 %v2271, %v2441
        %v2500 = vadd.f32 %v2272, %v2446
        %v2501 = vadd.f32 %v2273, %v2449
        %v2502 = vadd.f32 %v2274, %v2454
        %v2503 = vadd.f32 %v2275, %v2457
        %v2504 = vadd.f32 %v2276, %v2462
        %v2505 = vadd.f32 %v2277, %v2465
        %v2506 = vadd.f32 %v2278, %v2470
        %v2507 = vadd.f32 %v2279, %v2473
        %2508 = vst [vmem:[#allocation2] sm:$0xff] %v2476
        %2509 = vst [vmem:[#allocation2 + $0x8] sm:$0xff] %v2477
        %2510 = vst [vmem:[#allocation2 + $0x10] sm:$0xff] %v2478
        %2511 = vst [vmem:[#allocation2 + $0x18] sm:$0xff] %v2479
        %2512 = vst [vmem:[#allocation2 + $0x20] sm:$0xff] %v2480
        %2513 = vst [vmem:[#allocation2 + $0x28] sm:$0xff] %v2481
        %2514 = vst [vmem:[#allocation2 + $0x30] sm:$0xff] %v2482
        %2515 = vst [vmem:[#allocation2 + $0x38] sm:$0xff] %v2483
        %2516 = vst [vmem:[#allocation2 + $0x40] sm:$0xff] %v2484
        %2517 = vst [vmem:[#allocation2 + $0x48] sm:$0xff] %v2485
        %2518 = vst [vmem:[#allocation2 + $0x50] sm:$0xff] %v2486
        %2519 = vst [vmem:[#allocation2 + $0x58] sm:$0xff] %v2487
        %2520 = vst [vmem:[#allocation2 + $0x60] sm:$0xff] %v2488
        %2521 = vst [vmem:[#allocation2 + $0x68] sm:$0xff] %v2489
        %2522 = vst [vmem:[#allocation2 + $0x70] sm:$0xff] %v2490
        %2523 = vst [vmem:[#allocation2 + $0x78] sm:$0xff] %v2491
        %2524 = vst [vmem:[#allocation2 + $0x80] sm:$0xff] %v2492
        %2525 = vst [vmem:[#allocation2 + $0x88] sm:$0xff] %v2493
        %2526 = vst [vmem:[#allocation2 + $0x90] sm:$0xff] %v2494
        %2527 = vst [vmem:[#allocation2 + $0x98] sm:$0xff] %v2495
        %2528 = vst [vmem:[#allocation2 + $0xa0] sm:$0xff] %v2496
        %2529 = vst [vmem:[#allocation2 + $0xa8] sm:$0xff] %v2497
        %2530 = vst [vmem:[#allocation2 + $0xb0] sm:$0xff] %v2498
        %2531 = vst [vmem:[#allocation2 + $0xb8] sm:$0xff] %v2499
        %2532 = vst [vmem:[#allocation2 + $0xc0] sm:$0xff] %v2500
        %2533 = vst [vmem:[#allocation2 + $0xc8] sm:$0xff] %v2501
        %2534 = vst [vmem:[#allocation2 + $0xd0] sm:$0xff] %v2502
        %2535 = vst [vmem:[#allocation2 + $0xd8] sm:$0xff] %v2503
        %2536 = vst [vmem:[#allocation2 + $0xe0] sm:$0xff] %v2504
        %2537 = vst [vmem:[#allocation2 + $0xe8] sm:$0xff] %v2505
        %2538 = vst [vmem:[#allocation2 + $0xf0] sm:$0xff] %v2506
        %2539 = vst [vmem:[#allocation2 + $0xf8] sm:$0xff] %v2507
        %v2540 = vld [vmem:[#allocation2] sm:$0xff]
        %v2541 = vld [vmem:[#allocation2 + $0x8] sm:$0xff]
        %v2542 = vld [vmem:[#allocation2 + $0x10] sm:$0xff]
        %v2543 = vld [vmem:[#allocation2 + $0x18] sm:$0xff]
        %v2544 = vld [vmem:[#allocation2 + $0x20] sm:$0xff]
        %v2545 = vld [vmem:[#allocation2 + $0x28] sm:$0xff]
        %v2546 = vld [vmem:[#allocation2 + $0x30] sm:$0xff]
        %v2547 = vld [vmem:[#allocation2 + $0x38] sm:$0xff]
        %v2548 = vld [vmem:[#allocation2 + $0x40] sm:$0xff]
        %v2549 = vld [vmem:[#allocation2 + $0x48] sm:$0xff]
        %v2550 = vld [vmem:[#allocation2 + $0x50] sm:$0xff]
        %v2551 = vld [vmem:[#allocation2 + $0x58] sm:$0xff]
        %v2552 = vld [vmem:[#allocation2 + $0x60] sm:$0xff]
        %v2553 = vld [vmem:[#allocation2 + $0x68] sm:$0xff]
        %v2554 = vld [vmem:[#allocation2 + $0x70] sm:$0xff]
        %v2555 = vld [vmem:[#allocation2 + $0x78] sm:$0xff]
        %v2556 = vld [vmem:[#allocation2 + $0x80] sm:$0xff]
        %v2557 = vld [vmem:[#allocation2 + $0x88] sm:$0xff]
        %v2558 = vld [vmem:[#allocation2 + $0x90] sm:$0xff]
        %v2559 = vld [vmem:[#allocation2 + $0x98] sm:$0xff]
        %v2560 = vld [vmem:[#allocation2 + $0xa0] sm:$0xff]
        %v2561 = vld [vmem:[#allocation2 + $0xa8] sm:$0xff]
        %v2562 = vld [vmem:[#allocation2 + $0xb0] sm:$0xff]
        %v2563 = vld [vmem:[#allocation2 + $0xb8] sm:$0xff]
        %v2564 = vld [vmem:[#allocation2 + $0xc0] sm:$0xff]
        %v2565 = vld [vmem:[#allocation2 + $0xc8] sm:$0xff]
        %v2566 = vld [vmem:[#allocation2 + $0xd0] sm:$0xff]
        %v2567 = vld [vmem:[#allocation2 + $0xd8] sm:$0xff]
        %v2568 = vld [vmem:[#allocation2 + $0xe0] sm:$0xff]
        %v2569 = vld [vmem:[#allocation2 + $0xe8] sm:$0xff]
        %v2570 = vld [vmem:[#allocation2 + $0xf0] sm:$0xff]
        %v2571 = vld [vmem:[#allocation2 + $0xf8] sm:$0xff]
        %v2573 = vrot.slane %v315, 5
        %v2574 = vrot.slane %v2573, 4
        %v2575 = vrot.slane %v316, 5
        %v2576 = vsel %vm1539, %v2574, %v2575
        %v2577 = vrot.slane %v2575, 4
        %v2578 = vrot.slane %v317, 5
        %v2579 = vsel %vm1539, %v2577, %v2578
        %s2580 = scalar_lea.vmem %s1, 20
        %v2581 = vld [vmem:[%s2580] sm:$0xf]
        %v2582 = vunpack.c.l.b16 %v2576
        %v2583 = vunpack.c.l.b16 %v2579
        %v2584 = vpack.c.b16 %v2583, %v2582
        %v2586 = vsel %vm466, %v2584, 0
        %v2589 = vsel %vm515, %v2581, 0
        %2591 = vmatprep.subr.bf16.mxu0 0
        %2592 = vmatpush1.bf16.msra.mxu0 %v2589
        %2593 = vmatprep.subr.bf16.mxu0 0
        %2594 = vmatpush1.bf16.msra.mxu0 0
        %2595 = vmatprep.subr.bf16.mxu0 0
        %2596 = vmatpush1.bf16.msra.mxu0 0
        %2597 = vmatprep.subr.bf16.mxu0 0
        %2598 = vmatpush1.bf16.msra.mxu0 0
        %2599 = vmatprep.subr.bf16.mxu0 0
        %2600 = vmatpush1.bf16.msra.mxu0 0
        %2601 = vmatprep.subr.bf16.mxu0 0
        %2602 = vmatpush1.bf16.msra.mxu0 0
        %2603 = vmatprep.subr.bf16.mxu0 0
        %2604 = vmatpush1.bf16.msra.mxu0 0
        %2605 = vmatprep.subr.bf16.mxu0 0
        %2606 = vmatpush1.bf16.msra.mxu0 0
        %2607 = vmatprep.subr.bf16.mxu0 0
        %2608 = vmatpush1.bf16.msra.mxu0 0
        %2609 = vmatprep.subr.bf16.mxu0 0
        %2610 = vmatpush1.bf16.msra.mxu0 0
        %2611 = vmatprep.subr.bf16.mxu0 0
        %2612 = vmatpush1.bf16.msra.mxu0 0
        %2613 = vmatprep.subr.bf16.mxu0 0
        %2614 = vmatpush1.bf16.msra.mxu0 0
        %2615 = vmatprep.subr.bf16.mxu0 0
        %2616 = vmatpush1.bf16.msra.mxu0 0
        %2617 = vmatprep.subr.bf16.mxu0 0
        %2618 = vmatpush1.bf16.msra.mxu0 0
        %2619 = vmatprep.subr.bf16.mxu0 0
        %2620 = vmatpush1.bf16.msra.mxu0 0
        %2621 = vmatprep.subr.bf16.mxu0 0
        %2622 = vmatpush1.bf16.msra.mxu0 0
        %2623 = vmatprep.mubr.bf16.mxu0 0
        %2624 = vmatmul.mubr.bf16.gmra.mrb[0].mxu0 %v1706
        %v2625 = vpop.f32.mrb[0].mxu0
        %v2626 = vadd.f32 0.0, %v2625
        %v2627 = vpop.f32.mrb[0].mxu0
        %v2628 = vpop.f32.mrb[0].mxu0
        %v2629 = vadd.f32 0.0, %v2628
        %v2630 = vpop.f32.mrb[0].mxu0
        %2631 = vmatprep.mubr.bf16.mxu0 0
        %2632 = vmatmul.mubr.bf16.gmra.mrb[0].mxu0 %v1709
        %v2633 = vpop.f32.mrb[0].mxu0
        %v2634 = vadd.f32 0.0, %v2633
        %v2635 = vpop.f32.mrb[0].mxu0
        %v2636 = vpop.f32.mrb[0].mxu0
        %v2637 = vadd.f32 0.0, %v2636
        %v2638 = vpop.f32.mrb[0].mxu0
        %2639 = vmatprep.mubr.bf16.mxu0 0
        %2640 = vmatmul.mubr.bf16.gmra.mrb[0].mxu0 %v1712
        %v2641 = vpop.f32.mrb[0].mxu0
        %v2642 = vadd.f32 0.0, %v2641
        %v2643 = vpop.f32.mrb[0].mxu0
        %v2644 = vpop.f32.mrb[0].mxu0
        %v2645 = vadd.f32 0.0, %v2644
        %v2646 = vpop.f32.mrb[0].mxu0
        %2647 = vmatprep.mubr.bf16.mxu0 0
        %2648 = vmatmul.mubr.bf16.gmra.mrb[0].mxu0 %v1715
        %v2649 = vpop.f32.mrb[0].mxu0
        %v2650 = vadd.f32 0.0, %v2649
        %v2651 = vpop.f32.mrb[0].mxu0
        %v2652 = vpop.f32.mrb[0].mxu0
        %v2653 = vadd.f32 0.0, %v2652
        %v2654 = vpop.f32.mrb[0].mxu0
        %2655 = vmatprep.mubr.bf16.mxu0 0
        %2656 = vmatmul.mubr.bf16.gmra.mrb[0].mxu0 %v1718
        %v2657 = vpop.f32.mrb[0].mxu0
        %v2658 = vadd.f32 0.0, %v2657
        %v2659 = vpop.f32.mrb[0].mxu0
        %v2660 = vpop.f32.mrb[0].mxu0
        %v2661 = vadd.f32 0.0, %v2660
        %v2662 = vpop.f32.mrb[0].mxu0
        %2663 = vmatprep.mubr.bf16.mxu0 0
        %2664 = vmatmul.mubr.bf16.gmra.mrb[0].mxu0 %v1721
        %v2665 = vpop.f32.mrb[0].mxu0
        %v2666 = vadd.f32 0.0, %v2665
        %v2667 = vpop.f32.mrb[0].mxu0
        %v2668 = vpop.f32.mrb[0].mxu0
        %v2669 = vadd.f32 0.0, %v2668
        %v2670 = vpop.f32.mrb[0].mxu0
        %2671 = vmatprep.mubr.bf16.mxu0 0
        %2672 = vmatmul.mubr.bf16.gmra.mrb[0].mxu0 %v1724
        %v2673 = vpop.f32.mrb[0].mxu0
        %v2674 = vadd.f32 0.0, %v2673
        %v2675 = vpop.f32.mrb[0].mxu0
        %v2676 = vpop.f32.mrb[0].mxu0
        %v2677 = vadd.f32 0.0, %v2676
        %v2678 = vpop.f32.mrb[0].mxu0
        %2679 = vmatprep.mubr.bf16.mxu0 0
        %2680 = vmatmul.mubr.bf16.gmra.mrb[0].mxu0 %v1727
        %v2681 = vpop.f32.mrb[0].mxu0
        %v2682 = vadd.f32 0.0, %v2681
        %v2683 = vpop.f32.mrb[0].mxu0
        %v2684 = vpop.f32.mrb[0].mxu0
        %v2685 = vadd.f32 0.0, %v2684
        %v2686 = vpop.f32.mrb[0].mxu0
        %2687 = vmatprep.mubr.bf16.mxu0 0
        %2688 = vmatmul.mubr.bf16.gmra.mrb[0].mxu0 %v1730
        %v2689 = vpop.f32.mrb[0].mxu0
        %v2690 = vadd.f32 0.0, %v2689
        %v2691 = vpop.f32.mrb[0].mxu0
        %v2692 = vpop.f32.mrb[0].mxu0
        %v2693 = vadd.f32 0.0, %v2692
        %v2694 = vpop.f32.mrb[0].mxu0
        %2695 = vmatprep.mubr.bf16.mxu0 0
        %2696 = vmatmul.mubr.bf16.gmra.mrb[0].mxu0 %v1733
        %v2697 = vpop.f32.mrb[0].mxu0
        %v2698 = vadd.f32 0.0, %v2697
        %v2699 = vpop.f32.mrb[0].mxu0
        %v2700 = vpop.f32.mrb[0].mxu0
        %v2701 = vadd.f32 0.0, %v2700
        %v2702 = vpop.f32.mrb[0].mxu0
        %2703 = vmatprep.mubr.bf16.mxu0 0
        %2704 = vmatmul.mubr.bf16.gmra.mrb[0].mxu0 %v1736
        %v2705 = vpop.f32.mrb[0].mxu0
        %v2706 = vadd.f32 0.0, %v2705
        %v2707 = vpop.f32.mrb[0].mxu0
        %v2708 = vpop.f32.mrb[0].mxu0
        %v2709 = vadd.f32 0.0, %v2708
        %v2710 = vpop.f32.mrb[0].mxu0
        %2711 = vmatprep.mubr.bf16.mxu0 0
        %2712 = vmatmul.mubr.bf16.gmra.mrb[0].mxu0 %v1739
        %v2713 = vpop.f32.mrb[0].mxu0
        %v2714 = vadd.f32 0.0, %v2713
        %v2715 = vpop.f32.mrb[0].mxu0
        %v2716 = vpop.f32.mrb[0].mxu0
        %v2717 = vadd.f32 0.0, %v2716
        %v2718 = vpop.f32.mrb[0].mxu0
        %2719 = vmatprep.mubr.bf16.mxu0 0
        %2720 = vmatmul.mubr.bf16.gmra.mrb[0].mxu0 %v1742
        %v2721 = vpop.f32.mrb[0].mxu0
        %v2722 = vadd.f32 0.0, %v2721
        %v2723 = vpop.f32.mrb[0].mxu0
        %v2724 = vpop.f32.mrb[0].mxu0
        %v2725 = vadd.f32 0.0, %v2724
        %v2726 = vpop.f32.mrb[0].mxu0
        %2727 = vmatprep.mubr.bf16.mxu0 0
        %2728 = vmatmul.mubr.bf16.gmra.mrb[0].mxu0 %v1745
        %v2729 = vpop.f32.mrb[0].mxu0
        %v2730 = vadd.f32 0.0, %v2729
        %v2731 = vpop.f32.mrb[0].mxu0
        %v2732 = vpop.f32.mrb[0].mxu0
        %v2733 = vadd.f32 0.0, %v2732
        %v2734 = vpop.f32.mrb[0].mxu0
        %2735 = vmatprep.mubr.bf16.mxu0 0
        %2736 = vmatmul.mubr.bf16.gmra.mrb[0].mxu0 %v1748
        %v2737 = vpop.f32.mrb[0].mxu0
        %v2738 = vadd.f32 0.0, %v2737
        %v2739 = vpop.f32.mrb[0].mxu0
        %v2740 = vpop.f32.mrb[0].mxu0
        %v2741 = vadd.f32 0.0, %v2740
        %v2742 = vpop.f32.mrb[0].mxu0
        %2743 = vmatprep.mubr.bf16.mxu0 0
        %2744 = vmatmul.mubr.bf16.gmra.mrb[0].mxu0 %v2586
        %v2745 = vpop.f32.mrb[0].mxu0
        %v2746 = vadd.f32 0.0, %v2745
        %v2747 = vpop.f32.mrb[0].mxu0
        %v2748 = vpop.f32.mrb[0].mxu0
        %v2749 = vadd.f32 0.0, %v2748
        %v2750 = vpop.f32.mrb[0].mxu0
        %2751 = vdwg.mxu0
        %v2752 = vadd.f32 %v2540, %v2626
        %v2753 = vadd.f32 %v2541, %v2629
        %v2754 = vadd.f32 %v2542, %v2634
        %v2755 = vadd.f32 %v2543, %v2637
        %v2756 = vadd.f32 %v2544, %v2642
        %v2757 = vadd.f32 %v2545, %v2645
        %v2758 = vadd.f32 %v2546, %v2650
        %v2759 = vadd.f32 %v2547, %v2653
        %v2760 = vadd.f32 %v2548, %v2658
        %v2761 = vadd.f32 %v2549, %v2661
        %v2762 = vadd.f32 %v2550, %v2666
        %v2763 = vadd.f32 %v2551, %v2669
        %v2764 = vadd.f32 %v2552, %v2674
        %v2765 = vadd.f32 %v2553, %v2677
        %v2766 = vadd.f32 %v2554, %v2682
        %v2767 = vadd.f32 %v2555, %v2685
        %v2768 = vadd.f32 %v2556, %v2690
        %v2769 = vadd.f32 %v2557, %v2693
        %v2770 = vadd.f32 %v2558, %v2698
        %v2771 = vadd.f32 %v2559, %v2701
        %v2772 = vadd.f32 %v2560, %v2706
        %v2773 = vadd.f32 %v2561, %v2709
        %v2774 = vadd.f32 %v2562, %v2714
        %v2775 = vadd.f32 %v2563, %v2717
        %v2776 = vadd.f32 %v2564, %v2722
        %v2777 = vadd.f32 %v2565, %v2725
        %v2778 = vadd.f32 %v2566, %v2730
        %v2779 = vadd.f32 %v2567, %v2733
        %v2780 = vadd.f32 %v2568, %v2738
        %v2781 = vadd.f32 %v2569, %v2741
        %v2782 = vadd.f32 %v2570, %v2746
        %v2783 = vadd.f32 %v2571, %v2749
        %2784 = vst [vmem:[#allocation2] sm:$0xff] %v2752
        %2785 = vst [vmem:[#allocation2 + $0x8] sm:$0xff] %v2753
        %2786 = vst [vmem:[#allocation2 + $0x10] sm:$0xff] %v2754
        %2787 = vst [vmem:[#allocation2 + $0x18] sm:$0xff] %v2755
        %2788 = vst [vmem:[#allocation2 + $0x20] sm:$0xff] %v2756
        %2789 = vst [vmem:[#allocation2 + $0x28] sm:$0xff] %v2757
        %2790 = vst [vmem:[#allocation2 + $0x30] sm:$0xff] %v2758
        %2791 = vst [vmem:[#allocation2 + $0x38] sm:$0xff] %v2759
        %2792 = vst [vmem:[#allocation2 + $0x40] sm:$0xff] %v2760
        %2793 = vst [vmem:[#allocation2 + $0x48] sm:$0xff] %v2761
        %2794 = vst [vmem:[#allocation2 + $0x50] sm:$0xff] %v2762
        %2795 = vst [vmem:[#allocation2 + $0x58] sm:$0xff] %v2763
        %2796 = vst [vmem:[#allocation2 + $0x60] sm:$0xff] %v2764
        %2797 = vst [vmem:[#allocation2 + $0x68] sm:$0xff] %v2765
        %2798 = vst [vmem:[#allocation2 + $0x70] sm:$0xff] %v2766
        %2799 = vst [vmem:[#allocation2 + $0x78] sm:$0xff] %v2767
        %2800 = vst [vmem:[#allocation2 + $0x80] sm:$0xff] %v2768
        %2801 = vst [vmem:[#allocation2 + $0x88] sm:$0xff] %v2769
        %2802 = vst [vmem:[#allocation2 + $0x90] sm:$0xff] %v2770
        %2803 = vst [vmem:[#allocation2 + $0x98] sm:$0xff] %v2771
        %2804 = vst [vmem:[#allocation2 + $0xa0] sm:$0xff] %v2772
        %2805 = vst [vmem:[#allocation2 + $0xa8] sm:$0xff] %v2773
        %2806 = vst [vmem:[#allocation2 + $0xb0] sm:$0xff] %v2774
        %2807 = vst [vmem:[#allocation2 + $0xb8] sm:$0xff] %v2775
        %2808 = vst [vmem:[#allocation2 + $0xc0] sm:$0xff] %v2776
        %2809 = vst [vmem:[#allocation2 + $0xc8] sm:$0xff] %v2777
        %2810 = vst [vmem:[#allocation2 + $0xd0] sm:$0xff] %v2778
        %2811 = vst [vmem:[#allocation2 + $0xd8] sm:$0xff] %v2779
        %2812 = vst [vmem:[#allocation2 + $0xe0] sm:$0xff] %v2780
        %2813 = vst [vmem:[#allocation2 + $0xe8] sm:$0xff] %v2781
        %2814 = vst [vmem:[#allocation2 + $0xf0] sm:$0xff] %v2782
        %2815 = vst [vmem:[#allocation2 + $0xf8] sm:$0xff] %v2783
        %v2816 = vld [vmem:[#allocation2] sm:$0xff]
        %v2817 = vld [vmem:[#allocation2 + $0x8] sm:$0xff]
        %v2818 = vld [vmem:[#allocation2 + $0x10] sm:$0xff]
        %v2819 = vld [vmem:[#allocation2 + $0x18] sm:$0xff]
        %v2820 = vld [vmem:[#allocation2 + $0x20] sm:$0xff]
        %v2821 = vld [vmem:[#allocation2 + $0x28] sm:$0xff]
        %v2822 = vld [vmem:[#allocation2 + $0x30] sm:$0xff]
        %v2823 = vld [vmem:[#allocation2 + $0x38] sm:$0xff]
        %v2824 = vld [vmem:[#allocation2 + $0x40] sm:$0xff]
        %v2825 = vld [vmem:[#allocation2 + $0x48] sm:$0xff]
        %v2826 = vld [vmem:[#allocation2 + $0x50] sm:$0xff]
        %v2827 = vld [vmem:[#allocation2 + $0x58] sm:$0xff]
        %v2828 = vld [vmem:[#allocation2 + $0x60] sm:$0xff]
        %v2829 = vld [vmem:[#allocation2 + $0x68] sm:$0xff]
        %v2830 = vld [vmem:[#allocation2 + $0x70] sm:$0xff]
        %v2831 = vld [vmem:[#allocation2 + $0x78] sm:$0xff]
        %v2832 = vld [vmem:[#allocation2 + $0x80] sm:$0xff]
        %v2833 = vld [vmem:[#allocation2 + $0x88] sm:$0xff]
        %v2834 = vld [vmem:[#allocation2 + $0x90] sm:$0xff]
        %v2835 = vld [vmem:[#allocation2 + $0x98] sm:$0xff]
        %v2836 = vld [vmem:[#allocation2 + $0xa0] sm:$0xff]
        %v2837 = vld [vmem:[#allocation2 + $0xa8] sm:$0xff]
        %v2838 = vld [vmem:[#allocation2 + $0xb0] sm:$0xff]
        %v2839 = vld [vmem:[#allocation2 + $0xb8] sm:$0xff]
        %v2840 = vld [vmem:[#allocation2 + $0xc0] sm:$0xff]
        %v2841 = vld [vmem:[#allocation2 + $0xc8] sm:$0xff]
        %v2842 = vld [vmem:[#allocation2 + $0xd0] sm:$0xff]
        %v2843 = vld [vmem:[#allocation2 + $0xd8] sm:$0xff]
        %v2844 = vld [vmem:[#allocation2 + $0xe0] sm:$0xff]
        %v2845 = vld [vmem:[#allocation2 + $0xe8] sm:$0xff]
        %v2846 = vld [vmem:[#allocation2 + $0xf0] sm:$0xff]
        %v2847 = vld [vmem:[#allocation2 + $0xf8] sm:$0xff]
        %s2848 = scalar_lea.vmem %s1, 24
        %v2849 = vld [vmem:[%s2848] sm:$0xf]
        %v2852 = vunpack.c.l.b16 %v318
        %v2853 = vunpack.c.l.b16 %v319
        %v2854 = vpack.c.b16 %v2853, %v2852
        %v2856 = vsel %vm466, %v2854, 0
        %v2859 = vsel %vm515, %v2849, 0
        %2861 = vmatprep.subr.bf16.mxu0 0
        %2862 = vmatpush1.bf16.msra.mxu0 %v2859
        %2863 = vmatprep.subr.bf16.mxu0 0
        %2864 = vmatpush1.bf16.msra.mxu0 0
        %2865 = vmatprep.subr.bf16.mxu0 0
        %2866 = vmatpush1.bf16.msra.mxu0 0
        %2867 = vmatprep.subr.bf16.mxu0 0
        %2868 = vmatpush1.bf16.msra.mxu0 0
        %2869 = vmatprep.subr.bf16.mxu0 0
        %2870 = vmatpush1.bf16.msra.mxu0 0
        %2871 = vmatprep.subr.bf16.mxu0 0
        %2872 = vmatpush1.bf16.msra.mxu0 0
        %2873 = vmatprep.subr.bf16.mxu0 0
        %2874 = vmatpush1.bf16.msra.mxu0 0
        %2875 = vmatprep.subr.bf16.mxu0 0
        %2876 = vmatpush1.bf16.msra.mxu0 0
        %2877 = vmatprep.subr.bf16.mxu0 0
        %2878 = vmatpush1.bf16.msra.mxu0 0
        %2879 = vmatprep.subr.bf16.mxu0 0
        %2880 = vmatpush1.bf16.msra.mxu0 0
        %2881 = vmatprep.subr.bf16.mxu0 0
        %2882 = vmatpush1.bf16.msra.mxu0 0
        %2883 = vmatprep.subr.bf16.mxu0 0
        %2884 = vmatpush1.bf16.msra.mxu0 0
        %2885 = vmatprep.subr.bf16.mxu0 0
        %2886 = vmatpush1.bf16.msra.mxu0 0
        %2887 = vmatprep.subr.bf16.mxu0 0
        %2888 = vmatpush1.bf16.msra.mxu0 0
        %2889 = vmatprep.subr.bf16.mxu0 0
        %2890 = vmatpush1.bf16.msra.mxu0 0
        %2891 = vmatprep.subr.bf16.mxu0 0
        %2892 = vmatpush1.bf16.msra.mxu0 0
        %2893 = vmatprep.mubr.bf16.mxu0 0
        %2894 = vmatmul.mubr.bf16.gmra.mrb[0].mxu0 %v474
        %v2895 = vpop.f32.mrb[0].mxu0
        %v2896 = vadd.f32 0.0, %v2895
        %v2897 = vpop.f32.mrb[0].mxu0
        %v2898 = vpop.f32.mrb[0].mxu0
        %v2899 = vadd.f32 0.0, %v2898
        %v2900 = vpop.f32.mrb[0].mxu0
        %2901 = vmatprep.mubr.bf16.mxu0 0
        %2902 = vmatmul.mubr.bf16.gmra.mrb[0].mxu0 %v477
        %v2903 = vpop.f32.mrb[0].mxu0
        %v2904 = vadd.f32 0.0, %v2903
        %v2905 = vpop.f32.mrb[0].mxu0
        %v2906 = vpop.f32.mrb[0].mxu0
        %v2907 = vadd.f32 0.0, %v2906
        %v2908 = vpop.f32.mrb[0].mxu0
        %2909 = vmatprep.mubr.bf16.mxu0 0
        %2910 = vmatmul.mubr.bf16.gmra.mrb[0].mxu0 %v480
        %v2911 = vpop.f32.mrb[0].mxu0
        %v2912 = vadd.f32 0.0, %v2911
        %v2913 = vpop.f32.mrb[0].mxu0
        %v2914 = vpop.f32.mrb[0].mxu0
        %v2915 = vadd.f32 0.0, %v2914
        %v2916 = vpop.f32.mrb[0].mxu0
        %2917 = vmatprep.mubr.bf16.mxu0 0
        %2918 = vmatmul.mubr.bf16.gmra.mrb[0].mxu0 %v483
        %v2919 = vpop.f32.mrb[0].mxu0
        %v2920 = vadd.f32 0.0, %v2919
        %v2921 = vpop.f32.mrb[0].mxu0
        %v2922 = vpop.f32.mrb[0].mxu0
        %v2923 = vadd.f32 0.0, %v2922
        %v2924 = vpop.f32.mrb[0].mxu0
        %2925 = vmatprep.mubr.bf16.mxu0 0
        %2926 = vmatmul.mubr.bf16.gmra.mrb[0].mxu0 %v486
        %v2927 = vpop.f32.mrb[0].mxu0
        %v2928 = vadd.f32 0.0, %v2927
        %v2929 = vpop.f32.mrb[0].mxu0
        %v2930 = vpop.f32.mrb[0].mxu0
        %v2931 = vadd.f32 0.0, %v2930
        %v2932 = vpop.f32.mrb[0].mxu0
        %2933 = vmatprep.mubr.bf16.mxu0 0
        %2934 = vmatmul.mubr.bf16.gmra.mrb[0].mxu0 %v489
        %v2935 = vpop.f32.mrb[0].mxu0
        %v2936 = vadd.f32 0.0, %v2935
        %v2937 = vpop.f32.mrb[0].mxu0
        %v2938 = vpop.f32.mrb[0].mxu0
        %v2939 = vadd.f32 0.0, %v2938
        %v2940 = vpop.f32.mrb[0].mxu0
        %2941 = vmatprep.mubr.bf16.mxu0 0
        %2942 = vmatmul.mubr.bf16.gmra.mrb[0].mxu0 %v492
        %v2943 = vpop.f32.mrb[0].mxu0
        %v2944 = vadd.f32 0.0, %v2943
        %v2945 = vpop.f32.mrb[0].mxu0
        %v2946 = vpop.f32.mrb[0].mxu0
        %v2947 = vadd.f32 0.0, %v2946
        %v2948 = vpop.f32.mrb[0].mxu0
        %2949 = vmatprep.mubr.bf16.mxu0 0
        %2950 = vmatmul.mubr.bf16.gmra.mrb[0].mxu0 %v495
        %v2951 = vpop.f32.mrb[0].mxu0
        %v2952 = vadd.f32 0.0, %v2951
        %v2953 = vpop.f32.mrb[0].mxu0
        %v2954 = vpop.f32.mrb[0].mxu0
        %v2955 = vadd.f32 0.0, %v2954
        %v2956 = vpop.f32.mrb[0].mxu0
        %2957 = vmatprep.mubr.bf16.mxu0 0
        %2958 = vmatmul.mubr.bf16.gmra.mrb[0].mxu0 %v498
        %v2959 = vpop.f32.mrb[0].mxu0
        %v2960 = vadd.f32 0.0, %v2959
        %v2961 = vpop.f32.mrb[0].mxu0
        %v2962 = vpop.f32.mrb[0].mxu0
        %v2963 = vadd.f32 0.0, %v2962
        %v2964 = vpop.f32.mrb[0].mxu0
        %2965 = vmatprep.mubr.bf16.mxu0 0
        %2966 = vmatmul.mubr.bf16.gmra.mrb[0].mxu0 %v501
        %v2967 = vpop.f32.mrb[0].mxu0
        %v2968 = vadd.f32 0.0, %v2967
        %v2969 = vpop.f32.mrb[0].mxu0
        %v2970 = vpop.f32.mrb[0].mxu0
        %v2971 = vadd.f32 0.0, %v2970
        %v2972 = vpop.f32.mrb[0].mxu0
        %2973 = vmatprep.mubr.bf16.mxu0 0
        %2974 = vmatmul.mubr.bf16.gmra.mrb[0].mxu0 %v504
        %v2975 = vpop.f32.mrb[0].mxu0
        %v2976 = vadd.f32 0.0, %v2975
        %v2977 = vpop.f32.mrb[0].mxu0
        %v2978 = vpop.f32.mrb[0].mxu0
        %v2979 = vadd.f32 0.0, %v2978
        %v2980 = vpop.f32.mrb[0].mxu0
        %2981 = vmatprep.mubr.bf16.mxu0 0
        %2982 = vmatmul.mubr.bf16.gmra.mrb[0].mxu0 %v507
        %v2983 = vpop.f32.mrb[0].mxu0
        %v2984 = vadd.f32 0.0, %v2983
        %v2985 = vpop.f32.mrb[0].mxu0
        %v2986 = vpop.f32.mrb[0].mxu0
        %v2987 = vadd.f32 0.0, %v2986
        %v2988 = vpop.f32.mrb[0].mxu0
        %2989 = vmatprep.mubr.bf16.mxu0 0
        %2990 = vmatmul.mubr.bf16.gmra.mrb[0].mxu0 %v510
        %v2991 = vpop.f32.mrb[0].mxu0
        %v2992 = vadd.f32 0.0, %v2991
        %v2993 = vpop.f32.mrb[0].mxu0
        %v2994 = vpop.f32.mrb[0].mxu0
        %v2995 = vadd.f32 0.0, %v2994
        %v2996 = vpop.f32.mrb[0].mxu0
        %2997 = vmatprep.mubr.bf16.mxu0 0
        %2998 = vmatmul.mubr.bf16.gmra.mrb[0].mxu0 %v513
        %v2999 = vpop.f32.mrb[0].mxu0
        %v3000 = vadd.f32 0.0, %v2999
        %v3001 = vpop.f32.mrb[0].mxu0
        %v3002 = vpop.f32.mrb[0].mxu0
        %v3003 = vadd.f32 0.0, %v3002
        %v3004 = vpop.f32.mrb[0].mxu0
        %3005 = vmatprep.mubr.bf16.mxu0 0
        %3006 = vmatmul.mubr.bf16.gmra.mrb[0].mxu0 %v2018
        %v3007 = vpop.f32.mrb[0].mxu0
        %v3008 = vadd.f32 0.0, %v3007
        %v3009 = vpop.f32.mrb[0].mxu0
        %v3010 = vpop.f32.mrb[0].mxu0
        %v3011 = vadd.f32 0.0, %v3010
        %v3012 = vpop.f32.mrb[0].mxu0
        %3013 = vmatprep.mubr.bf16.mxu0 0
        %3014 = vmatmul.mubr.bf16.gmra.mrb[0].mxu0 %v2856
        %v3015 = vpop.f32.mrb[0].mxu0
        %v3016 = vadd.f32 0.0, %v3015
        %v3017 = vpop.f32.mrb[0].mxu0
        %v3018 = vpop.f32.mrb[0].mxu0
        %v3019 = vadd.f32 0.0, %v3018
        %v3020 = vpop.f32.mrb[0].mxu0
        %3021 = vdwg.mxu0
        %v3022 = vadd.f32 %v2816, %v2896
        %v3023 = vadd.f32 %v2817, %v2899
        %v3024 = vadd.f32 %v2818, %v2904
        %v3025 = vadd.f32 %v2819, %v2907
        %v3026 = vadd.f32 %v2820, %v2912
        %v3027 = vadd.f32 %v2821, %v2915
        %v3028 = vadd.f32 %v2822, %v2920
        %v3029 = vadd.f32 %v2823, %v2923
        %v3030 = vadd.f32 %v2824, %v2928
        %v3031 = vadd.f32 %v2825, %v2931
        %v3032 = vadd.f32 %v2826, %v2936
        %v3033 = vadd.f32 %v2827, %v2939
        %v3034 = vadd.f32 %v2828, %v2944
        %v3035 = vadd.f32 %v2829, %v2947
        %v3036 = vadd.f32 %v2830, %v2952
        %v3037 = vadd.f32 %v2831, %v2955
        %v3038 = vadd.f32 %v2832, %v2960
        %v3039 = vadd.f32 %v2833, %v2963
        %v3040 = vadd.f32 %v2834, %v2968
        %v3041 = vadd.f32 %v2835, %v2971
        %v3042 = vadd.f32 %v2836, %v2976
        %v3043 = vadd.f32 %v2837, %v2979
        %v3044 = vadd.f32 %v2838, %v2984
        %v3045 = vadd.f32 %v2839, %v2987
        %v3046 = vadd.f32 %v2840, %v2992
        %v3047 = vadd.f32 %v2841, %v2995
        %v3048 = vadd.f32 %v2842, %v3000
        %v3049 = vadd.f32 %v2843, %v3003
        %v3050 = vadd.f32 %v2844, %v3008
        %v3051 = vadd.f32 %v2845, %v3011
        %v3052 = vadd.f32 %v2846, %v3016
        %v3053 = vadd.f32 %v2847, %v3019
        %3054 = vst [vmem:[#allocation2] sm:$0xff] %v3022
        %3055 = vst [vmem:[#allocation2 + $0x8] sm:$0xff] %v3023
        %3056 = vst [vmem:[#allocation2 + $0x10] sm:$0xff] %v3024
        %3057 = vst [vmem:[#allocation2 + $0x18] sm:$0xff] %v3025
        %3058 = vst [vmem:[#allocation2 + $0x20] sm:$0xff] %v3026
        %3059 = vst [vmem:[#allocation2 + $0x28] sm:$0xff] %v3027
        %3060 = vst [vmem:[#allocation2 + $0x30] sm:$0xff] %v3028
        %3061 = vst [vmem:[#allocation2 + $0x38] sm:$0xff] %v3029
        %3062 = vst [vmem:[#allocation2 + $0x40] sm:$0xff] %v3030
        %3063 = vst [vmem:[#allocation2 + $0x48] sm:$0xff] %v3031
        %3064 = vst [vmem:[#allocation2 + $0x50] sm:$0xff] %v3032
        %3065 = vst [vmem:[#allocation2 + $0x58] sm:$0xff] %v3033
        %3066 = vst [vmem:[#allocation2 + $0x60] sm:$0xff] %v3034
        %3067 = vst [vmem:[#allocation2 + $0x68] sm:$0xff] %v3035
        %3068 = vst [vmem:[#allocation2 + $0x70] sm:$0xff] %v3036
        %3069 = vst [vmem:[#allocation2 + $0x78] sm:$0xff] %v3037
        %3070 = vst [vmem:[#allocation2 + $0x80] sm:$0xff] %v3038
        %3071 = vst [vmem:[#allocation2 + $0x88] sm:$0xff] %v3039
        %3072 = vst [vmem:[#allocation2 + $0x90] sm:$0xff] %v3040
        %3073 = vst [vmem:[#allocation2 + $0x98] sm:$0xff] %v3041
        %3074 = vst [vmem:[#allocation2 + $0xa0] sm:$0xff] %v3042
        %3075 = vst [vmem:[#allocation2 + $0xa8] sm:$0xff] %v3043
        %3076 = vst [vmem:[#allocation2 + $0xb0] sm:$0xff] %v3044
        %3077 = vst [vmem:[#allocation2 + $0xb8] sm:$0xff] %v3045
        %3078 = vst [vmem:[#allocation2 + $0xc0] sm:$0xff] %v3046
        %3079 = vst [vmem:[#allocation2 + $0xc8] sm:$0xff] %v3047
        %3080 = vst [vmem:[#allocation2 + $0xd0] sm:$0xff] %v3048
        %3081 = vst [vmem:[#allocation2 + $0xd8] sm:$0xff] %v3049
        %3082 = vst [vmem:[#allocation2 + $0xe0] sm:$0xff] %v3050
        %3083 = vst [vmem:[#allocation2 + $0xe8] sm:$0xff] %v3051
        %3084 = vst [vmem:[#allocation2 + $0xf0] sm:$0xff] %v3052
        %3085 = vst [vmem:[#allocation2 + $0xf8] sm:$0xff] %v3053
        %v3086 = vld [vmem:[#allocation2] sm:$0xff]
        %v3087 = vld [vmem:[#allocation2 + $0x8] sm:$0xff]
        %v3088 = vld [vmem:[#allocation2 + $0x10] sm:$0xff]
        %v3089 = vld [vmem:[#allocation2 + $0x18] sm:$0xff]
        %v3090 = vld [vmem:[#allocation2 + $0x20] sm:$0xff]
        %v3091 = vld [vmem:[#allocation2 + $0x28] sm:$0xff]
        %v3092 = vld [vmem:[#allocation2 + $0x30] sm:$0xff]
        %v3093 = vld [vmem:[#allocation2 + $0x38] sm:$0xff]
        %v3094 = vld [vmem:[#allocation2 + $0x40] sm:$0xff]
        %v3095 = vld [vmem:[#allocation2 + $0x48] sm:$0xff]
        %v3096 = vld [vmem:[#allocation2 + $0x50] sm:$0xff]
        %v3097 = vld [vmem:[#allocation2 + $0x58] sm:$0xff]
        %v3098 = vld [vmem:[#allocation2 + $0x60] sm:$0xff]
        %v3099 = vld [vmem:[#allocation2 + $0x68] sm:$0xff]
        %v3100 = vld [vmem:[#allocation2 + $0x70] sm:$0xff]
        %v3101 = vld [vmem:[#allocation2 + $0x78] sm:$0xff]
        %v3102 = vld [vmem:[#allocation2 + $0x80] sm:$0xff]
        %v3103 = vld [vmem:[#allocation2 + $0x88] sm:$0xff]
        %v3104 = vld [vmem:[#allocation2 + $0x90] sm:$0xff]
        %v3105 = vld [vmem:[#allocation2 + $0x98] sm:$0xff]
        %v3106 = vld [vmem:[#allocation2 + $0xa0] sm:$0xff]
        %v3107 = vld [vmem:[#allocation2 + $0xa8] sm:$0xff]
        %v3108 = vld [vmem:[#allocation2 + $0xb0] sm:$0xff]
        %v3109 = vld [vmem:[#allocation2 + $0xb8] sm:$0xff]
        %v3110 = vld [vmem:[#allocation2 + $0xc0] sm:$0xff]
        %v3111 = vld [vmem:[#allocation2 + $0xc8] sm:$0xff]
        %v3112 = vld [vmem:[#allocation2 + $0xd0] sm:$0xff]
        %v3113 = vld [vmem:[#allocation2 + $0xd8] sm:$0xff]
        %v3114 = vld [vmem:[#allocation2 + $0xe0] sm:$0xff]
        %v3115 = vld [vmem:[#allocation2 + $0xe8] sm:$0xff]
        %v3116 = vld [vmem:[#allocation2 + $0xf0] sm:$0xff]
        %v3117 = vld [vmem:[#allocation2 + $0xf8] sm:$0xff]
        %v3119 = vshrl.u32 %v318, 16
        %v3121 = vrot.slane %v3119, 4
        %v3122 = vshll.u32 %v318, 16
        %v3124 = vrot.slane %v3122, 5
        %v3125 = vor.u32 %v3121, %v3124
        %v3126 = vrot.slane %v3125, 4
        %v3128 = vshll.u32 %v319, 16
        %v3130 = vrot.slane %v3128, 5
        %v3131 = vsel %vm778, %v3126, %v3130
        %v3132 = vshrl.u32 %v319, 16
        %v3134 = vrot.slane %v3132, 4
        %v3135 = vor.u32 %v3134, %v3130
        %v3136 = vrot.slane %v3135, 4
        %v3138 = vshll.u32 %v320, 16
        %v3140 = vrot.slane %v3138, 5
        %v3141 = vsel %vm778, %v3136, %v3140
        %s3142 = scalar_lea.vmem %s1, 28
        %v3143 = vld [vmem:[%s3142] sm:$0xf]
        %v3144 = vunpack.c.l.b16 %v3131
        %v3145 = vunpack.c.l.b16 %v3141
        %v3146 = vpack.c.b16 %v3145, %v3144
        %v3148 = vsel %vm466, %v3146, 0
        %v3151 = vsel %vm515, %v3143, 0
        %3153 = vmatprep.subr.bf16.mxu0 0
        %3154 = vmatpush1.bf16.msra.mxu0 %v3151
        %3155 = vmatprep.subr.bf16.mxu0 0
        %3156 = vmatpush1.bf16.msra.mxu0 0
        %3157 = vmatprep.subr.bf16.mxu0 0
        %3158 = vmatpush1.bf16.msra.mxu0 0
        %3159 = vmatprep.subr.bf16.mxu0 0
        %3160 = vmatpush1.bf16.msra.mxu0 0
        %3161 = vmatprep.subr.bf16.mxu0 0
        %3162 = vmatpush1.bf16.msra.mxu0 0
        %3163 = vmatprep.subr.bf16.mxu0 0
        %3164 = vmatpush1.bf16.msra.mxu0 0
        %3165 = vmatprep.subr.bf16.mxu0 0
        %3166 = vmatpush1.bf16.msra.mxu0 0
        %3167 = vmatprep.subr.bf16.mxu0 0
        %3168 = vmatpush1.bf16.msra.mxu0 0
        %3169 = vmatprep.subr.bf16.mxu0 0
        %3170 = vmatpush1.bf16.msra.mxu0 0
        %3171 = vmatprep.subr.bf16.mxu0 0
        %3172 = vmatpush1.bf16.msra.mxu0 0
        %3173 = vmatprep.subr.bf16.mxu0 0
        %3174 = vmatpush1.bf16.msra.mxu0 0
        %3175 = vmatprep.subr.bf16.mxu0 0
        %3176 = vmatpush1.bf16.msra.mxu0 0
        %3177 = vmatprep.subr.bf16.mxu0 0
        %3178 = vmatpush1.bf16.msra.mxu0 0
        %3179 = vmatprep.subr.bf16.mxu0 0
        %3180 = vmatpush1.bf16.msra.mxu0 0
        %3181 = vmatprep.subr.bf16.mxu0 0
        %3182 = vmatpush1.bf16.msra.mxu0 0
        %3183 = vmatprep.subr.bf16.mxu0 0
        %3184 = vmatpush1.bf16.msra.mxu0 0
        %3185 = vmatprep.mubr.bf16.mxu0 0
        %3186 = vmatmul.mubr.bf16.gmra.mrb[0].mxu0 %v1220
        %v3187 = vpop.f32.mrb[0].mxu0
        %v3188 = vadd.f32 0.0, %v3187
        %v3189 = vpop.f32.mrb[0].mxu0
        %v3190 = vpop.f32.mrb[0].mxu0
        %v3191 = vadd.f32 0.0, %v3190
        %v3192 = vpop.f32.mrb[0].mxu0
        %3193 = vmatprep.mubr.bf16.mxu0 0
        %3194 = vmatmul.mubr.bf16.gmra.mrb[0].mxu0 %v1223
        %v3195 = vpop.f32.mrb[0].mxu0
        %v3196 = vadd.f32 0.0, %v3195
        %v3197 = vpop.f32.mrb[0].mxu0
        %v3198 = vpop.f32.mrb[0].mxu0
        %v3199 = vadd.f32 0.0, %v3198
        %v3200 = vpop.f32.mrb[0].mxu0
        %3201 = vmatprep.mubr.bf16.mxu0 0
        %3202 = vmatmul.mubr.bf16.gmra.mrb[0].mxu0 %v1226
        %v3203 = vpop.f32.mrb[0].mxu0
        %v3204 = vadd.f32 0.0, %v3203
        %v3205 = vpop.f32.mrb[0].mxu0
        %v3206 = vpop.f32.mrb[0].mxu0
        %v3207 = vadd.f32 0.0, %v3206
        %v3208 = vpop.f32.mrb[0].mxu0
        %3209 = vmatprep.mubr.bf16.mxu0 0
        %3210 = vmatmul.mubr.bf16.gmra.mrb[0].mxu0 %v1229
        %v3211 = vpop.f32.mrb[0].mxu0
        %v3212 = vadd.f32 0.0, %v3211
        %v3213 = vpop.f32.mrb[0].mxu0
        %v3214 = vpop.f32.mrb[0].mxu0
        %v3215 = vadd.f32 0.0, %v3214
        %v3216 = vpop.f32.mrb[0].mxu0
        %3217 = vmatprep.mubr.bf16.mxu0 0
        %3218 = vmatmul.mubr.bf16.gmra.mrb[0].mxu0 %v1232
        %v3219 = vpop.f32.mrb[0].mxu0
        %v3220 = vadd.f32 0.0, %v3219
        %v3221 = vpop.f32.mrb[0].mxu0
        %v3222 = vpop.f32.mrb[0].mxu0
        %v3223 = vadd.f32 0.0, %v3222
        %v3224 = vpop.f32.mrb[0].mxu0
        %3225 = vmatprep.mubr.bf16.mxu0 0
        %3226 = vmatmul.mubr.bf16.gmra.mrb[0].mxu0 %v1235
        %v3227 = vpop.f32.mrb[0].mxu0
        %v3228 = vadd.f32 0.0, %v3227
        %v3229 = vpop.f32.mrb[0].mxu0
        %v3230 = vpop.f32.mrb[0].mxu0
        %v3231 = vadd.f32 0.0, %v3230
        %v3232 = vpop.f32.mrb[0].mxu0
        %3233 = vmatprep.mubr.bf16.mxu0 0
        %3234 = vmatmul.mubr.bf16.gmra.mrb[0].mxu0 %v1238
        %v3235 = vpop.f32.mrb[0].mxu0
        %v3236 = vadd.f32 0.0, %v3235
        %v3237 = vpop.f32.mrb[0].mxu0
        %v3238 = vpop.f32.mrb[0].mxu0
        %v3239 = vadd.f32 0.0, %v3238
        %v3240 = vpop.f32.mrb[0].mxu0
        %3241 = vmatprep.mubr.bf16.mxu0 0
        %3242 = vmatmul.mubr.bf16.gmra.mrb[0].mxu0 %v1241
        %v3243 = vpop.f32.mrb[0].mxu0
        %v3244 = vadd.f32 0.0, %v3243
        %v3245 = vpop.f32.mrb[0].mxu0
        %v3246 = vpop.f32.mrb[0].mxu0
        %v3247 = vadd.f32 0.0, %v3246
        %v3248 = vpop.f32.mrb[0].mxu0
        %3249 = vmatprep.mubr.bf16.mxu0 0
        %3250 = vmatmul.mubr.bf16.gmra.mrb[0].mxu0 %v1244
        %v3251 = vpop.f32.mrb[0].mxu0
        %v3252 = vadd.f32 0.0, %v3251
        %v3253 = vpop.f32.mrb[0].mxu0
        %v3254 = vpop.f32.mrb[0].mxu0
        %v3255 = vadd.f32 0.0, %v3254
        %v3256 = vpop.f32.mrb[0].mxu0
        %3257 = vmatprep.mubr.bf16.mxu0 0
        %3258 = vmatmul.mubr.bf16.gmra.mrb[0].mxu0 %v1247
        %v3259 = vpop.f32.mrb[0].mxu0
        %v3260 = vadd.f32 0.0, %v3259
        %v3261 = vpop.f32.mrb[0].mxu0
        %v3262 = vpop.f32.mrb[0].mxu0
        %v3263 = vadd.f32 0.0, %v3262
        %v3264 = vpop.f32.mrb[0].mxu0
        %3265 = vmatprep.mubr.bf16.mxu0 0
        %3266 = vmatmul.mubr.bf16.gmra.mrb[0].mxu0 %v1250
        %v3267 = vpop.f32.mrb[0].mxu0
        %v3268 = vadd.f32 0.0, %v3267
        %v3269 = vpop.f32.mrb[0].mxu0
        %v3270 = vpop.f32.mrb[0].mxu0
        %v3271 = vadd.f32 0.0, %v3270
        %v3272 = vpop.f32.mrb[0].mxu0
        %3273 = vmatprep.mubr.bf16.mxu0 0
        %3274 = vmatmul.mubr.bf16.gmra.mrb[0].mxu0 %v1253
        %v3275 = vpop.f32.mrb[0].mxu0
        %v3276 = vadd.f32 0.0, %v3275
        %v3277 = vpop.f32.mrb[0].mxu0
        %v3278 = vpop.f32.mrb[0].mxu0
        %v3279 = vadd.f32 0.0, %v3278
        %v3280 = vpop.f32.mrb[0].mxu0
        %3281 = vmatprep.mubr.bf16.mxu0 0
        %3282 = vmatmul.mubr.bf16.gmra.mrb[0].mxu0 %v1256
        %v3283 = vpop.f32.mrb[0].mxu0
        %v3284 = vadd.f32 0.0, %v3283
        %v3285 = vpop.f32.mrb[0].mxu0
        %v3286 = vpop.f32.mrb[0].mxu0
        %v3287 = vadd.f32 0.0, %v3286
        %v3288 = vpop.f32.mrb[0].mxu0
        %3289 = vmatprep.mubr.bf16.mxu0 0
        %3290 = vmatmul.mubr.bf16.gmra.mrb[0].mxu0 %v1259
        %v3291 = vpop.f32.mrb[0].mxu0
        %v3292 = vadd.f32 0.0, %v3291
        %v3293 = vpop.f32.mrb[0].mxu0
        %v3294 = vpop.f32.mrb[0].mxu0
        %v3295 = vadd.f32 0.0, %v3294
        %v3296 = vpop.f32.mrb[0].mxu0
        %3297 = vmatprep.mubr.bf16.mxu0 0
        %3298 = vmatmul.mubr.bf16.gmra.mrb[0].mxu0 %v2310
        %v3299 = vpop.f32.mrb[0].mxu0
        %v3300 = vadd.f32 0.0, %v3299
        %v3301 = vpop.f32.mrb[0].mxu0
        %v3302 = vpop.f32.mrb[0].mxu0
        %v3303 = vadd.f32 0.0, %v3302
        %v3304 = vpop.f32.mrb[0].mxu0
        %3305 = vmatprep.mubr.bf16.mxu0 0
        %3306 = vmatmul.mubr.bf16.gmra.mrb[0].mxu0 %v3148
        %v3307 = vpop.f32.mrb[0].mxu0
        %v3308 = vadd.f32 0.0, %v3307
        %v3309 = vpop.f32.mrb[0].mxu0
        %v3310 = vpop.f32.mrb[0].mxu0
        %v3311 = vadd.f32 0.0, %v3310
        %v3312 = vpop.f32.mrb[0].mxu0
        %3313 = vdwg.mxu0
        %v3314 = vadd.f32 %v3086, %v3188
        %v3315 = vadd.f32 %v3087, %v3191
        %v3316 = vadd.f32 %v3088, %v3196
        %v3317 = vadd.f32 %v3089, %v3199
        %v3318 = vadd.f32 %v3090, %v3204
        %v3319 = vadd.f32 %v3091, %v3207
        %v3320 = vadd.f32 %v3092, %v3212
        %v3321 = vadd.f32 %v3093, %v3215
        %v3322 = vadd.f32 %v3094, %v3220
        %v3323 = vadd.f32 %v3095, %v3223
        %v3324 = vadd.f32 %v3096, %v3228
        %v3325 = vadd.f32 %v3097, %v3231
        %v3326 = vadd.f32 %v3098, %v3236
        %v3327 = vadd.f32 %v3099, %v3239
        %v3328 = vadd.f32 %v3100, %v3244
        %v3329 = vadd.f32 %v3101, %v3247
        %v3330 = vadd.f32 %v3102, %v3252
        %v3331 = vadd.f32 %v3103, %v3255
        %v3332 = vadd.f32 %v3104, %v3260
        %v3333 = vadd.f32 %v3105, %v3263
        %v3334 = vadd.f32 %v3106, %v3268
        %v3335 = vadd.f32 %v3107, %v3271
        %v3336 = vadd.f32 %v3108, %v3276
        %v3337 = vadd.f32 %v3109, %v3279
        %v3338 = vadd.f32 %v3110, %v3284
        %v3339 = vadd.f32 %v3111, %v3287
        %v3340 = vadd.f32 %v3112, %v3292
        %v3341 = vadd.f32 %v3113, %v3295
        %v3342 = vadd.f32 %v3114, %v3300
        %v3343 = vadd.f32 %v3115, %v3303
        %v3344 = vadd.f32 %v3116, %v3308
        %v3345 = vadd.f32 %v3117, %v3311
        %3346 = vst [vmem:[#allocation2] sm:$0xff] %v3314
        %3347 = vst [vmem:[#allocation2 + $0x8] sm:$0xff] %v3315
        %3348 = vst [vmem:[#allocation2 + $0x10] sm:$0xff] %v3316
        %3349 = vst [vmem:[#allocation2 + $0x18] sm:$0xff] %v3317
        %3350 = vst [vmem:[#allocation2 + $0x20] sm:$0xff] %v3318
        %3351 = vst [vmem:[#allocation2 + $0x28] sm:$0xff] %v3319
        %3352 = vst [vmem:[#allocation2 + $0x30] sm:$0xff] %v3320
        %3353 = vst [vmem:[#allocation2 + $0x38] sm:$0xff] %v3321
        %3354 = vst [vmem:[#allocation2 + $0x40] sm:$0xff] %v3322
        %3355 = vst [vmem:[#allocation2 + $0x48] sm:$0xff] %v3323
        %3356 = vst [vmem:[#allocation2 + $0x50] sm:$0xff] %v3324
        %3357 = vst [vmem:[#allocation2 + $0x58] sm:$0xff] %v3325
        %3358 = vst [vmem:[#allocation2 + $0x60] sm:$0xff] %v3326
        %3359 = vst [vmem:[#allocation2 + $0x68] sm:$0xff] %v3327
        %3360 = vst [vmem:[#allocation2 + $0x70] sm:$0xff] %v3328
        %3361 = vst [vmem:[#allocation2 + $0x78] sm:$0xff] %v3329
        %3362 = vst [vmem:[#allocation2 + $0x80] sm:$0xff] %v3330
        %3363 = vst [vmem:[#allocation2 + $0x88] sm:$0xff] %v3331
        %3364 = vst [vmem:[#allocation2 + $0x90] sm:$0xff] %v3332
        %3365 = vst [vmem:[#allocation2 + $0x98] sm:$0xff] %v3333
        %3366 = vst [vmem:[#allocation2 + $0xa0] sm:$0xff] %v3334
        %3367 = vst [vmem:[#allocation2 + $0xa8] sm:$0xff] %v3335
        %3368 = vst [vmem:[#allocation2 + $0xb0] sm:$0xff] %v3336
        %3369 = vst [vmem:[#allocation2 + $0xb8] sm:$0xff] %v3337
        %3370 = vst [vmem:[#allocation2 + $0xc0] sm:$0xff] %v3338
        %3371 = vst [vmem:[#allocation2 + $0xc8] sm:$0xff] %v3339
        %3372 = vst [vmem:[#allocation2 + $0xd0] sm:$0xff] %v3340
        %3373 = vst [vmem:[#allocation2 + $0xd8] sm:$0xff] %v3341
        %3374 = vst [vmem:[#allocation2 + $0xe0] sm:$0xff] %v3342
        %3375 = vst [vmem:[#allocation2 + $0xe8] sm:$0xff] %v3343
        %3376 = vst [vmem:[#allocation2 + $0xf0] sm:$0xff] %v3344
        %3377 = vst [vmem:[#allocation2 + $0xf8] sm:$0xff] %v3345
        %v3378 = vld [vmem:[#allocation2] sm:$0xff]
        %v3379 = vld [vmem:[#allocation2 + $0x8] sm:$0xff]
        %v3380 = vld [vmem:[#allocation2 + $0x10] sm:$0xff]
        %v3381 = vld [vmem:[#allocation2 + $0x18] sm:$0xff]
        %v3382 = vld [vmem:[#allocation2 + $0x20] sm:$0xff]
        %v3383 = vld [vmem:[#allocation2 + $0x28] sm:$0xff]
        %v3384 = vld [vmem:[#allocation2 + $0x30] sm:$0xff]
        %v3385 = vld [vmem:[#allocation2 + $0x38] sm:$0xff]
        %v3386 = vld [vmem:[#allocation2 + $0x40] sm:$0xff]
        %v3387 = vld [vmem:[#allocation2 + $0x48] sm:$0xff]
        %v3388 = vld [vmem:[#allocation2 + $0x50] sm:$0xff]
        %v3389 = vld [vmem:[#allocation2 + $0x58] sm:$0xff]
        %v3390 = vld [vmem:[#allocation2 + $0x60] sm:$0xff]
        %v3391 = vld [vmem:[#allocation2 + $0x68] sm:$0xff]
        %v3392 = vld [vmem:[#allocation2 + $0x70] sm:$0xff]
        %v3393 = vld [vmem:[#allocation2 + $0x78] sm:$0xff]
        %v3394 = vld [vmem:[#allocation2 + $0x80] sm:$0xff]
        %v3395 = vld [vmem:[#allocation2 + $0x88] sm:$0xff]
        %v3396 = vld [vmem:[#allocation2 + $0x90] sm:$0xff]
        %v3397 = vld [vmem:[#allocation2 + $0x98] sm:$0xff]
        %v3398 = vld [vmem:[#allocation2 + $0xa0] sm:$0xff]
        %v3399 = vld [vmem:[#allocation2 + $0xa8] sm:$0xff]
        %v3400 = vld [vmem:[#allocation2 + $0xb0] sm:$0xff]
        %v3401 = vld [vmem:[#allocation2 + $0xb8] sm:$0xff]
        %v3402 = vld [vmem:[#allocation2 + $0xc0] sm:$0xff]
        %v3403 = vld [vmem:[#allocation2 + $0xc8] sm:$0xff]
        %v3404 = vld [vmem:[#allocation2 + $0xd0] sm:$0xff]
        %v3405 = vld [vmem:[#allocation2 + $0xd8] sm:$0xff]
        %v3406 = vld [vmem:[#allocation2 + $0xe0] sm:$0xff]
        %v3407 = vld [vmem:[#allocation2 + $0xe8] sm:$0xff]
        %v3408 = vld [vmem:[#allocation2 + $0xf0] sm:$0xff]
        %v3409 = vld [vmem:[#allocation2 + $0xf8] sm:$0xff]
        %v3411 = vrot.slane %v318, 5
        %v3412 = vrot.slane %v3411, 4
        %v3413 = vrot.slane %v319, 5
        %v3414 = vsel %vm1539, %v3412, %v3413
        %v3415 = vrot.slane %v3413, 4
        %v3416 = vrot.slane %v320, 5
        %v3417 = vsel %vm1539, %v3415, %v3416
        %s3418 = scalar_lea.vmem %s1, 32
        %v3419 = vld [vmem:[%s3418] sm:$0xf]
        %v3420 = vunpack.c.l.b16 %v3414
        %v3421 = vunpack.c.l.b16 %v3417
        %v3422 = vpack.c.b16 %v3421, %v3420
        %v3424 = vsel %vm466, %v3422, 0
        %v3427 = vsel %vm515, %v3419, 0
        %3429 = vmatprep.subr.bf16.mxu0 0
        %3430 = vmatpush1.bf16.msra.mxu0 %v3427
        %3431 = vmatprep.subr.bf16.mxu0 0
        %3432 = vmatpush1.bf16.msra.mxu0 0
        %3433 = vmatprep.subr.bf16.mxu0 0
        %3434 = vmatpush1.bf16.msra.mxu0 0
        %3435 = vmatprep.subr.bf16.mxu0 0
        %3436 = vmatpush1.bf16.msra.mxu0 0
        %3437 = vmatprep.subr.bf16.mxu0 0
        %3438 = vmatpush1.bf16.msra.mxu0 0
        %3439 = vmatprep.subr.bf16.mxu0 0
        %3440 = vmatpush1.bf16.msra.mxu0 0
        %3441 = vmatprep.subr.bf16.mxu0 0
        %3442 = vmatpush1.bf16.msra.mxu0 0
        %3443 = vmatprep.subr.bf16.mxu0 0
        %3444 = vmatpush1.bf16.msra.mxu0 0
        %3445 = vmatprep.subr.bf16.mxu0 0
        %3446 = vmatpush1.bf16.msra.mxu0 0
        %3447 = vmatprep.subr.bf16.mxu0 0
        %3448 = vmatpush1.bf16.msra.mxu0 0
        %3449 = vmatprep.subr.bf16.mxu0 0
        %3450 = vmatpush1.bf16.msra.mxu0 0
        %3451 = vmatprep.subr.bf16.mxu0 0
        %3452 = vmatpush1.bf16.msra.mxu0 0
        %3453 = vmatprep.subr.bf16.mxu0 0
        %3454 = vmatpush1.bf16.msra.mxu0 0
        %3455 = vmatprep.subr.bf16.mxu0 0
        %3456 = vmatpush1.bf16.msra.mxu0 0
        %3457 = vmatprep.subr.bf16.mxu0 0
        %3458 = vmatpush1.bf16.msra.mxu0 0
        %3459 = vmatprep.subr.bf16.mxu0 0
        %3460 = vmatpush1.bf16.msra.mxu0 0
        %3461 = vmatprep.mubr.bf16.mxu0 0
        %3462 = vmatmul.mubr.bf16.gmra.mrb[0].mxu0 %v1709
        %v3463 = vpop.f32.mrb[0].mxu0
        %v3464 = vadd.f32 0.0, %v3463
        %v3465 = vpop.f32.mrb[0].mxu0
        %v3466 = vpop.f32.mrb[0].mxu0
        %v3467 = vadd.f32 0.0, %v3466
        %v3468 = vpop.f32.mrb[0].mxu0
        %3469 = vmatprep.mubr.bf16.mxu0 0
        %3470 = vmatmul.mubr.bf16.gmra.mrb[0].mxu0 %v1712
        %v3471 = vpop.f32.mrb[0].mxu0
        %v3472 = vadd.f32 0.0, %v3471
        %v3473 = vpop.f32.mrb[0].mxu0
        %v3474 = vpop.f32.mrb[0].mxu0
        %v3475 = vadd.f32 0.0, %v3474
        %v3476 = vpop.f32.mrb[0].mxu0
        %3477 = vmatprep.mubr.bf16.mxu0 0
        %3478 = vmatmul.mubr.bf16.gmra.mrb[0].mxu0 %v1715
        %v3479 = vpop.f32.mrb[0].mxu0
        %v3480 = vadd.f32 0.0, %v3479
        %v3481 = vpop.f32.mrb[0].mxu0
        %v3482 = vpop.f32.mrb[0].mxu0
        %v3483 = vadd.f32 0.0, %v3482
        %v3484 = vpop.f32.mrb[0].mxu0
        %3485 = vmatprep.mubr.bf16.mxu0 0
        %3486 = vmatmul.mubr.bf16.gmra.mrb[0].mxu0 %v1718
        %v3487 = vpop.f32.mrb[0].mxu0
        %v3488 = vadd.f32 0.0, %v3487
        %v3489 = vpop.f32.mrb[0].mxu0
        %v3490 = vpop.f32.mrb[0].mxu0
        %v3491 = vadd.f32 0.0, %v3490
        %v3492 = vpop.f32.mrb[0].mxu0
        %3493 = vmatprep.mubr.bf16.mxu0 0
        %3494 = vmatmul.mubr.bf16.gmra.mrb[0].mxu0 %v1721
        %v3495 = vpop.f32.mrb[0].mxu0
        %v3496 = vadd.f32 0.0, %v3495
        %v3497 = vpop.f32.mrb[0].mxu0
        %v3498 = vpop.f32.mrb[0].mxu0
        %v3499 = vadd.f32 0.0, %v3498
        %v3500 = vpop.f32.mrb[0].mxu0
        %3501 = vmatprep.mubr.bf16.mxu0 0
        %3502 = vmatmul.mubr.bf16.gmra.mrb[0].mxu0 %v1724
        %v3503 = vpop.f32.mrb[0].mxu0
        %v3504 = vadd.f32 0.0, %v3503
        %v3505 = vpop.f32.mrb[0].mxu0
        %v3506 = vpop.f32.mrb[0].mxu0
        %v3507 = vadd.f32 0.0, %v3506
        %v3508 = vpop.f32.mrb[0].mxu0
        %3509 = vmatprep.mubr.bf16.mxu0 0
        %3510 = vmatmul.mubr.bf16.gmra.mrb[0].mxu0 %v1727
        %v3511 = vpop.f32.mrb[0].mxu0
        %v3512 = vadd.f32 0.0, %v3511
        %v3513 = vpop.f32.mrb[0].mxu0
        %v3514 = vpop.f32.mrb[0].mxu0
        %v3515 = vadd.f32 0.0, %v3514
        %v3516 = vpop.f32.mrb[0].mxu0
        %3517 = vmatprep.mubr.bf16.mxu0 0
        %3518 = vmatmul.mubr.bf16.gmra.mrb[0].mxu0 %v1730
        %v3519 = vpop.f32.mrb[0].mxu0
        %v3520 = vadd.f32 0.0, %v3519
        %v3521 = vpop.f32.mrb[0].mxu0
        %v3522 = vpop.f32.mrb[0].mxu0
        %v3523 = vadd.f32 0.0, %v3522
        %v3524 = vpop.f32.mrb[0].mxu0
        %3525 = vmatprep.mubr.bf16.mxu0 0
        %3526 = vmatmul.mubr.bf16.gmra.mrb[0].mxu0 %v1733
        %v3527 = vpop.f32.mrb[0].mxu0
        %v3528 = vadd.f32 0.0, %v3527
        %v3529 = vpop.f32.mrb[0].mxu0
        %v3530 = vpop.f32.mrb[0].mxu0
        %v3531 = vadd.f32 0.0, %v3530
        %v3532 = vpop.f32.mrb[0].mxu0
        %3533 = vmatprep.mubr.bf16.mxu0 0
        %3534 = vmatmul.mubr.bf16.gmra.mrb[0].mxu0 %v1736
        %v3535 = vpop.f32.mrb[0].mxu0
        %v3536 = vadd.f32 0.0, %v3535
        %v3537 = vpop.f32.mrb[0].mxu0
        %v3538 = vpop.f32.mrb[0].mxu0
        %v3539 = vadd.f32 0.0, %v3538
        %v3540 = vpop.f32.mrb[0].mxu0
        %3541 = vmatprep.mubr.bf16.mxu0 0
        %3542 = vmatmul.mubr.bf16.gmra.mrb[0].mxu0 %v1739
        %v3543 = vpop.f32.mrb[0].mxu0
        %v3544 = vadd.f32 0.0, %v3543
        %v3545 = vpop.f32.mrb[0].mxu0
        %v3546 = vpop.f32.mrb[0].mxu0
        %v3547 = vadd.f32 0.0, %v3546
        %v3548 = vpop.f32.mrb[0].mxu0
        %3549 = vmatprep.mubr.bf16.mxu0 0
        %3550 = vmatmul.mubr.bf16.gmra.mrb[0].mxu0 %v1742
        %v3551 = vpop.f32.mrb[0].mxu0
        %v3552 = vadd.f32 0.0, %v3551
        %v3553 = vpop.f32.mrb[0].mxu0
        %v3554 = vpop.f32.mrb[0].mxu0
        %v3555 = vadd.f32 0.0, %v3554
        %v3556 = vpop.f32.mrb[0].mxu0
        %3557 = vmatprep.mubr.bf16.mxu0 0
        %3558 = vmatmul.mubr.bf16.gmra.mrb[0].mxu0 %v1745
        %v3559 = vpop.f32.mrb[0].mxu0
        %v3560 = vadd.f32 0.0, %v3559
        %v3561 = vpop.f32.mrb[0].mxu0
        %v3562 = vpop.f32.mrb[0].mxu0
        %v3563 = vadd.f32 0.0, %v3562
        %v3564 = vpop.f32.mrb[0].mxu0
        %3565 = vmatprep.mubr.bf16.mxu0 0
        %3566 = vmatmul.mubr.bf16.gmra.mrb[0].mxu0 %v1748
        %v3567 = vpop.f32.mrb[0].mxu0
        %v3568 = vadd.f32 0.0, %v3567
        %v3569 = vpop.f32.mrb[0].mxu0
        %v3570 = vpop.f32.mrb[0].mxu0
        %v3571 = vadd.f32 0.0, %v3570
        %v3572 = vpop.f32.mrb[0].mxu0
        %3573 = vmatprep.mubr.bf16.mxu0 0
        %3574 = vmatmul.mubr.bf16.gmra.mrb[0].mxu0 %v2586
        %v3575 = vpop.f32.mrb[0].mxu0
        %v3576 = vadd.f32 0.0, %v3575
        %v3577 = vpop.f32.mrb[0].mxu0
        %v3578 = vpop.f32.mrb[0].mxu0
        %v3579 = vadd.f32 0.0, %v3578
        %v3580 = vpop.f32.mrb[0].mxu0
        %3581 = vmatprep.mubr.bf16.mxu0 0
        %3582 = vmatmul.mubr.bf16.gmra.mrb[0].mxu0 %v3424
        %v3583 = vpop.f32.mrb[0].mxu0
        %v3584 = vadd.f32 0.0, %v3583
        %v3585 = vpop.f32.mrb[0].mxu0
        %v3586 = vpop.f32.mrb[0].mxu0
        %v3587 = vadd.f32 0.0, %v3586
        %v3588 = vpop.f32.mrb[0].mxu0
        %3589 = vdwg.mxu0
        %v3590 = vadd.f32 %v3378, %v3464
        %v3591 = vadd.f32 %v3379, %v3467
        %v3592 = vadd.f32 %v3380, %v3472
        %v3593 = vadd.f32 %v3381, %v3475
        %v3594 = vadd.f32 %v3382, %v3480
        %v3595 = vadd.f32 %v3383, %v3483
        %v3596 = vadd.f32 %v3384, %v3488
        %v3597 = vadd.f32 %v3385, %v3491
        %v3598 = vadd.f32 %v3386, %v3496
        %v3599 = vadd.f32 %v3387, %v3499
        %v3600 = vadd.f32 %v3388, %v3504
        %v3601 = vadd.f32 %v3389, %v3507
        %v3602 = vadd.f32 %v3390, %v3512
        %v3603 = vadd.f32 %v3391, %v3515
        %v3604 = vadd.f32 %v3392, %v3520
        %v3605 = vadd.f32 %v3393, %v3523
        %v3606 = vadd.f32 %v3394, %v3528
        %v3607 = vadd.f32 %v3395, %v3531
        %v3608 = vadd.f32 %v3396, %v3536
        %v3609 = vadd.f32 %v3397, %v3539
        %v3610 = vadd.f32 %v3398, %v3544
        %v3611 = vadd.f32 %v3399, %v3547
        %v3612 = vadd.f32 %v3400, %v3552
        %v3613 = vadd.f32 %v3401, %v3555
        %v3614 = vadd.f32 %v3402, %v3560
        %v3615 = vadd.f32 %v3403, %v3563
        %v3616 = vadd.f32 %v3404, %v3568
        %v3617 = vadd.f32 %v3405, %v3571
        %v3618 = vadd.f32 %v3406, %v3576
        %v3619 = vadd.f32 %v3407, %v3579
        %v3620 = vadd.f32 %v3408, %v3584
        %v3621 = vadd.f32 %v3409, %v3587
        %3622 = vst [vmem:[#allocation2] sm:$0xff] %v3590
        %3623 = vst [vmem:[#allocation2 + $0x8] sm:$0xff] %v3591
        %3624 = vst [vmem:[#allocation2 + $0x10] sm:$0xff] %v3592
        %3625 = vst [vmem:[#allocation2 + $0x18] sm:$0xff] %v3593
        %3626 = vst [vmem:[#allocation2 + $0x20] sm:$0xff] %v3594
        %3627 = vst [vmem:[#allocation2 + $0x28] sm:$0xff] %v3595
        %3628 = vst [vmem:[#allocation2 + $0x30] sm:$0xff] %v3596
        %3629 = vst [vmem:[#allocation2 + $0x38] sm:$0xff] %v3597
        %3630 = vst [vmem:[#allocation2 + $0x40] sm:$0xff] %v3598
        %3631 = vst [vmem:[#allocation2 + $0x48] sm:$0xff] %v3599
        %3632 = vst [vmem:[#allocation2 + $0x50] sm:$0xff] %v3600
        %3633 = vst [vmem:[#allocation2 + $0x58] sm:$0xff] %v3601
        %3634 = vst [vmem:[#allocation2 + $0x60] sm:$0xff] %v3602
        %3635 = vst [vmem:[#allocation2 + $0x68] sm:$0xff] %v3603
        %3636 = vst [vmem:[#allocation2 + $0x70] sm:$0xff] %v3604
        %3637 = vst [vmem:[#allocation2 + $0x78] sm:$0xff] %v3605
        %3638 = vst [vmem:[#allocation2 + $0x80] sm:$0xff] %v3606
        %3639 = vst [vmem:[#allocation2 + $0x88] sm:$0xff] %v3607
        %3640 = vst [vmem:[#allocation2 + $0x90] sm:$0xff] %v3608
        %3641 = vst [vmem:[#allocation2 + $0x98] sm:$0xff] %v3609
        %3642 = vst [vmem:[#allocation2 + $0xa0] sm:$0xff] %v3610
        %3643 = vst [vmem:[#allocation2 + $0xa8] sm:$0xff] %v3611
        %3644 = vst [vmem:[#allocation2 + $0xb0] sm:$0xff] %v3612
        %3645 = vst [vmem:[#allocation2 + $0xb8] sm:$0xff] %v3613
        %3646 = vst [vmem:[#allocation2 + $0xc0] sm:$0xff] %v3614
        %3647 = vst [vmem:[#allocation2 + $0xc8] sm:$0xff] %v3615
        %3648 = vst [vmem:[#allocation2 + $0xd0] sm:$0xff] %v3616
        %3649 = vst [vmem:[#allocation2 + $0xd8] sm:$0xff] %v3617
        %3650 = vst [vmem:[#allocation2 + $0xe0] sm:$0xff] %v3618
        %3651 = vst [vmem:[#allocation2 + $0xe8] sm:$0xff] %v3619
        %3652 = vst [vmem:[#allocation2 + $0xf0] sm:$0xff] %v3620
        %3653 = vst [vmem:[#allocation2 + $0xf8] sm:$0xff] %v3621
        %v3654 = vld [vmem:[#allocation2] sm:$0xff]
        %v3655 = vld [vmem:[#allocation2 + $0x8] sm:$0xff]
        %v3656 = vld [vmem:[#allocation2 + $0x10] sm:$0xff]
        %v3657 = vld [vmem:[#allocation2 + $0x18] sm:$0xff]
        %v3658 = vld [vmem:[#allocation2 + $0x20] sm:$0xff]
        %v3659 = vld [vmem:[#allocation2 + $0x28] sm:$0xff]
        %v3660 = vld [vmem:[#allocation2 + $0x30] sm:$0xff]
        %v3661 = vld [vmem:[#allocation2 + $0x38] sm:$0xff]
        %v3662 = vld [vmem:[#allocation2 + $0x40] sm:$0xff]
        %v3663 = vld [vmem:[#allocation2 + $0x48] sm:$0xff]
        %v3664 = vld [vmem:[#allocation2 + $0x50] sm:$0xff]
        %v3665 = vld [vmem:[#allocation2 + $0x58] sm:$0xff]
        %v3666 = vld [vmem:[#allocation2 + $0x60] sm:$0xff]
        %v3667 = vld [vmem:[#allocation2 + $0x68] sm:$0xff]
        %v3668 = vld [vmem:[#allocation2 + $0x70] sm:$0xff]
        %v3669 = vld [vmem:[#allocation2 + $0x78] sm:$0xff]
        %v3670 = vld [vmem:[#allocation2 + $0x80] sm:$0xff]
        %v3671 = vld [vmem:[#allocation2 + $0x88] sm:$0xff]
        %v3672 = vld [vmem:[#allocation2 + $0x90] sm:$0xff]
        %v3673 = vld [vmem:[#allocation2 + $0x98] sm:$0xff]
        %v3674 = vld [vmem:[#allocation2 + $0xa0] sm:$0xff]
        %v3675 = vld [vmem:[#allocation2 + $0xa8] sm:$0xff]
        %v3676 = vld [vmem:[#allocation2 + $0xb0] sm:$0xff]
        %v3677 = vld [vmem:[#allocation2 + $0xb8] sm:$0xff]
        %v3678 = vld [vmem:[#allocation2 + $0xc0] sm:$0xff]
        %v3679 = vld [vmem:[#allocation2 + $0xc8] sm:$0xff]
        %v3680 = vld [vmem:[#allocation2 + $0xd0] sm:$0xff]
        %v3681 = vld [vmem:[#allocation2 + $0xd8] sm:$0xff]
        %v3682 = vld [vmem:[#allocation2 + $0xe0] sm:$0xff]
        %v3683 = vld [vmem:[#allocation2 + $0xe8] sm:$0xff]
        %v3684 = vld [vmem:[#allocation2 + $0xf0] sm:$0xff]
        %v3685 = vld [vmem:[#allocation2 + $0xf8] sm:$0xff]
        %3686 = vst [vmem:[%s194] sm:$0xff] %v3654
        %3687 = vst [vmem:[%s194 + $0x8] sm:$0xff] %v3655
        %3688 = vst [vmem:[%s194 + $0x10] sm:$0xff] %v3656
        %3689 = vst [vmem:[%s194 + $0x18] sm:$0xff] %v3657
        %3690 = vst [vmem:[%s194 + $0x20] sm:$0xff] %v3658
        %3691 = vst [vmem:[%s194 + $0x28] sm:$0xff] %v3659
        %3692 = vst [vmem:[%s194 + $0x30] sm:$0xff] %v3660
        %3693 = vst [vmem:[%s194 + $0x38] sm:$0xff] %v3661
        %3694 = vst [vmem:[%s194 + $0x40] sm:$0xff] %v3662
        %3695 = vst [vmem:[%s194 + $0x48] sm:$0xff] %v3663
        %3696 = vst [vmem:[%s194 + $0x50] sm:$0xff] %v3664
        %3697 = vst [vmem:[%s194 + $0x58] sm:$0xff] %v3665
        %3698 = vst [vmem:[%s194 + $0x60] sm:$0xff] %v3666
        %3699 = vst [vmem:[%s194 + $0x68] sm:$0xff] %v3667
        %3700 = vst [vmem:[%s194 + $0x70] sm:$0xff] %v3668
        %3701 = vst [vmem:[%s194 + $0x78] sm:$0xff] %v3669
        %3702 = vst [vmem:[%s194 + $0x80] sm:$0xff] %v3670
        %3703 = vst [vmem:[%s194 + $0x88] sm:$0xff] %v3671
        %3704 = vst [vmem:[%s194 + $0x90] sm:$0xff] %v3672
        %3705 = vst [vmem:[%s194 + $0x98] sm:$0xff] %v3673
        %3706 = vst [vmem:[%s194 + $0xa0] sm:$0xff] %v3674
        %3707 = vst [vmem:[%s194 + $0xa8] sm:$0xff] %v3675
        %3708 = vst [vmem:[%s194 + $0xb0] sm:$0xff] %v3676
        %3709 = vst [vmem:[%s194 + $0xb8] sm:$0xff] %v3677
        %3710 = vst [vmem:[%s194 + $0xc0] sm:$0xff] %v3678
        %3711 = vst [vmem:[%s194 + $0xc8] sm:$0xff] %v3679
        %3712 = vst [vmem:[%s194 + $0xd0] sm:$0xff] %v3680
        %3713 = vst [vmem:[%s194 + $0xd8] sm:$0xff] %v3681
        %3714 = vst [vmem:[%s194 + $0xe0] sm:$0xff] %v3682
        %3715 = vst [vmem:[%s194 + $0xe8] sm:$0xff] %v3683
        %3716 = vst [vmem:[%s194 + $0xf0] sm:$0xff] %v3684
        %3717 = vst [vmem:[%s194 + $0xf8] sm:$0xff] %v3685
        %v3718 = vadd.f32 %v3654, %v3655
        %v3719 = vadd.f32 %v3718, %v3656
        %v3720 = vadd.f32 %v3719, %v3657
        %v3721 = vadd.f32 %v3720, %v3658
        %v3722 = vadd.f32 %v3721, %v3659
        %v3723 = vadd.f32 %v3722, %v3660
        %v3724 = vadd.f32 %v3723, %v3661
        %v3725 = vadd.f32 %v3724, %v3662
        %v3726 = vadd.f32 %v3725, %v3663
        %v3727 = vadd.f32 %v3726, %v3664
        %v3728 = vadd.f32 %v3727, %v3665
        %v3729 = vadd.f32 %v3728, %v3666
        %v3730 = vadd.f32 %v3729, %v3667
        %v3731 = vadd.f32 %v3730, %v3668
        %v3732 = vadd.f32 %v3731, %v3669
        %v3733 = vadd.f32 %v3732, %v3670
        %v3734 = vadd.f32 %v3733, %v3671
        %v3735 = vadd.f32 %v3734, %v3672
        %v3736 = vadd.f32 %v3735, %v3673
        %v3737 = vadd.f32 %v3736, %v3674
        %v3738 = vadd.f32 %v3737, %v3675
        %v3739 = vadd.f32 %v3738, %v3676
        %v3740 = vadd.f32 %v3739, %v3677
        %v3741 = vadd.f32 %v3740, %v3678
        %v3742 = vadd.f32 %v3741, %v3679
        %v3743 = vadd.f32 %v3742, %v3680
        %v3744 = vadd.f32 %v3743, %v3681
        %v3745 = vadd.f32 %v3744, %v3682
        %v3746 = vadd.f32 %v3745, %v3683
        %v3747 = vadd.f32 %v3746, %v3684
        %v3748 = vadd.f32 %v3747, %v3685
        %v3749 = vrot.slane %v3748, 4
        %v3750 = vadd.f32 %v3748, %v3749
        %v3751 = vrot.slane %v3750, 2
        %v3752 = vadd.f32 %v3750, %v3751
        %v3753 = vrot.slane %v3752, 1
        %v3754 = vadd.f32 %v3752, %v3753
        %3755 = vst [vmem:[%s200] sm:$0x1] %v3754
        %v3756 = vmul.f32 %v3654, %v3654
        %v3757 = vmul.f32 %v3655, %v3655
        %v3758 = vmul.f32 %v3656, %v3656
        %v3759 = vmul.f32 %v3657, %v3657
        %v3760 = vmul.f32 %v3658, %v3658
        %v3761 = vmul.f32 %v3659, %v3659
        %v3762 = vmul.f32 %v3660, %v3660
        %v3763 = vmul.f32 %v3661, %v3661
        %v3764 = vmul.f32 %v3662, %v3662
        %v3765 = vmul.f32 %v3663, %v3663
        %v3766 = vmul.f32 %v3664, %v3664
        %v3767 = vmul.f32 %v3665, %v3665
        %v3768 = vmul.f32 %v3666, %v3666
        %v3769 = vmul.f32 %v3667, %v3667
        %v3770 = vmul.f32 %v3668, %v3668
        %v3771 = vmul.f32 %v3669, %v3669
        %v3772 = vmul.f32 %v3670, %v3670
        %v3773 = vmul.f32 %v3671, %v3671
        %v3774 = vmul.f32 %v3672, %v3672
        %v3775 = vmul.f32 %v3673, %v3673
        %v3776 = vmul.f32 %v3674, %v3674
        %v3777 = vmul.f32 %v3675, %v3675
        %v3778 = vmul.f32 %v3676, %v3676
        %v3779 = vmul.f32 %v3677, %v3677
        %v3780 = vmul.f32 %v3678, %v3678
        %v3781 = vmul.f32 %v3679, %v3679
        %v3782 = vmul.f32 %v3680, %v3680
        %v3783 = vmul.f32 %v3681, %v3681
        %v3784 = vmul.f32 %v3682, %v3682
        %v3785 = vmul.f32 %v3683, %v3683
        %v3786 = vmul.f32 %v3684, %v3684
        %v3787 = vmul.f32 %v3685, %v3685
        %v3788 = vadd.f32 %v3756, %v3757
        %v3789 = vadd.f32 %v3788, %v3758
        %v3790 = vadd.f32 %v3789, %v3759
        %v3791 = vadd.f32 %v3790, %v3760
        %v3792 = vadd.f32 %v3791, %v3761
        %v3793 = vadd.f32 %v3792, %v3762
        %v3794 = vadd.f32 %v3793, %v3763
        %v3795 = vadd.f32 %v3794, %v3764
        %v3796 = vadd.f32 %v3795, %v3765
        %v3797 = vadd.f32 %v3796, %v3766
        %v3798 = vadd.f32 %v3797, %v3767
        %v3799 = vadd.f32 %v3798, %v3768
        %v3800 = vadd.f32 %v3799, %v3769
        %v3801 = vadd.f32 %v3800, %v3770
        %v3802 = vadd.f32 %v3801, %v3771
        %v3803 = vadd.f32 %v3802, %v3772
        %v3804 = vadd.f32 %v3803, %v3773
        %v3805 = vadd.f32 %v3804, %v3774
        %v3806 = vadd.f32 %v3805, %v3775
        %v3807 = vadd.f32 %v3806, %v3776
        %v3808 = vadd.f32 %v3807, %v3777
        %v3809 = vadd.f32 %v3808, %v3778
        %v3810 = vadd.f32 %v3809, %v3779
        %v3811 = vadd.f32 %v3810, %v3780
        %v3812 = vadd.f32 %v3811, %v3781
        %v3813 = vadd.f32 %v3812, %v3782
        %v3814 = vadd.f32 %v3813, %v3783
        %v3815 = vadd.f32 %v3814, %v3784
        %v3816 = vadd.f32 %v3815, %v3785
        %v3817 = vadd.f32 %v3816, %v3786
        %v3818 = vadd.f32 %v3817, %v3787
        %v3819 = vrot.slane %v3818, 4
        %v3820 = vadd.f32 %v3818, %v3819
        %v3821 = vrot.slane %v3820, 2
        %v3822 = vadd.f32 %v3820, %v3821
        %v3823 = vrot.slane %v3822, 1
        %v3824 = vadd.f32 %v3822, %v3823
        %3825 = vst [vmem:[%s206] sm:$0x1] %v3824
        %s3826 = sand.u32 %s77, 1
        %s3827 = scalar_lea.sflag [#allocation4], %s3826
        %s3828 = sand.u32 %s77, 1
        %s3829 = smul.addr %s3828, 256
        %s3830 = scalar_lea.vmem [#allocation3], %s3829
        %s3831 = sand.u32 %s22, 1
        %s3832 = scalar_lea.sflag [#allocation6], %s3831
        %s3833 = sand.u32 %s103, 1
        %s3834 = scalar_lea.vmem [#allocation5], %s3833
        %s3835 = sand.u32 %s22, 1
        %s3836 = scalar_lea.sflag [#allocation6], %s3835
        %s3837 = sand.u32 %s129, 1
        %s3838 = scalar_lea.vmem [#allocation7], %s3837
        // Predicated region
        $region29: #{tpu_custom_call.1} parent=27 // pred_check
          %p3839 = pneg %p87
        $region30: #{tpu_custom_call.1} parent=27 // pred_check_branch
          %3841 = sbr.rel (%p3839) target = $region32
        $region31: #{tpu_custom_call.1} parent=27 // pred_region
          %s3843 = ssub.s32 4096, 4096
          %3844 = vsyncadd %s3827, %s3843
          %s3845 = smul.addr %s22, 32
          %s3846 = smul.addr %s3845, 128
          %s3847 = scalar_lea.hbm %s2, %s3846
          %s3848 = sshll.u32 %s3830, 4
          %s3849 = int_to_ptr.vmem [resolvable:$true] %s3848
          %3854 = dma.vmem_to_hbm [thread:$0]  %s3849, 4096, %s3847, %s3827, 128, 128, 8
        $region32: #{tpu_custom_call.1} parent=27 // pred_fallthru
          _
        // Predicated region
        $region33: #{tpu_custom_call.1} parent=27 // pred_check
          %p3855 = pneg %p113
        $region34: #{tpu_custom_call.1} parent=27 // pred_check_branch
          %3857 = sbr.rel (%p3855) target = $region36
        $region35: #{tpu_custom_call.1} parent=27 // pred_region
          %s3859 = ssub.s32 16, 16
          %3860 = vsyncadd %s3832, %s3859
          %s3861 = smul.addr %s22, 16
          %s3862 = scalar_lea.hbm %s3, %s3861
          %s3864 = sshll.u32 %s3834, 4
          %s3865 = int_to_ptr.vmem [resolvable:$true] %s3864
          %3867 = dma.vmem_to_hbm [thread:$0]  %s3865, 16, %s3862, %s3832
        $region36: #{tpu_custom_call.1} parent=27 // pred_fallthru
          _
        // Predicated region
        $region37: #{tpu_custom_call.1} parent=27 // pred_check
          %p3868 = pneg %p139
        $region38: #{tpu_custom_call.1} parent=27 // pred_check_branch
          %3870 = sbr.rel (%p3868) target = $region40
        $region39: #{tpu_custom_call.1} parent=27 // pred_region
          %s3872 = ssub.s32 16, 16
          %3873 = vsyncadd %s3836, %s3872
          %s3874 = smul.addr %s22, 16
          %s3875 = scalar_lea.hbm %s4, %s3874
          %s3877 = sshll.u32 %s3838, 4
          %s3878 = int_to_ptr.vmem [resolvable:$true] %s3877
          %3880 = dma.vmem_to_hbm [thread:$0]  %s3878, 16, %s3875, %s3836
        $region40: #{tpu_custom_call.1} parent=27 // pred_fallthru
          _
      $region28: #{tpu_custom_call.1} parent=5 // pred_fallthru
        _
      %p3881 = scmp.le.s32.totalorder 2, %s17
      // Predicated region
      $region41: #{tpu_custom_call.1} parent=5 // pred_check
        %p3882 = pneg %p3881
      $region42: #{tpu_custom_call.1} parent=5 // pred_check_branch
        %3884 = sbr.rel (%p3882) target = $region44
      $region43: #{tpu_custom_call.1} parent=5 // pred_region
        %s3885 = ssub.s32 %s17, 2
        // Predicated region
        $region45: #{tpu_custom_call.1} parent=43 // pred_check
          %p3886 = pneg %p93
        $region46: #{tpu_custom_call.1} parent=43 // pred_check_branch
          %3888 = sbr.rel (%p3886) target = $region48
        $region47: #{tpu_custom_call.1} parent=43 // pred_region
          %s3889 = sand.u32 %s78, 1
          %s3890 = scalar_lea.sflag [#allocation4], %s3889
          %s3891 = sand.u32 %s78, 1
          %s3892 = smul.addr %s3891, 256
          %s3893 = scalar_lea.vmem [#allocation3], %s3892
          %3894 = dma.done %s3890, 4096
        $region48: #{tpu_custom_call.1} parent=43 // pred_fallthru
          _
        // Predicated region
        $region49: #{tpu_custom_call.1} parent=43 // pred_check
          %p3895 = pneg %p119
        $region50: #{tpu_custom_call.1} parent=43 // pred_check_branch
          %3897 = sbr.rel (%p3895) target = $region52
        $region51: #{tpu_custom_call.1} parent=43 // pred_region
          %s3898 = sand.u32 %s23, 1
          %s3899 = scalar_lea.sflag [#allocation6], %s3898
          %s3900 = sand.u32 %s104, 1
          %s3901 = scalar_lea.vmem [#allocation5], %s3900
          %3902 = dma.done %s3899, 16
        $region52: #{tpu_custom_call.1} parent=43 // pred_fallthru
          _
        // Predicated region
        $region53: #{tpu_custom_call.1} parent=43 // pred_check
          %p3903 = pneg %p145
        $region54: #{tpu_custom_call.1} parent=43 // pred_check_branch
          %3905 = sbr.rel (%p3903) target = $region56
        $region55: #{tpu_custom_call.1} parent=43 // pred_region
          %s3906 = sand.u32 %s23, 1
          %s3907 = scalar_lea.sflag [#allocation6], %s3906
          %s3908 = sand.u32 %s130, 1
          %s3909 = scalar_lea.vmem [#allocation7], %s3908
          %3910 = dma.done %s3907, 16
        $region56: #{tpu_custom_call.1} parent=43 // pred_fallthru
          _
      $region44: #{tpu_custom_call.1} parent=5 // pred_fallthru
        _
    $region6: #{tpu_custom_call.1} parent=1 // loop_footer
      %s21 = sadd.s32 1, %s17
    $region7: #{tpu_custom_call.1} parent=1 // loop_footer_branch
      %16 = sbr.rel target = $region3
    $region8: #{tpu_custom_call.1} parent=1 // loop_exit
      _
    %3911 = vsyncpa [#allocation4], 1
    %s3912 = scalar_lea.sflag [#allocation4], 1
    %3913 = vsyncpa %s3912, 1
    %3914 = vsyncpa [#allocation6], 1
    %s3915 = scalar_lea.sflag [#allocation6], 1
    %3916 = vsyncpa %s3915, 1

</llo_original>
